<compile_context>
chip_gen: v5e
topology: v5e:2x2
jax: 0.10.0
libtpu: 0.0.40
codegen_flags: <defaults>
</compile_context>

<pallas_src>
import functools

import jax
import jax.numpy as jnp
from jax import lax
from jax.experimental import pallas as pl
from jax.experimental.pallas import tpu as pltpu


def _round_up(x, m):
    return (x + m - 1) // m * m


def _sigmoid(x):
    # sigmoid(x) == 0.5*(tanh(x/2)+1): one EUP push instead of exp + recip.
    return 0.5 * jnp.tanh(0.5 * x) + 0.5


# ----------------------------------------------------------------------------
# Fused Pallas kernel: all LSTM layers + ReLU + Linear head, no grid.
# ----------------------------------------------------------------------------
def _fused_lstm_fc_kernel(*refs, seq_len, batch, num_layers):
    """refs layout (L = num_layers):
      [0]                x        (T*B, D0)   bf16   time-major flattened
      [1+3l : 4+3l]      layer l: wih_t (Din,4H) bf16, whh_t (H,4H) bf16,
                                  bias (1,4H) f32
      [1+3L]             fc_w_t   (H, O)      bf16
      [2+3L]             fc_b     (1, O)      f32
      [3+3L]             out      (B, O)      f32    (output)
      [4+3L]             xg_sc    (T*B, 4H)   f32    (scratch)
      [5+3L], [6+3L]     hseq_a / hseq_b (T*B, H) f32 (scratch, ping-pong)
    """
    L = num_layers
    x_ref = refs[0]
    layer_refs = refs[1:1 + 3 * L]
    wfc_ref = refs[1 + 3 * L]
    bfc_ref = refs[2 + 3 * L]
    out_ref = refs[3 + 3 * L]
    xg_sc = refs[4 + 3 * L]
    hseq = (refs[5 + 3 * L], refs[6 + 3 * L])

    H = hseq[0].shape[-1]

    def run_layer(x_bf16, wih_ref, whh_ref, b_ref, hout_ref):
        # Hoisted input projection for ALL timesteps: one big bf16 MXU matmul,
        # bias folded in once (not re-broadcast every step).
        xg_sc[...] = (
            jnp.dot(x_bf16, wih_ref[...], preferred_element_type=jnp.float32)
            + b_ref[...]
        )

        def step(t, carry):
            h, c = carry
            row = pl.multiple_of(t * batch, batch)
            # TODO(synk): hold whh stationary in the MXU across the recurrence
            # (pltpu.matmul_push_rhs / matmul_acc_lhs / matmul_pop) to avoid
            # re-feeding the same RHS weights every timestep.
            gates = xg_sc[pl.ds(row, batch), :] + jnp.dot(
                h.astype(jnp.bfloat16), whh_ref[...],
                preferred_element_type=jnp.float32)
            # H is a multiple of 128, so every gate slice is lane-aligned.
            # TODO(synk): for H < 128, packing all 4 gates into the natural
            # 4H lane group (instead of per-gate 128-lane padding) would shrink
            # the recurrent matmul N and xg_sc 4x at the cost of lane rolls.
            i_g = _sigmoid(gates[:, 0 * H:1 * H])
            f_g = _sigmoid(gates[:, 1 * H:2 * H])
            g_g = jnp.tanh(gates[:, 2 * H:3 * H])
            o_g = _sigmoid(gates[:, 3 * H:4 * H])
            c_new = f_g * c + i_g * g_g
            h_new = o_g * jnp.tanh(c_new)
            if hout_ref is not None:
                hout_ref[pl.ds(row, batch), :] = h_new
            return (h_new, c_new)

        h0 = jnp.zeros((batch, H), jnp.float32)
        c0 = jnp.zeros((batch, H), jnp.float32)
        h_last, _ = lax.fori_loop(0, seq_len, step, (h0, c0),
                                  unroll=min(int(seq_len), 8))
        return h_last

    h_last = None
    for l in range(L):
        wih_ref, whh_ref, b_ref = layer_refs[3 * l:3 * l + 3]
        is_last = (l == L - 1)
        x_in = x_ref[...] if l == 0 else hseq[(l - 1) % 2][...]
        h_last = run_layer(x_in.astype(jnp.bfloat16), wih_ref, whh_ref, b_ref,
                           None if is_last else hseq[l % 2])
        # TODO(synk): inter-layer dropout (p=0.5 when num_layers>1) only fires
        # in PyTorch train mode; this kernel implements eval mode (identity).

    # ReLU on the last timestep's hidden state, fused Linear head (the last
    # layer's full hidden sequence is never materialized).
    h_relu = jnp.maximum(h_last, 0.0)
    out_ref[...] = (
        jnp.dot(h_relu.astype(jnp.bfloat16), wfc_ref[...],
                preferred_element_type=jnp.float32)
        + bfc_ref[...]
    ).astype(out_ref.dtype)


# ----------------------------------------------------------------------------
# pallas_call wrapper
# ----------------------------------------------------------------------------
def fused_lstm_forward(x2d, lstm_layers, fc_w_t, fc_b, *, seq_len, batch):
    """x2d: (T*B, D0) time-major flattened (bf16).  Returns (B, O) f32."""
    TB, D0 = x2d.shape
    L = len(lstm_layers)
    H = lstm_layers[0]["whh_t"].shape[0]
    G = 4 * H
    O = fc_w_t.shape[1]

    in_arrays = [x2d]
    in_specs = [pl.BlockSpec((TB, D0), lambda: (0, 0))]
    for l, layer in enumerate(lstm_layers):
        din = D0 if l == 0 else H
        in_arrays += [layer["wih_t"], layer["whh_t"], layer["bias"]]
        in_specs += [pl.BlockSpec((din, G), lambda: (0, 0)),
                     pl.BlockSpec((H, G), lambda: (0, 0)),
                     pl.BlockSpec((1, G), lambda: (0, 0))]
    in_arrays += [fc_w_t, fc_b]
    in_specs += [pl.BlockSpec((H, O), lambda: (0, 0)),
                 pl.BlockSpec((1, O), lambda: (0, 0))]

    scratch_shapes = [pltpu.VMEM((TB, G), jnp.float32),   # xg_sc
                      pltpu.VMEM((TB, H), jnp.float32),   # hseq_a
                      pltpu.VMEM((TB, H), jnp.float32)]   # hseq_b

    # VMEM budget sized from the actual resident buffers (no grid -> single
    # buffering) with 2x headroom.  Matters on v5e's 16 MiB default limit.
    in_bytes = sum(int(a.size) * a.dtype.itemsize for a in in_arrays)
    out_bytes = batch * O * 4
    sc_bytes = (TB * G + 2 * TB * H) * 4
    vmem_bytes = int(min(100 << 20,
                         max(2 * (in_bytes + out_bytes + sc_bytes), 4 << 20)))
    # TODO(synk): once T*B*H grows, add a time-chunk grid axis with (h, c)
    # carried in scratch so the working set stays inside v7x's 64 MiB VMEM.

    kernel = functools.partial(_fused_lstm_fc_kernel, seq_len=seq_len,
                               batch=batch, num_layers=L)
    return pl.pallas_call(
        kernel,
        out_shape=jax.ShapeDtypeStruct((batch, O), jnp.float32),
        in_specs=in_specs,
        out_specs=pl.BlockSpec((batch, O), lambda: (0, 0)),
        scratch_shapes=scratch_shapes,
        compiler_params=pltpu.CompilerParams(vmem_limit_bytes=vmem_bytes),
    )(*in_arrays)


@functools.partial(jax.jit, static_argnames=("output_size",))
def lstm_model_forward(x, params, *, output_size):
    """x: (B, T, input_size), batch-first like the PyTorch module (eval mode)."""
    B, T, D = x.shape
    D_pad = params["lstm"][0]["wih_t"].shape[0]
    B_pad = _round_up(B, 8)

    # Zero-pad batch (sublane >= 8) and feature (lane = 128) dims, go
    # time-major, flatten (T, B, D) -> (T*B, D), cast to bf16.  Padding is
    # exact: padded lanes/rows stay 0 through the whole network.
    # TODO(synk): if x is reused across calls, precompute this padded
    # time-major bf16 layout once outside the per-call path.
    x_p = jnp.zeros((T, B_pad, D_pad), jnp.bfloat16)
    x_p = x_p.at[:, :B, :D].set(jnp.transpose(x, (1, 0, 2)).astype(jnp.bfloat16))
    x2d = x_p.reshape(T * B_pad, D_pad)

    out_p = fused_lstm_forward(x2d, params["lstm"], params["fc_w_t"],
                               params["fc_b"], seq_len=T, batch=B_pad)
    return out_p[:B, :output_size]


# ----------------------------------------------------------------------------
# Parameter init (mimics PyTorch uniform(-1/sqrt(H), 1/sqrt(H))) and padding
# ----------------------------------------------------------------------------
def init_params(key, input_size, hidden_size, num_layers, output_size):
    """Raw (unpadded, f32) params, weights pre-transposed for right-matmul."""
    k = 1.0 / jnp.sqrt(hidden_size)
    params = {"lstm": []}
    for l in range(num_layers):
        d_in = input_size if l == 0 else hidden_size
        key, k1, k2, k3, k4 = jax.random.split(key, 5)
        wih = jax.random.uniform(k1, (4 * hidden_size, d_in), jnp.float32, -k, k)
        whh = jax.random.uniform(k2, (4 * hidden_size, hidden_size), jnp.float32, -k, k)
        bih = jax.random.uniform(k3, (4 * hidden_size,), jnp.float32, -k, k)
        bhh = jax.random.uniform(k4, (4 * hidden_size,), jnp.float32, -k, k)
        params["lstm"].append({"wih_t": wih.T, "whh_t": whh.T, "bias": bih + bhh})
    key, k5, k6 = jax.random.split(key, 3)
    w_fc = jax.random.uniform(k5, (output_size, hidden_size), jnp.float32, -k, k)
    b_fc = jax.random.uniform(k6, (output_size,), jnp.float32, -k, k)
    params["fc_w_t"] = w_fc.T
    params["fc_b"] = b_fc
    return params


def _pad_gate_cols(w_t, H, H_pad):
    """(K, 4*H) -> (K, 4*H_pad), placing gate g at column offset g*H_pad."""
    K = w_t.shape[0]
    out = jnp.zeros((K, 4 * H_pad), w_t.dtype)
    for g in range(4):
        out = out.at[:, g * H_pad:g * H_pad + H].set(w_t[:, g * H:(g + 1) * H])
    return out


def _pad_rows(w, K_pad):
    if w.shape[0] == K_pad:
        return w
    return jnp.zeros((K_pad,) + w.shape[1:], w.dtype).at[:w.shape[0]].set(w)


def pad_params_for_kernel(raw, input_size, hidden_size, output_size):
    """Per-gate pad to H_pad (mult of 128) lanes, K dims to lane multiples.

    Matmul operands (weights) are cast to bf16; biases stay f32 (added to the
    f32 accumulator).
    """
    H = hidden_size
    H_pad = _round_up(H, 128)
    D_pad = _round_up(input_size, 128)
    O_pad = _round_up(output_size, 128)

    padded = {"lstm": []}
    for l, layer in enumerate(raw["lstm"]):
        d_in_pad = D_pad if l == 0 else H_pad
        wih_t = _pad_rows(_pad_gate_cols(layer["wih_t"], H, H_pad), d_in_pad)
        whh_t = _pad_rows(_pad_gate_cols(layer["whh_t"], H, H_pad), H_pad)
        bias = _pad_gate_cols(layer["bias"].reshape(1, 4 * H), H, H_pad)
        padded["lstm"].append({"wih_t": wih_t.astype(jnp.bfloat16),
                               "whh_t": whh_t.astype(jnp.bfloat16),
                               "bias": bias})
    fc_w_t = _pad_rows(raw["fc_w_t"], H_pad)                      # (H_pad, O)
    fc_w_t = jnp.zeros((H_pad, O_pad), jnp.float32).at[:, :output_size].set(fc_w_t)
    fc_b = jnp.zeros((1, O_pad), jnp.float32).at[0, :output_size].set(raw["fc_b"])
    padded["fc_w_t"] = fc_w_t.astype(jnp.bfloat16)
    padded["fc_b"] = fc_b
    return padded


# ----------------------------------------------------------------------------
# Pure-JAX f32 reference (correctness check, uses raw/unpadded params)
# ----------------------------------------------------------------------------
def reference_forward(x, params, hidden_size):
    B = x.shape[0]
    xs = x  # (B, T, D)
    for layer in params["lstm"]:
        wih_t, whh_t, bias = layer["wih_t"], layer["whh_t"], layer["bias"]

        def step(carry, x_t):
            h, c = carry
            gates = x_t @ wih_t + h @ whh_t + bias
            i, f, g, o = jnp.split(gates, 4, axis=-1)
            c = jax.nn.sigmoid(f) * c + jax.nn.sigmoid(i) * jnp.tanh(g)
            h = jax.nn.sigmoid(o) * jnp.tanh(c)
            return (h, c), h

        h0 = jnp.zeros((B, hidden_size), jnp.float32)
        c0 = jnp.zeros((B, hidden_size), jnp.float32)
        _, h_seq = jax.lax.scan(step, (h0, c0), jnp.transpose(xs, (1, 0, 2)))
        xs = jnp.transpose(h_seq, (1, 0, 2))
    h_last = jnp.maximum(xs[:, -1, :], 0.0)
    return h_last @ params["fc_w_t"] + params["fc_b"]


# ----------------------------------------------------------------------------
if __name__ == "__main__":
    batch, seq_len = 2, 8
    input_size, hidden_size, num_layers, output_size = 16, 32, 2, 4

    key = jax.random.PRNGKey(0)
    key, xk = jax.random.split(key)
    x = jax.random.normal(xk, (batch, seq_len, input_size), jnp.float32)

    raw_params = init_params(key, input_size, hidden_size, num_layers, output_size)
    kernel_params = pad_params_for_kernel(raw_params, input_size, hidden_size,
                                          output_size)

    out = lstm_model_forward(x, kernel_params, output_size=output_size)
    out = jax.block_until_ready(out)
    assert out.shape == (batch, output_size), out.shape

    ref = reference_forward(x, raw_params, hidden_size)
    # bf16 matmul operands -> relaxed tolerance vs the pure-f32 reference.
    assert jnp.allclose(out, ref, atol=5e-2, rtol=5e-2), (
        "mismatch vs reference", float(jnp.max(jnp.abs(out - ref))))

    print("KERNEL_OK")
</pallas_src>

<mosaic_0001>
module attributes {stable_mosaic.version = 11 : i64} {
  func.func @_fused_lstm_fc_kernel(%arg0: memref<64x128xbf16, #tpu.memory_space<vmem>>, %arg1: memref<128x512xbf16, #tpu.memory_space<vmem>>, %arg2: memref<128x512xbf16, #tpu.memory_space<vmem>>, %arg3: memref<1x512xf32, #tpu.memory_space<vmem>>, %arg4: memref<128x512xbf16, #tpu.memory_space<vmem>>, %arg5: memref<128x512xbf16, #tpu.memory_space<vmem>>, %arg6: memref<1x512xf32, #tpu.memory_space<vmem>>, %arg7: memref<128x128xbf16, #tpu.memory_space<vmem>>, %arg8: memref<1x128xf32, #tpu.memory_space<vmem>>, %arg9: memref<8x128xf32, #tpu.memory_space<vmem>>, %arg10: memref<64x512xf32, #tpu.memory_space<vmem>>, %arg11: memref<64x128xf32, #tpu.memory_space<vmem>>, %arg12: memref<64x128xf32, #tpu.memory_space<vmem>>) attributes {dimension_semantics = [], scalar_prefetch = 0 : i64, scratch_operands = 3 : i64, tpu.core_type = #tpu.core_type<tc>} {
    %c0 = arith.constant 0 : index
    %c0_0 = arith.constant 0 : index
    %0 = vector.load %arg0[%c0, %c0_0] : memref<64x128xbf16, #tpu.memory_space<vmem>>, vector<64x128xbf16>
    %c0_1 = arith.constant 0 : index
    %c0_2 = arith.constant 0 : index
    %1 = vector.load %arg1[%c0_1, %c0_2] : memref<128x512xbf16, #tpu.memory_space<vmem>>, vector<128x512xbf16>
    %cst = arith.constant dense<0.000000e+00> : vector<64x512xf32>
    %2 = tpu.matmul %0, %1, %cst {dimension_numbers = #tpu.dot_dimension_numbers<[1], [0], [0], [1], [0, 0, 1, 1], [], []>} : vector<64x128xbf16>, vector<128x512xbf16>, vector<64x512xf32> -> vector<64x512xf32>
    %c0_3 = arith.constant 0 : index
    %c0_4 = arith.constant 0 : index
    %3 = vector.load %arg3[%c0_3, %c0_4] : memref<1x512xf32, #tpu.memory_space<vmem>>, vector<1x512xf32>
    %4 = vector.broadcast %3 : vector<1x512xf32> to vector<64x512xf32>
    %5 = arith.addf %2, %4 : vector<64x512xf32>
    %c0_5 = arith.constant 0 : index
    %c0_6 = arith.constant 0 : index
    %6 = vector.load %arg10[%c0_5, %c0_6] : memref<64x512xf32, #tpu.memory_space<vmem>>, vector<64x512xf32>
    tpu.vector_store %arg10[%c0_5, %c0_6], %5 {strides = array<i32>} : memref<64x512xf32, #tpu.memory_space<vmem>>, vector<64x512xf32>,
    %cst_7 = arith.constant 0.000000e+00 : f32
    %7 = vector.broadcast %cst_7 : f32 to vector<8x128xf32>
    %cst_8 = arith.constant 0.000000e+00 : f32
    %8 = vector.broadcast %cst_8 : f32 to vector<8x128xf32>
    %c0_i32 = arith.constant 0 : i32
    %c8_i32 = arith.constant 8 : i32
    %9 = arith.muli %c0_i32, %c8_i32 : i32
    %10 = tpu.assume_multiple %9, 8 : i32
    %11 = arith.index_cast %10 : i32 to index
    %c0_9 = arith.constant 0 : index
    %12 = vector.load %arg10[%11, %c0_9] : memref<64x512xf32, #tpu.memory_space<vmem>>, vector<8x512xf32>
    %13 = arith.truncf %7 : vector<8x128xf32> to vector<8x128xbf16>
    %c0_10 = arith.constant 0 : index
    %c0_11 = arith.constant 0 : index
    %14 = vector.load %arg2[%c0_10, %c0_11] : memref<128x512xbf16, #tpu.memory_space<vmem>>, vector<128x512xbf16>
    %cst_12 = arith.constant dense<0.000000e+00> : vector<8x512xf32>
    %15 = tpu.matmul %13, %14, %cst_12 {dimension_numbers = #tpu.dot_dimension_numbers<[1], [0], [0], [1], [0, 0, 1, 1], [], []>} : vector<8x128xbf16>, vector<128x512xbf16>, vector<8x512xf32> -> vector<8x512xf32>
    %16 = arith.addf %12, %15 : vector<8x512xf32>
    %17 = vector.extract_strided_slice %16 {offsets = [0, 0], sizes = [8, 128], strides = [1, 1]} : vector<8x512xf32> to vector<8x128xf32>
    %cst_13 = arith.constant 5.000000e-01 : f32
    %18 = vector.broadcast %cst_13 : f32 to vector<8x128xf32>
    %19 = arith.mulf %18, %17 : vector<8x128xf32>
    %20 = math.tanh %19 : vector<8x128xf32>
    %cst_14 = arith.constant 5.000000e-01 : f32
    %21 = vector.broadcast %cst_14 : f32 to vector<8x128xf32>
    %22 = arith.mulf %21, %20 : vector<8x128xf32>
    %cst_15 = arith.constant 5.000000e-01 : f32
    %23 = vector.broadcast %cst_15 : f32 to vector<8x128xf32>
    %24 = arith.addf %22, %23 : vector<8x128xf32>
    %25 = vector.extract_strided_slice %16 {offsets = [0, 128], sizes = [8, 128], strides = [1, 1]} : vector<8x512xf32> to vector<8x128xf32>
    %cst_16 = arith.constant 5.000000e-01 : f32
    %26 = vector.broadcast %cst_16 : f32 to vector<8x128xf32>
    %27 = arith.mulf %26, %25 : vector<8x128xf32>
    %28 = math.tanh %27 : vector<8x128xf32>
    %cst_17 = arith.constant 5.000000e-01 : f32
    %29 = vector.broadcast %cst_17 : f32 to vector<8x128xf32>
    %30 = arith.mulf %29, %28 : vector<8x128xf32>
    %cst_18 = arith.constant 5.000000e-01 : f32
    %31 = vector.broadcast %cst_18 : f32 to vector<8x128xf32>
    %32 = arith.addf %30, %31 : vector<8x128xf32>
    %33 = vector.extract_strided_slice %16 {offsets = [0, 256], sizes = [8, 128], strides = [1, 1]} : vector<8x512xf32> to vector<8x128xf32>
    %34 = math.tanh %33 : vector<8x128xf32>
    %35 = vector.extract_strided_slice %16 {offsets = [0, 384], sizes = [8, 128], strides = [1, 1]} : vector<8x512xf32> to vector<8x128xf32>
    %cst_19 = arith.constant 5.000000e-01 : f32
    %36 = vector.broadcast %cst_19 : f32 to vector<8x128xf32>
    %37 = arith.mulf %36, %35 : vector<8x128xf32>
    %38 = math.tanh %37 : vector<8x128xf32>
    %cst_20 = arith.constant 5.000000e-01 : f32
    %39 = vector.broadcast %cst_20 : f32 to vector<8x128xf32>
    %40 = arith.mulf %39, %38 : vector<8x128xf32>
    %cst_21 = arith.constant 5.000000e-01 : f32
    %41 = vector.broadcast %cst_21 : f32 to vector<8x128xf32>
    %42 = arith.addf %40, %41 : vector<8x128xf32>
    %43 = arith.mulf %32, %8 : vector<8x128xf32>
    %44 = arith.mulf %24, %34 : vector<8x128xf32>
    %45 = arith.addf %43, %44 : vector<8x128xf32>
    %46 = math.tanh %45 : vector<8x128xf32>
    %47 = arith.mulf %42, %46 : vector<8x128xf32>
    %48 = arith.index_cast %10 : i32 to index
    %c0_22 = arith.constant 0 : index
    %49 = vector.load %arg11[%48, %c0_22] : memref<64x128xf32, #tpu.memory_space<vmem>>, vector<8x128xf32>
    tpu.vector_store %arg11[%48, %c0_22], %47 {strides = array<i32>} : memref<64x128xf32, #tpu.memory_space<vmem>>, vector<8x128xf32>,
    %c1_i32 = arith.constant 1 : i32
    %c8_i32_23 = arith.constant 8 : i32
    %50 = arith.muli %c1_i32, %c8_i32_23 : i32
    %51 = tpu.assume_multiple %50, 8 : i32
    %52 = arith.index_cast %51 : i32 to index
    %c0_24 = arith.constant 0 : index
    %53 = vector.load %arg10[%52, %c0_24] : memref<64x512xf32, #tpu.memory_space<vmem>>, vector<8x512xf32>
    %54 = arith.truncf %47 : vector<8x128xf32> to vector<8x128xbf16>
    %c0_25 = arith.constant 0 : index
    %c0_26 = arith.constant 0 : index
    %55 = vector.load %arg2[%c0_25, %c0_26] : memref<128x512xbf16, #tpu.memory_space<vmem>>, vector<128x512xbf16>
    %cst_27 = arith.constant dense<0.000000e+00> : vector<8x512xf32>
    %56 = tpu.matmul %54, %55, %cst_27 {dimension_numbers = #tpu.dot_dimension_numbers<[1], [0], [0], [1], [0, 0, 1, 1], [], []>} : vector<8x128xbf16>, vector<128x512xbf16>, vector<8x512xf32> -> vector<8x512xf32>
    %57 = arith.addf %53, %56 : vector<8x512xf32>
    %58 = vector.extract_strided_slice %57 {offsets = [0, 0], sizes = [8, 128], strides = [1, 1]} : vector<8x512xf32> to vector<8x128xf32>
    %cst_28 = arith.constant 5.000000e-01 : f32
    %59 = vector.broadcast %cst_28 : f32 to vector<8x128xf32>
    %60 = arith.mulf %59, %58 : vector<8x128xf32>
    %61 = math.tanh %60 : vector<8x128xf32>
    %cst_29 = arith.constant 5.000000e-01 : f32
    %62 = vector.broadcast %cst_29 : f32 to vector<8x128xf32>
    %63 = arith.mulf %62, %61 : vector<8x128xf32>
    %cst_30 = arith.constant 5.000000e-01 : f32
    %64 = vector.broadcast %cst_30 : f32 to vector<8x128xf32>
    %65 = arith.addf %63, %64 : vector<8x128xf32>
    %66 = vector.extract_strided_slice %57 {offsets = [0, 128], sizes = [8, 128], strides = [1, 1]} : vector<8x512xf32> to vector<8x128xf32>
    %cst_31 = arith.constant 5.000000e-01 : f32
    %67 = vector.broadcast %cst_31 : f32 to vector<8x128xf32>
    %68 = arith.mulf %67, %66 : vector<8x128xf32>
    %69 = math.tanh %68 : vector<8x128xf32>
    %cst_32 = arith.constant 5.000000e-01 : f32
    %70 = vector.broadcast %cst_32 : f32 to vector<8x128xf32>
    %71 = arith.mulf %70, %69 : vector<8x128xf32>
    %cst_33 = arith.constant 5.000000e-01 : f32
    %72 = vector.broadcast %cst_33 : f32 to vector<8x128xf32>
    %73 = arith.addf %71, %72 : vector<8x128xf32>
    %74 = vector.extract_strided_slice %57 {offsets = [0, 256], sizes = [8, 128], strides = [1, 1]} : vector<8x512xf32> to vector<8x128xf32>
    %75 = math.tanh %74 : vector<8x128xf32>
    %76 = vector.extract_strided_slice %57 {offsets = [0, 384], sizes = [8, 128], strides = [1, 1]} : vector<8x512xf32> to vector<8x128xf32>
    %cst_34 = arith.constant 5.000000e-01 : f32
    %77 = vector.broadcast %cst_34 : f32 to vector<8x128xf32>
    %78 = arith.mulf %77, %76 : vector<8x128xf32>
    %79 = math.tanh %78 : vector<8x128xf32>
    %cst_35 = arith.constant 5.000000e-01 : f32
    %80 = vector.broadcast %cst_35 : f32 to vector<8x128xf32>
    %81 = arith.mulf %80, %79 : vector<8x128xf32>
    %cst_36 = arith.constant 5.000000e-01 : f32
    %82 = vector.broadcast %cst_36 : f32 to vector<8x128xf32>
    %83 = arith.addf %81, %82 : vector<8x128xf32>
    %84 = arith.mulf %73, %45 : vector<8x128xf32>
    %85 = arith.mulf %65, %75 : vector<8x128xf32>
    %86 = arith.addf %84, %85 : vector<8x128xf32>
    %87 = math.tanh %86 : vector<8x128xf32>
    %88 = arith.mulf %83, %87 : vector<8x128xf32>
    %89 = arith.index_cast %51 : i32 to index
    %c0_37 = arith.constant 0 : index
    %90 = vector.load %arg11[%89, %c0_37] : memref<64x128xf32, #tpu.memory_space<vmem>>, vector<8x128xf32>
    tpu.vector_store %arg11[%89, %c0_37], %88 {strides = array<i32>} : memref<64x128xf32, #tpu.memory_space<vmem>>, vector<8x128xf32>,
    %c2_i32 = arith.constant 2 : i32
    %c8_i32_38 = arith.constant 8 : i32
    %91 = arith.muli %c2_i32, %c8_i32_38 : i32
    %92 = tpu.assume_multiple %91, 8 : i32
    %93 = arith.index_cast %92 : i32 to index
    %c0_39 = arith.constant 0 : index
    %94 = vector.load %arg10[%93, %c0_39] : memref<64x512xf32, #tpu.memory_space<vmem>>, vector<8x512xf32>
    %95 = arith.truncf %88 : vector<8x128xf32> to vector<8x128xbf16>
    %c0_40 = arith.constant 0 : index
    %c0_41 = arith.constant 0 : index
    %96 = vector.load %arg2[%c0_40, %c0_41] : memref<128x512xbf16, #tpu.memory_space<vmem>>, vector<128x512xbf16>
    %cst_42 = arith.constant dense<0.000000e+00> : vector<8x512xf32>
    %97 = tpu.matmul %95, %96, %cst_42 {dimension_numbers = #tpu.dot_dimension_numbers<[1], [0], [0], [1], [0, 0, 1, 1], [], []>} : vector<8x128xbf16>, vector<128x512xbf16>, vector<8x512xf32> -> vector<8x512xf32>
    %98 = arith.addf %94, %97 : vector<8x512xf32>
    %99 = vector.extract_strided_slice %98 {offsets = [0, 0], sizes = [8, 128], strides = [1, 1]} : vector<8x512xf32> to vector<8x128xf32>
    %cst_43 = arith.constant 5.000000e-01 : f32
    %100 = vector.broadcast %cst_43 : f32 to vector<8x128xf32>
    %101 = arith.mulf %100, %99 : vector<8x128xf32>
    %102 = math.tanh %101 : vector<8x128xf32>
    %cst_44 = arith.constant 5.000000e-01 : f32
    %103 = vector.broadcast %cst_44 : f32 to vector<8x128xf32>
    %104 = arith.mulf %103, %102 : vector<8x128xf32>
    %cst_45 = arith.constant 5.000000e-01 : f32
    %105 = vector.broadcast %cst_45 : f32 to vector<8x128xf32>
    %106 = arith.addf %104, %105 : vector<8x128xf32>
    %107 = vector.extract_strided_slice %98 {offsets = [0, 128], sizes = [8, 128], strides = [1, 1]} : vector<8x512xf32> to vector<8x128xf32>
    %cst_46 = arith.constant 5.000000e-01 : f32
    %108 = vector.broadcast %cst_46 : f32 to vector<8x128xf32>
    %109 = arith.mulf %108, %107 : vector<8x128xf32>
    %110 = math.tanh %109 : vector<8x128xf32>
    %cst_47 = arith.constant 5.000000e-01 : f32
    %111 = vector.broadcast %cst_47 : f32 to vector<8x128xf32>
    %112 = arith.mulf %111, %110 : vector<8x128xf32>
    %cst_48 = arith.constant 5.000000e-01 : f32
    %113 = vector.broadcast %cst_48 : f32 to vector<8x128xf32>
    %114 = arith.addf %112, %113 : vector<8x128xf32>
    %115 = vector.extract_strided_slice %98 {offsets = [0, 256], sizes = [8, 128], strides = [1, 1]} : vector<8x512xf32> to vector<8x128xf32>
    %116 = math.tanh %115 : vector<8x128xf32>
    %117 = vector.extract_strided_slice %98 {offsets = [0, 384], sizes = [8, 128], strides = [1, 1]} : vector<8x512xf32> to vector<8x128xf32>
    %cst_49 = arith.constant 5.000000e-01 : f32
    %118 = vector.broadcast %cst_49 : f32 to vector<8x128xf32>
    %119 = arith.mulf %118, %117 : vector<8x128xf32>
    %120 = math.tanh %119 : vector<8x128xf32>
    %cst_50 = arith.constant 5.000000e-01 : f32
    %121 = vector.broadcast %cst_50 : f32 to vector<8x128xf32>
    %122 = arith.mulf %121, %120 : vector<8x128xf32>
    %cst_51 = arith.constant 5.000000e-01 : f32
    %123 = vector.broadcast %cst_51 : f32 to vector<8x128xf32>
    %124 = arith.addf %122, %123 : vector<8x128xf32>
    %125 = arith.mulf %114, %86 : vector<8x128xf32>
    %126 = arith.mulf %106, %116 : vector<8x128xf32>
    %127 = arith.addf %125, %126 : vector<8x128xf32>
    %128 = math.tanh %127 : vector<8x128xf32>
    %129 = arith.mulf %124, %128 : vector<8x128xf32>
    %130 = arith.index_cast %92 : i32 to index
    %c0_52 = arith.constant 0 : index
    %131 = vector.load %arg11[%130, %c0_52] : memref<64x128xf32, #tpu.memory_space<vmem>>, vector<8x128xf32>
    tpu.vector_store %arg11[%130, %c0_52], %129 {strides = array<i32>} : memref<64x128xf32, #tpu.memory_space<vmem>>, vector<8x128xf32>,
    %c3_i32 = arith.constant 3 : i32
    %c8_i32_53 = arith.constant 8 : i32
    %132 = arith.muli %c3_i32, %c8_i32_53 : i32
    %133 = tpu.assume_multiple %132, 8 : i32
    %134 = arith.index_cast %133 : i32 to index
    %c0_54 = arith.constant 0 : index
    %135 = vector.load %arg10[%134, %c0_54] : memref<64x512xf32, #tpu.memory_space<vmem>>, vector<8x512xf32>
    %136 = arith.truncf %129 : vector<8x128xf32> to vector<8x128xbf16>
    %c0_55 = arith.constant 0 : index
    %c0_56 = arith.constant 0 : index
    %137 = vector.load %arg2[%c0_55, %c0_56] : memref<128x512xbf16, #tpu.memory_space<vmem>>, vector<128x512xbf16>
    %cst_57 = arith.constant dense<0.000000e+00> : vector<8x512xf32>
    %138 = tpu.matmul %136, %137, %cst_57 {dimension_numbers = #tpu.dot_dimension_numbers<[1], [0], [0], [1], [0, 0, 1, 1], [], []>} : vector<8x128xbf16>, vector<128x512xbf16>, vector<8x512xf32> -> vector<8x512xf32>
    %139 = arith.addf %135, %138 : vector<8x512xf32>
    %140 = vector.extract_strided_slice %139 {offsets = [0, 0], sizes = [8, 128], strides = [1, 1]} : vector<8x512xf32> to vector<8x128xf32>
    %cst_58 = arith.constant 5.000000e-01 : f32
    %141 = vector.broadcast %cst_58 : f32 to vector<8x128xf32>
    %142 = arith.mulf %141, %140 : vector<8x128xf32>
    %143 = math.tanh %142 : vector<8x128xf32>
    %cst_59 = arith.constant 5.000000e-01 : f32
    %144 = vector.broadcast %cst_59 : f32 to vector<8x128xf32>
    %145 = arith.mulf %144, %143 : vector<8x128xf32>
    %cst_60 = arith.constant 5.000000e-01 : f32
    %146 = vector.broadcast %cst_60 : f32 to vector<8x128xf32>
    %147 = arith.addf %145, %146 : vector<8x128xf32>
    %148 = vector.extract_strided_slice %139 {offsets = [0, 128], sizes = [8, 128], strides = [1, 1]} : vector<8x512xf32> to vector<8x128xf32>
    %cst_61 = arith.constant 5.000000e-01 : f32
    %149 = vector.broadcast %cst_61 : f32 to vector<8x128xf32>
    %150 = arith.mulf %149, %148 : vector<8x128xf32>
    %151 = math.tanh %150 : vector<8x128xf32>
    %cst_62 = arith.constant 5.000000e-01 : f32
    %152 = vector.broadcast %cst_62 : f32 to vector<8x128xf32>
    %153 = arith.mulf %152, %151 : vector<8x128xf32>
    %cst_63 = arith.constant 5.000000e-01 : f32
    %154 = vector.broadcast %cst_63 : f32 to vector<8x128xf32>
    %155 = arith.addf %153, %154 : vector<8x128xf32>
    %156 = vector.extract_strided_slice %139 {offsets = [0, 256], sizes = [8, 128], strides = [1, 1]} : vector<8x512xf32> to vector<8x128xf32>
    %157 = math.tanh %156 : vector<8x128xf32>
    %158 = vector.extract_strided_slice %139 {offsets = [0, 384], sizes = [8, 128], strides = [1, 1]} : vector<8x512xf32> to vector<8x128xf32>
    %cst_64 = arith.constant 5.000000e-01 : f32
    %159 = vector.broadcast %cst_64 : f32 to vector<8x128xf32>
    %160 = arith.mulf %159, %158 : vector<8x128xf32>
    %161 = math.tanh %160 : vector<8x128xf32>
    %cst_65 = arith.constant 5.000000e-01 : f32
    %162 = vector.broadcast %cst_65 : f32 to vector<8x128xf32>
    %163 = arith.mulf %162, %161 : vector<8x128xf32>
    %cst_66 = arith.constant 5.000000e-01 : f32
    %164 = vector.broadcast %cst_66 : f32 to vector<8x128xf32>
    %165 = arith.addf %163, %164 : vector<8x128xf32>
    %166 = arith.mulf %155, %127 : vector<8x128xf32>
    %167 = arith.mulf %147, %157 : vector<8x128xf32>
    %168 = arith.addf %166, %167 : vector<8x128xf32>
    %169 = math.tanh %168 : vector<8x128xf32>
    %170 = arith.mulf %165, %169 : vector<8x128xf32>
    %171 = arith.index_cast %133 : i32 to index
    %c0_67 = arith.constant 0 : index
    %172 = vector.load %arg11[%171, %c0_67] : memref<64x128xf32, #tpu.memory_space<vmem>>, vector<8x128xf32>
    tpu.vector_store %arg11[%171, %c0_67], %170 {strides = array<i32>} : memref<64x128xf32, #tpu.memory_space<vmem>>, vector<8x128xf32>,
    %c4_i32 = arith.constant 4 : i32
    %c8_i32_68 = arith.constant 8 : i32
    %173 = arith.muli %c4_i32, %c8_i32_68 : i32
    %174 = tpu.assume_multiple %173, 8 : i32
    %175 = arith.index_cast %174 : i32 to index
    %c0_69 = arith.constant 0 : index
    %176 = vector.load %arg10[%175, %c0_69] : memref<64x512xf32, #tpu.memory_space<vmem>>, vector<8x512xf32>
    %177 = arith.truncf %170 : vector<8x128xf32> to vector<8x128xbf16>
    %c0_70 = arith.constant 0 : index
    %c0_71 = arith.constant 0 : index
    %178 = vector.load %arg2[%c0_70, %c0_71] : memref<128x512xbf16, #tpu.memory_space<vmem>>, vector<128x512xbf16>
    %cst_72 = arith.constant dense<0.000000e+00> : vector<8x512xf32>
    %179 = tpu.matmul %177, %178, %cst_72 {dimension_numbers = #tpu.dot_dimension_numbers<[1], [0], [0], [1], [0, 0, 1, 1], [], []>} : vector<8x128xbf16>, vector<128x512xbf16>, vector<8x512xf32> -> vector<8x512xf32>
    %180 = arith.addf %176, %179 : vector<8x512xf32>
    %181 = vector.extract_strided_slice %180 {offsets = [0, 0], sizes = [8, 128], strides = [1, 1]} : vector<8x512xf32> to vector<8x128xf32>
    %cst_73 = arith.constant 5.000000e-01 : f32
    %182 = vector.broadcast %cst_73 : f32 to vector<8x128xf32>
    %183 = arith.mulf %182, %181 : vector<8x128xf32>
    %184 = math.tanh %183 : vector<8x128xf32>
    %cst_74 = arith.constant 5.000000e-01 : f32
    %185 = vector.broadcast %cst_74 : f32 to vector<8x128xf32>
    %186 = arith.mulf %185, %184 : vector<8x128xf32>
    %cst_75 = arith.constant 5.000000e-01 : f32
    %187 = vector.broadcast %cst_75 : f32 to vector<8x128xf32>
    %188 = arith.addf %186, %187 : vector<8x128xf32>
    %189 = vector.extract_strided_slice %180 {offsets = [0, 128], sizes = [8, 128], strides = [1, 1]} : vector<8x512xf32> to vector<8x128xf32>
    %cst_76 = arith.constant 5.000000e-01 : f32
    %190 = vector.broadcast %cst_76 : f32 to vector<8x128xf32>
    %191 = arith.mulf %190, %189 : vector<8x128xf32>
    %192 = math.tanh %191 : vector<8x128xf32>
    %cst_77 = arith.constant 5.000000e-01 : f32
    %193 = vector.broadcast %cst_77 : f32 to vector<8x128xf32>
    %194 = arith.mulf %193, %192 : vector<8x128xf32>
    %cst_78 = arith.constant 5.000000e-01 : f32
    %195 = vector.broadcast %cst_78 : f32 to vector<8x128xf32>
    %196 = arith.addf %194, %195 : vector<8x128xf32>
    %197 = vector.extract_strided_slice %180 {offsets = [0, 256], sizes = [8, 128], strides = [1, 1]} : vector<8x512xf32> to vector<8x128xf32>
    %198 = math.tanh %197 : vector<8x128xf32>
    %199 = vector.extract_strided_slice %180 {offsets = [0, 384], sizes = [8, 128], strides = [1, 1]} : vector<8x512xf32> to vector<8x128xf32>
    %cst_79 = arith.constant 5.000000e-01 : f32
    %200 = vector.broadcast %cst_79 : f32 to vector<8x128xf32>
    %201 = arith.mulf %200, %199 : vector<8x128xf32>
    %202 = math.tanh %201 : vector<8x128xf32>
    %cst_80 = arith.constant 5.000000e-01 : f32
    %203 = vector.broadcast %cst_80 : f32 to vector<8x128xf32>
    %204 = arith.mulf %203, %202 : vector<8x128xf32>
    %cst_81 = arith.constant 5.000000e-01 : f32
    %205 = vector.broadcast %cst_81 : f32 to vector<8x128xf32>
    %206 = arith.addf %204, %205 : vector<8x128xf32>
    %207 = arith.mulf %196, %168 : vector<8x128xf32>
    %208 = arith.mulf %188, %198 : vector<8x128xf32>
    %209 = arith.addf %207, %208 : vector<8x128xf32>
    %210 = math.tanh %209 : vector<8x128xf32>
    %211 = arith.mulf %206, %210 : vector<8x128xf32>
    %212 = arith.index_cast %174 : i32 to index
    %c0_82 = arith.constant 0 : index
    %213 = vector.load %arg11[%212, %c0_82] : memref<64x128xf32, #tpu.memory_space<vmem>>, vector<8x128xf32>
    tpu.vector_store %arg11[%212, %c0_82], %211 {strides = array<i32>} : memref<64x128xf32, #tpu.memory_space<vmem>>, vector<8x128xf32>,
    %c5_i32 = arith.constant 5 : i32
    %c8_i32_83 = arith.constant 8 : i32
    %214 = arith.muli %c5_i32, %c8_i32_83 : i32
    %215 = tpu.assume_multiple %214, 8 : i32
    %216 = arith.index_cast %215 : i32 to index
    %c0_84 = arith.constant 0 : index
    %217 = vector.load %arg10[%216, %c0_84] : memref<64x512xf32, #tpu.memory_space<vmem>>, vector<8x512xf32>
    %218 = arith.truncf %211 : vector<8x128xf32> to vector<8x128xbf16>
    %c0_85 = arith.constant 0 : index
    %c0_86 = arith.constant 0 : index
    %219 = vector.load %arg2[%c0_85, %c0_86] : memref<128x512xbf16, #tpu.memory_space<vmem>>, vector<128x512xbf16>
    %cst_87 = arith.constant dense<0.000000e+00> : vector<8x512xf32>
    %220 = tpu.matmul %218, %219, %cst_87 {dimension_numbers = #tpu.dot_dimension_numbers<[1], [0], [0], [1], [0, 0, 1, 1], [], []>} : vector<8x128xbf16>, vector<128x512xbf16>, vector<8x512xf32> -> vector<8x512xf32>
    %221 = arith.addf %217, %220 : vector<8x512xf32>
    %222 = vector.extract_strided_slice %221 {offsets = [0, 0], sizes = [8, 128], strides = [1, 1]} : vector<8x512xf32> to vector<8x128xf32>
    %cst_88 = arith.constant 5.000000e-01 : f32
    %223 = vector.broadcast %cst_88 : f32 to vector<8x128xf32>
    %224 = arith.mulf %223, %222 : vector<8x128xf32>
    %225 = math.tanh %224 : vector<8x128xf32>
    %cst_89 = arith.constant 5.000000e-01 : f32
    %226 = vector.broadcast %cst_89 : f32 to vector<8x128xf32>
    %227 = arith.mulf %226, %225 : vector<8x128xf32>
    %cst_90 = arith.constant 5.000000e-01 : f32
    %228 = vector.broadcast %cst_90 : f32 to vector<8x128xf32>
    %229 = arith.addf %227, %228 : vector<8x128xf32>
    %230 = vector.extract_strided_slice %221 {offsets = [0, 128], sizes = [8, 128], strides = [1, 1]} : vector<8x512xf32> to vector<8x128xf32>
    %cst_91 = arith.constant 5.000000e-01 : f32
    %231 = vector.broadcast %cst_91 : f32 to vector<8x128xf32>
    %232 = arith.mulf %231, %230 : vector<8x128xf32>
    %233 = math.tanh %232 : vector<8x128xf32>
    %cst_92 = arith.constant 5.000000e-01 : f32
    %234 = vector.broadcast %cst_92 : f32 to vector<8x128xf32>
    %235 = arith.mulf %234, %233 : vector<8x128xf32>
    %cst_93 = arith.constant 5.000000e-01 : f32
    %236 = vector.broadcast %cst_93 : f32 to vector<8x128xf32>
    %237 = arith.addf %235, %236 : vector<8x128xf32>
    %238 = vector.extract_strided_slice %221 {offsets = [0, 256], sizes = [8, 128], strides = [1, 1]} : vector<8x512xf32> to vector<8x128xf32>
    %239 = math.tanh %238 : vector<8x128xf32>
    %240 = vector.extract_strided_slice %221 {offsets = [0, 384], sizes = [8, 128], strides = [1, 1]} : vector<8x512xf32> to vector<8x128xf32>
    %cst_94 = arith.constant 5.000000e-01 : f32
    %241 = vector.broadcast %cst_94 : f32 to vector<8x128xf32>
    %242 = arith.mulf %241, %240 : vector<8x128xf32>
    %243 = math.tanh %242 : vector<8x128xf32>
    %cst_95 = arith.constant 5.000000e-01 : f32
    %244 = vector.broadcast %cst_95 : f32 to vector<8x128xf32>
    %245 = arith.mulf %244, %243 : vector<8x128xf32>
    %cst_96 = arith.constant 5.000000e-01 : f32
    %246 = vector.broadcast %cst_96 : f32 to vector<8x128xf32>
    %247 = arith.addf %245, %246 : vector<8x128xf32>
    %248 = arith.mulf %237, %209 : vector<8x128xf32>
    %249 = arith.mulf %229, %239 : vector<8x128xf32>
    %250 = arith.addf %248, %249 : vector<8x128xf32>
    %251 = math.tanh %250 : vector<8x128xf32>
    %252 = arith.mulf %247, %251 : vector<8x128xf32>
    %253 = arith.index_cast %215 : i32 to index
    %c0_97 = arith.constant 0 : index
    %254 = vector.load %arg11[%253, %c0_97] : memref<64x128xf32, #tpu.memory_space<vmem>>, vector<8x128xf32>
    tpu.vector_store %arg11[%253, %c0_97], %252 {strides = array<i32>} : memref<64x128xf32, #tpu.memory_space<vmem>>, vector<8x128xf32>,
    %c6_i32 = arith.constant 6 : i32
    %c8_i32_98 = arith.constant 8 : i32
    %255 = arith.muli %c6_i32, %c8_i32_98 : i32
    %256 = tpu.assume_multiple %255, 8 : i32
    %257 = arith.index_cast %256 : i32 to index
    %c0_99 = arith.constant 0 : index
    %258 = vector.load %arg10[%257, %c0_99] : memref<64x512xf32, #tpu.memory_space<vmem>>, vector<8x512xf32>
    %259 = arith.truncf %252 : vector<8x128xf32> to vector<8x128xbf16>
    %c0_100 = arith.constant 0 : index
    %c0_101 = arith.constant 0 : index
    %260 = vector.load %arg2[%c0_100, %c0_101] : memref<128x512xbf16, #tpu.memory_space<vmem>>, vector<128x512xbf16>
    %cst_102 = arith.constant dense<0.000000e+00> : vector<8x512xf32>
    %261 = tpu.matmul %259, %260, %cst_102 {dimension_numbers = #tpu.dot_dimension_numbers<[1], [0], [0], [1], [0, 0, 1, 1], [], []>} : vector<8x128xbf16>, vector<128x512xbf16>, vector<8x512xf32> -> vector<8x512xf32>
    %262 = arith.addf %258, %261 : vector<8x512xf32>
    %263 = vector.extract_strided_slice %262 {offsets = [0, 0], sizes = [8, 128], strides = [1, 1]} : vector<8x512xf32> to vector<8x128xf32>
    %cst_103 = arith.constant 5.000000e-01 : f32
    %264 = vector.broadcast %cst_103 : f32 to vector<8x128xf32>
    %265 = arith.mulf %264, %263 : vector<8x128xf32>
    %266 = math.tanh %265 : vector<8x128xf32>
    %cst_104 = arith.constant 5.000000e-01 : f32
    %267 = vector.broadcast %cst_104 : f32 to vector<8x128xf32>
    %268 = arith.mulf %267, %266 : vector<8x128xf32>
    %cst_105 = arith.constant 5.000000e-01 : f32
    %269 = vector.broadcast %cst_105 : f32 to vector<8x128xf32>
    %270 = arith.addf %268, %269 : vector<8x128xf32>
    %271 = vector.extract_strided_slice %262 {offsets = [0, 128], sizes = [8, 128], strides = [1, 1]} : vector<8x512xf32> to vector<8x128xf32>
    %cst_106 = arith.constant 5.000000e-01 : f32
    %272 = vector.broadcast %cst_106 : f32 to vector<8x128xf32>
    %273 = arith.mulf %272, %271 : vector<8x128xf32>
    %274 = math.tanh %273 : vector<8x128xf32>
    %cst_107 = arith.constant 5.000000e-01 : f32
    %275 = vector.broadcast %cst_107 : f32 to vector<8x128xf32>
    %276 = arith.mulf %275, %274 : vector<8x128xf32>
    %cst_108 = arith.constant 5.000000e-01 : f32
    %277 = vector.broadcast %cst_108 : f32 to vector<8x128xf32>
    %278 = arith.addf %276, %277 : vector<8x128xf32>
    %279 = vector.extract_strided_slice %262 {offsets = [0, 256], sizes = [8, 128], strides = [1, 1]} : vector<8x512xf32> to vector<8x128xf32>
    %280 = math.tanh %279 : vector<8x128xf32>
    %281 = vector.extract_strided_slice %262 {offsets = [0, 384], sizes = [8, 128], strides = [1, 1]} : vector<8x512xf32> to vector<8x128xf32>
    %cst_109 = arith.constant 5.000000e-01 : f32
    %282 = vector.broadcast %cst_109 : f32 to vector<8x128xf32>
    %283 = arith.mulf %282, %281 : vector<8x128xf32>
    %284 = math.tanh %283 : vector<8x128xf32>
    %cst_110 = arith.constant 5.000000e-01 : f32
    %285 = vector.broadcast %cst_110 : f32 to vector<8x128xf32>
    %286 = arith.mulf %285, %284 : vector<8x128xf32>
    %cst_111 = arith.constant 5.000000e-01 : f32
    %287 = vector.broadcast %cst_111 : f32 to vector<8x128xf32>
    %288 = arith.addf %286, %287 : vector<8x128xf32>
    %289 = arith.mulf %278, %250 : vector<8x128xf32>
    %290 = arith.mulf %270, %280 : vector<8x128xf32>
    %291 = arith.addf %289, %290 : vector<8x128xf32>
    %292 = math.tanh %291 : vector<8x128xf32>
    %293 = arith.mulf %288, %292 : vector<8x128xf32>
    %294 = arith.index_cast %256 : i32 to index
    %c0_112 = arith.constant 0 : index
    %295 = vector.load %arg11[%294, %c0_112] : memref<64x128xf32, #tpu.memory_space<vmem>>, vector<8x128xf32>
    tpu.vector_store %arg11[%294, %c0_112], %293 {strides = array<i32>} : memref<64x128xf32, #tpu.memory_space<vmem>>, vector<8x128xf32>,
    %c7_i32 = arith.constant 7 : i32
    %c8_i32_113 = arith.constant 8 : i32
    %296 = arith.muli %c7_i32, %c8_i32_113 : i32
    %297 = tpu.assume_multiple %296, 8 : i32
    %298 = arith.index_cast %297 : i32 to index
    %c0_114 = arith.constant 0 : index
    %299 = vector.load %arg10[%298, %c0_114] : memref<64x512xf32, #tpu.memory_space<vmem>>, vector<8x512xf32>
    %300 = arith.truncf %293 : vector<8x128xf32> to vector<8x128xbf16>
    %c0_115 = arith.constant 0 : index
    %c0_116 = arith.constant 0 : index
    %301 = vector.load %arg2[%c0_115, %c0_116] : memref<128x512xbf16, #tpu.memory_space<vmem>>, vector<128x512xbf16>
    %cst_117 = arith.constant dense<0.000000e+00> : vector<8x512xf32>
    %302 = tpu.matmul %300, %301, %cst_117 {dimension_numbers = #tpu.dot_dimension_numbers<[1], [0], [0], [1], [0, 0, 1, 1], [], []>} : vector<8x128xbf16>, vector<128x512xbf16>, vector<8x512xf32> -> vector<8x512xf32>
    %303 = arith.addf %299, %302 : vector<8x512xf32>
    %304 = vector.extract_strided_slice %303 {offsets = [0, 0], sizes = [8, 128], strides = [1, 1]} : vector<8x512xf32> to vector<8x128xf32>
    %cst_118 = arith.constant 5.000000e-01 : f32
    %305 = vector.broadcast %cst_118 : f32 to vector<8x128xf32>
    %306 = arith.mulf %305, %304 : vector<8x128xf32>
    %307 = math.tanh %306 : vector<8x128xf32>
    %cst_119 = arith.constant 5.000000e-01 : f32
    %308 = vector.broadcast %cst_119 : f32 to vector<8x128xf32>
    %309 = arith.mulf %308, %307 : vector<8x128xf32>
    %cst_120 = arith.constant 5.000000e-01 : f32
    %310 = vector.broadcast %cst_120 : f32 to vector<8x128xf32>
    %311 = arith.addf %309, %310 : vector<8x128xf32>
    %312 = vector.extract_strided_slice %303 {offsets = [0, 128], sizes = [8, 128], strides = [1, 1]} : vector<8x512xf32> to vector<8x128xf32>
    %cst_121 = arith.constant 5.000000e-01 : f32
    %313 = vector.broadcast %cst_121 : f32 to vector<8x128xf32>
    %314 = arith.mulf %313, %312 : vector<8x128xf32>
    %315 = math.tanh %314 : vector<8x128xf32>
    %cst_122 = arith.constant 5.000000e-01 : f32
    %316 = vector.broadcast %cst_122 : f32 to vector<8x128xf32>
    %317 = arith.mulf %316, %315 : vector<8x128xf32>
    %cst_123 = arith.constant 5.000000e-01 : f32
    %318 = vector.broadcast %cst_123 : f32 to vector<8x128xf32>
    %319 = arith.addf %317, %318 : vector<8x128xf32>
    %320 = vector.extract_strided_slice %303 {offsets = [0, 256], sizes = [8, 128], strides = [1, 1]} : vector<8x512xf32> to vector<8x128xf32>
    %321 = math.tanh %320 : vector<8x128xf32>
    %322 = vector.extract_strided_slice %303 {offsets = [0, 384], sizes = [8, 128], strides = [1, 1]} : vector<8x512xf32> to vector<8x128xf32>
    %cst_124 = arith.constant 5.000000e-01 : f32
    %323 = vector.broadcast %cst_124 : f32 to vector<8x128xf32>
    %324 = arith.mulf %323, %322 : vector<8x128xf32>
    %325 = math.tanh %324 : vector<8x128xf32>
    %cst_125 = arith.constant 5.000000e-01 : f32
    %326 = vector.broadcast %cst_125 : f32 to vector<8x128xf32>
    %327 = arith.mulf %326, %325 : vector<8x128xf32>
    %cst_126 = arith.constant 5.000000e-01 : f32
    %328 = vector.broadcast %cst_126 : f32 to vector<8x128xf32>
    %329 = arith.addf %327, %328 : vector<8x128xf32>
    %330 = arith.mulf %319, %291 : vector<8x128xf32>
    %331 = arith.mulf %311, %321 : vector<8x128xf32>
    %332 = arith.addf %330, %331 : vector<8x128xf32>
    %333 = math.tanh %332 : vector<8x128xf32>
    %334 = arith.mulf %329, %333 : vector<8x128xf32>
    %335 = arith.index_cast %297 : i32 to index
    %c0_127 = arith.constant 0 : index
    %336 = vector.load %arg11[%335, %c0_127] : memref<64x128xf32, #tpu.memory_space<vmem>>, vector<8x128xf32>
    tpu.vector_store %arg11[%335, %c0_127], %334 {strides = array<i32>} : memref<64x128xf32, #tpu.memory_space<vmem>>, vector<8x128xf32>,
    %c8_i32_128 = arith.constant 8 : i32
    %c0_129 = arith.constant 0 : index
    %c0_130 = arith.constant 0 : index
    %337 = vector.load %arg11[%c0_129, %c0_130] : memref<64x128xf32, #tpu.memory_space<vmem>>, vector<64x128xf32>
    %338 = arith.truncf %337 : vector<64x128xf32> to vector<64x128xbf16>
    %c0_131 = arith.constant 0 : index
    %c0_132 = arith.constant 0 : index
    %339 = vector.load %arg4[%c0_131, %c0_132] : memref<128x512xbf16, #tpu.memory_space<vmem>>, vector<128x512xbf16>
    %cst_133 = arith.constant dense<0.000000e+00> : vector<64x512xf32>
    %340 = tpu.matmul %338, %339, %cst_133 {dimension_numbers = #tpu.dot_dimension_numbers<[1], [0], [0], [1], [0, 0, 1, 1], [], []>} : vector<64x128xbf16>, vector<128x512xbf16>, vector<64x512xf32> -> vector<64x512xf32>
    %c0_134 = arith.constant 0 : index
    %c0_135 = arith.constant 0 : index
    %341 = vector.load %arg6[%c0_134, %c0_135] : memref<1x512xf32, #tpu.memory_space<vmem>>, vector<1x512xf32>
    %342 = vector.broadcast %341 : vector<1x512xf32> to vector<64x512xf32>
    %343 = arith.addf %340, %342 : vector<64x512xf32>
    %c0_136 = arith.constant 0 : index
    %c0_137 = arith.constant 0 : index
    %344 = vector.load %arg10[%c0_136, %c0_137] : memref<64x512xf32, #tpu.memory_space<vmem>>, vector<64x512xf32>
    tpu.vector_store %arg10[%c0_136, %c0_137], %343 {strides = array<i32>} : memref<64x512xf32, #tpu.memory_space<vmem>>, vector<64x512xf32>,
    %cst_138 = arith.constant 0.000000e+00 : f32
    %345 = vector.broadcast %cst_138 : f32 to vector<8x128xf32>
    %cst_139 = arith.constant 0.000000e+00 : f32
    %346 = vector.broadcast %cst_139 : f32 to vector<8x128xf32>
    %c0_i32_140 = arith.constant 0 : i32
    %c8_i32_141 = arith.constant 8 : i32
    %347 = arith.muli %c0_i32_140, %c8_i32_141 : i32
    %348 = tpu.assume_multiple %347, 8 : i32
    %349 = arith.index_cast %348 : i32 to index
    %c0_142 = arith.constant 0 : index
    %350 = vector.load %arg10[%349, %c0_142] : memref<64x512xf32, #tpu.memory_space<vmem>>, vector<8x512xf32>
    %351 = arith.truncf %345 : vector<8x128xf32> to vector<8x128xbf16>
    %c0_143 = arith.constant 0 : index
    %c0_144 = arith.constant 0 : index
    %352 = vector.load %arg5[%c0_143, %c0_144] : memref<128x512xbf16, #tpu.memory_space<vmem>>, vector<128x512xbf16>
    %cst_145 = arith.constant dense<0.000000e+00> : vector<8x512xf32>
    %353 = tpu.matmul %351, %352, %cst_145 {dimension_numbers = #tpu.dot_dimension_numbers<[1], [0], [0], [1], [0, 0, 1, 1], [], []>} : vector<8x128xbf16>, vector<128x512xbf16>, vector<8x512xf32> -> vector<8x512xf32>
    %354 = arith.addf %350, %353 : vector<8x512xf32>
    %355 = vector.extract_strided_slice %354 {offsets = [0, 0], sizes = [8, 128], strides = [1, 1]} : vector<8x512xf32> to vector<8x128xf32>
    %cst_146 = arith.constant 5.000000e-01 : f32
    %356 = vector.broadcast %cst_146 : f32 to vector<8x128xf32>
    %357 = arith.mulf %356, %355 : vector<8x128xf32>
    %358 = math.tanh %357 : vector<8x128xf32>
    %cst_147 = arith.constant 5.000000e-01 : f32
    %359 = vector.broadcast %cst_147 : f32 to vector<8x128xf32>
    %360 = arith.mulf %359, %358 : vector<8x128xf32>
    %cst_148 = arith.constant 5.000000e-01 : f32
    %361 = vector.broadcast %cst_148 : f32 to vector<8x128xf32>
    %362 = arith.addf %360, %361 : vector<8x128xf32>
    %363 = vector.extract_strided_slice %354 {offsets = [0, 128], sizes = [8, 128], strides = [1, 1]} : vector<8x512xf32> to vector<8x128xf32>
    %cst_149 = arith.constant 5.000000e-01 : f32
    %364 = vector.broadcast %cst_149 : f32 to vector<8x128xf32>
    %365 = arith.mulf %364, %363 : vector<8x128xf32>
    %366 = math.tanh %365 : vector<8x128xf32>
    %cst_150 = arith.constant 5.000000e-01 : f32
    %367 = vector.broadcast %cst_150 : f32 to vector<8x128xf32>
    %368 = arith.mulf %367, %366 : vector<8x128xf32>
    %cst_151 = arith.constant 5.000000e-01 : f32
    %369 = vector.broadcast %cst_151 : f32 to vector<8x128xf32>
    %370 = arith.addf %368, %369 : vector<8x128xf32>
    %371 = vector.extract_strided_slice %354 {offsets = [0, 256], sizes = [8, 128], strides = [1, 1]} : vector<8x512xf32> to vector<8x128xf32>
    %372 = math.tanh %371 : vector<8x128xf32>
    %373 = vector.extract_strided_slice %354 {offsets = [0, 384], sizes = [8, 128], strides = [1, 1]} : vector<8x512xf32> to vector<8x128xf32>
    %cst_152 = arith.constant 5.000000e-01 : f32
    %374 = vector.broadcast %cst_152 : f32 to vector<8x128xf32>
    %375 = arith.mulf %374, %373 : vector<8x128xf32>
    %376 = math.tanh %375 : vector<8x128xf32>
    %cst_153 = arith.constant 5.000000e-01 : f32
    %377 = vector.broadcast %cst_153 : f32 to vector<8x128xf32>
    %378 = arith.mulf %377, %376 : vector<8x128xf32>
    %cst_154 = arith.constant 5.000000e-01 : f32
    %379 = vector.broadcast %cst_154 : f32 to vector<8x128xf32>
    %380 = arith.addf %378, %379 : vector<8x128xf32>
    %381 = arith.mulf %370, %346 : vector<8x128xf32>
    %382 = arith.mulf %362, %372 : vector<8x128xf32>
    %383 = arith.addf %381, %382 : vector<8x128xf32>
    %384 = math.tanh %383 : vector<8x128xf32>
    %385 = arith.mulf %380, %384 : vector<8x128xf32>
    %c1_i32_155 = arith.constant 1 : i32
    %c8_i32_156 = arith.constant 8 : i32
    %386 = arith.muli %c1_i32_155, %c8_i32_156 : i32
    %387 = tpu.assume_multiple %386, 8 : i32
    %388 = arith.index_cast %387 : i32 to index
    %c0_157 = arith.constant 0 : index
    %389 = vector.load %arg10[%388, %c0_157] : memref<64x512xf32, #tpu.memory_space<vmem>>, vector<8x512xf32>
    %390 = arith.truncf %385 : vector<8x128xf32> to vector<8x128xbf16>
    %c0_158 = arith.constant 0 : index
    %c0_159 = arith.constant 0 : index
    %391 = vector.load %arg5[%c0_158, %c0_159] : memref<128x512xbf16, #tpu.memory_space<vmem>>, vector<128x512xbf16>
    %cst_160 = arith.constant dense<0.000000e+00> : vector<8x512xf32>
    %392 = tpu.matmul %390, %391, %cst_160 {dimension_numbers = #tpu.dot_dimension_numbers<[1], [0], [0], [1], [0, 0, 1, 1], [], []>} : vector<8x128xbf16>, vector<128x512xbf16>, vector<8x512xf32> -> vector<8x512xf32>
    %393 = arith.addf %389, %392 : vector<8x512xf32>
    %394 = vector.extract_strided_slice %393 {offsets = [0, 0], sizes = [8, 128], strides = [1, 1]} : vector<8x512xf32> to vector<8x128xf32>
    %cst_161 = arith.constant 5.000000e-01 : f32
    %395 = vector.broadcast %cst_161 : f32 to vector<8x128xf32>
    %396 = arith.mulf %395, %394 : vector<8x128xf32>
    %397 = math.tanh %396 : vector<8x128xf32>
    %cst_162 = arith.constant 5.000000e-01 : f32
    %398 = vector.broadcast %cst_162 : f32 to vector<8x128xf32>
    %399 = arith.mulf %398, %397 : vector<8x128xf32>
    %cst_163 = arith.constant 5.000000e-01 : f32
    %400 = vector.broadcast %cst_163 : f32 to vector<8x128xf32>
    %401 = arith.addf %399, %400 : vector<8x128xf32>
    %402 = vector.extract_strided_slice %393 {offsets = [0, 128], sizes = [8, 128], strides = [1, 1]} : vector<8x512xf32> to vector<8x128xf32>
    %cst_164 = arith.constant 5.000000e-01 : f32
    %403 = vector.broadcast %cst_164 : f32 to vector<8x128xf32>
    %404 = arith.mulf %403, %402 : vector<8x128xf32>
    %405 = math.tanh %404 : vector<8x128xf32>
    %cst_165 = arith.constant 5.000000e-01 : f32
    %406 = vector.broadcast %cst_165 : f32 to vector<8x128xf32>
    %407 = arith.mulf %406, %405 : vector<8x128xf32>
    %cst_166 = arith.constant 5.000000e-01 : f32
    %408 = vector.broadcast %cst_166 : f32 to vector<8x128xf32>
    %409 = arith.addf %407, %408 : vector<8x128xf32>
    %410 = vector.extract_strided_slice %393 {offsets = [0, 256], sizes = [8, 128], strides = [1, 1]} : vector<8x512xf32> to vector<8x128xf32>
    %411 = math.tanh %410 : vector<8x128xf32>
    %412 = vector.extract_strided_slice %393 {offsets = [0, 384], sizes = [8, 128], strides = [1, 1]} : vector<8x512xf32> to vector<8x128xf32>
    %cst_167 = arith.constant 5.000000e-01 : f32
    %413 = vector.broadcast %cst_167 : f32 to vector<8x128xf32>
    %414 = arith.mulf %413, %412 : vector<8x128xf32>
    %415 = math.tanh %414 : vector<8x128xf32>
    %cst_168 = arith.constant 5.000000e-01 : f32
    %416 = vector.broadcast %cst_168 : f32 to vector<8x128xf32>
    %417 = arith.mulf %416, %415 : vector<8x128xf32>
    %cst_169 = arith.constant 5.000000e-01 : f32
    %418 = vector.broadcast %cst_169 : f32 to vector<8x128xf32>
    %419 = arith.addf %417, %418 : vector<8x128xf32>
    %420 = arith.mulf %409, %383 : vector<8x128xf32>
    %421 = arith.mulf %401, %411 : vector<8x128xf32>
    %422 = arith.addf %420, %421 : vector<8x128xf32>
    %423 = math.tanh %422 : vector<8x128xf32>
    %424 = arith.mulf %419, %423 : vector<8x128xf32>
    %c2_i32_170 = arith.constant 2 : i32
    %c8_i32_171 = arith.constant 8 : i32
    %425 = arith.muli %c2_i32_170, %c8_i32_171 : i32
    %426 = tpu.assume_multiple %425, 8 : i32
    %427 = arith.index_cast %426 : i32 to index
    %c0_172 = arith.constant 0 : index
    %428 = vector.load %arg10[%427, %c0_172] : memref<64x512xf32, #tpu.memory_space<vmem>>, vector<8x512xf32>
    %429 = arith.truncf %424 : vector<8x128xf32> to vector<8x128xbf16>
    %c0_173 = arith.constant 0 : index
    %c0_174 = arith.constant 0 : index
    %430 = vector.load %arg5[%c0_173, %c0_174] : memref<128x512xbf16, #tpu.memory_space<vmem>>, vector<128x512xbf16>
    %cst_175 = arith.constant dense<0.000000e+00> : vector<8x512xf32>
    %431 = tpu.matmul %429, %430, %cst_175 {dimension_numbers = #tpu.dot_dimension_numbers<[1], [0], [0], [1], [0, 0, 1, 1], [], []>} : vector<8x128xbf16>, vector<128x512xbf16>, vector<8x512xf32> -> vector<8x512xf32>
    %432 = arith.addf %428, %431 : vector<8x512xf32>
    %433 = vector.extract_strided_slice %432 {offsets = [0, 0], sizes = [8, 128], strides = [1, 1]} : vector<8x512xf32> to vector<8x128xf32>
    %cst_176 = arith.constant 5.000000e-01 : f32
    %434 = vector.broadcast %cst_176 : f32 to vector<8x128xf32>
    %435 = arith.mulf %434, %433 : vector<8x128xf32>
    %436 = math.tanh %435 : vector<8x128xf32>
    %cst_177 = arith.constant 5.000000e-01 : f32
    %437 = vector.broadcast %cst_177 : f32 to vector<8x128xf32>
    %438 = arith.mulf %437, %436 : vector<8x128xf32>
    %cst_178 = arith.constant 5.000000e-01 : f32
    %439 = vector.broadcast %cst_178 : f32 to vector<8x128xf32>
    %440 = arith.addf %438, %439 : vector<8x128xf32>
    %441 = vector.extract_strided_slice %432 {offsets = [0, 128], sizes = [8, 128], strides = [1, 1]} : vector<8x512xf32> to vector<8x128xf32>
    %cst_179 = arith.constant 5.000000e-01 : f32
    %442 = vector.broadcast %cst_179 : f32 to vector<8x128xf32>
    %443 = arith.mulf %442, %441 : vector<8x128xf32>
    %444 = math.tanh %443 : vector<8x128xf32>
    %cst_180 = arith.constant 5.000000e-01 : f32
    %445 = vector.broadcast %cst_180 : f32 to vector<8x128xf32>
    %446 = arith.mulf %445, %444 : vector<8x128xf32>
    %cst_181 = arith.constant 5.000000e-01 : f32
    %447 = vector.broadcast %cst_181 : f32 to vector<8x128xf32>
    %448 = arith.addf %446, %447 : vector<8x128xf32>
    %449 = vector.extract_strided_slice %432 {offsets = [0, 256], sizes = [8, 128], strides = [1, 1]} : vector<8x512xf32> to vector<8x128xf32>
    %450 = math.tanh %449 : vector<8x128xf32>
    %451 = vector.extract_strided_slice %432 {offsets = [0, 384], sizes = [8, 128], strides = [1, 1]} : vector<8x512xf32> to vector<8x128xf32>
    %cst_182 = arith.constant 5.000000e-01 : f32
    %452 = vector.broadcast %cst_182 : f32 to vector<8x128xf32>
    %453 = arith.mulf %452, %451 : vector<8x128xf32>
    %454 = math.tanh %453 : vector<8x128xf32>
    %cst_183 = arith.constant 5.000000e-01 : f32
    %455 = vector.broadcast %cst_183 : f32 to vector<8x128xf32>
    %456 = arith.mulf %455, %454 : vector<8x128xf32>
    %cst_184 = arith.constant 5.000000e-01 : f32
    %457 = vector.broadcast %cst_184 : f32 to vector<8x128xf32>
    %458 = arith.addf %456, %457 : vector<8x128xf32>
    %459 = arith.mulf %448, %422 : vector<8x128xf32>
    %460 = arith.mulf %440, %450 : vector<8x128xf32>
    %461 = arith.addf %459, %460 : vector<8x128xf32>
    %462 = math.tanh %461 : vector<8x128xf32>
    %463 = arith.mulf %458, %462 : vector<8x128xf32>
    %c3_i32_185 = arith.constant 3 : i32
    %c8_i32_186 = arith.constant 8 : i32
    %464 = arith.muli %c3_i32_185, %c8_i32_186 : i32
    %465 = tpu.assume_multiple %464, 8 : i32
    %466 = arith.index_cast %465 : i32 to index
    %c0_187 = arith.constant 0 : index
    %467 = vector.load %arg10[%466, %c0_187] : memref<64x512xf32, #tpu.memory_space<vmem>>, vector<8x512xf32>
    %468 = arith.truncf %463 : vector<8x128xf32> to vector<8x128xbf16>
    %c0_188 = arith.constant 0 : index
    %c0_189 = arith.constant 0 : index
    %469 = vector.load %arg5[%c0_188, %c0_189] : memref<128x512xbf16, #tpu.memory_space<vmem>>, vector<128x512xbf16>
    %cst_190 = arith.constant dense<0.000000e+00> : vector<8x512xf32>
    %470 = tpu.matmul %468, %469, %cst_190 {dimension_numbers = #tpu.dot_dimension_numbers<[1], [0], [0], [1], [0, 0, 1, 1], [], []>} : vector<8x128xbf16>, vector<128x512xbf16>, vector<8x512xf32> -> vector<8x512xf32>
    %471 = arith.addf %467, %470 : vector<8x512xf32>
    %472 = vector.extract_strided_slice %471 {offsets = [0, 0], sizes = [8, 128], strides = [1, 1]} : vector<8x512xf32> to vector<8x128xf32>
    %cst_191 = arith.constant 5.000000e-01 : f32
    %473 = vector.broadcast %cst_191 : f32 to vector<8x128xf32>
    %474 = arith.mulf %473, %472 : vector<8x128xf32>
    %475 = math.tanh %474 : vector<8x128xf32>
    %cst_192 = arith.constant 5.000000e-01 : f32
    %476 = vector.broadcast %cst_192 : f32 to vector<8x128xf32>
    %477 = arith.mulf %476, %475 : vector<8x128xf32>
    %cst_193 = arith.constant 5.000000e-01 : f32
    %478 = vector.broadcast %cst_193 : f32 to vector<8x128xf32>
    %479 = arith.addf %477, %478 : vector<8x128xf32>
    %480 = vector.extract_strided_slice %471 {offsets = [0, 128], sizes = [8, 128], strides = [1, 1]} : vector<8x512xf32> to vector<8x128xf32>
    %cst_194 = arith.constant 5.000000e-01 : f32
    %481 = vector.broadcast %cst_194 : f32 to vector<8x128xf32>
    %482 = arith.mulf %481, %480 : vector<8x128xf32>
    %483 = math.tanh %482 : vector<8x128xf32>
    %cst_195 = arith.constant 5.000000e-01 : f32
    %484 = vector.broadcast %cst_195 : f32 to vector<8x128xf32>
    %485 = arith.mulf %484, %483 : vector<8x128xf32>
    %cst_196 = arith.constant 5.000000e-01 : f32
    %486 = vector.broadcast %cst_196 : f32 to vector<8x128xf32>
    %487 = arith.addf %485, %486 : vector<8x128xf32>
    %488 = vector.extract_strided_slice %471 {offsets = [0, 256], sizes = [8, 128], strides = [1, 1]} : vector<8x512xf32> to vector<8x128xf32>
    %489 = math.tanh %488 : vector<8x128xf32>
    %490 = vector.extract_strided_slice %471 {offsets = [0, 384], sizes = [8, 128], strides = [1, 1]} : vector<8x512xf32> to vector<8x128xf32>
    %cst_197 = arith.constant 5.000000e-01 : f32
    %491 = vector.broadcast %cst_197 : f32 to vector<8x128xf32>
    %492 = arith.mulf %491, %490 : vector<8x128xf32>
    %493 = math.tanh %492 : vector<8x128xf32>
    %cst_198 = arith.constant 5.000000e-01 : f32
    %494 = vector.broadcast %cst_198 : f32 to vector<8x128xf32>
    %495 = arith.mulf %494, %493 : vector<8x128xf32>
    %cst_199 = arith.constant 5.000000e-01 : f32
    %496 = vector.broadcast %cst_199 : f32 to vector<8x128xf32>
    %497 = arith.addf %495, %496 : vector<8x128xf32>
    %498 = arith.mulf %487, %461 : vector<8x128xf32>
    %499 = arith.mulf %479, %489 : vector<8x128xf32>
    %500 = arith.addf %498, %499 : vector<8x128xf32>
    %501 = math.tanh %500 : vector<8x128xf32>
    %502 = arith.mulf %497, %501 : vector<8x128xf32>
    %c4_i32_200 = arith.constant 4 : i32
    %c8_i32_201 = arith.constant 8 : i32
    %503 = arith.muli %c4_i32_200, %c8_i32_201 : i32
    %504 = tpu.assume_multiple %503, 8 : i32
    %505 = arith.index_cast %504 : i32 to index
    %c0_202 = arith.constant 0 : index
    %506 = vector.load %arg10[%505, %c0_202] : memref<64x512xf32, #tpu.memory_space<vmem>>, vector<8x512xf32>
    %507 = arith.truncf %502 : vector<8x128xf32> to vector<8x128xbf16>
    %c0_203 = arith.constant 0 : index
    %c0_204 = arith.constant 0 : index
    %508 = vector.load %arg5[%c0_203, %c0_204] : memref<128x512xbf16, #tpu.memory_space<vmem>>, vector<128x512xbf16>
    %cst_205 = arith.constant dense<0.000000e+00> : vector<8x512xf32>
    %509 = tpu.matmul %507, %508, %cst_205 {dimension_numbers = #tpu.dot_dimension_numbers<[1], [0], [0], [1], [0, 0, 1, 1], [], []>} : vector<8x128xbf16>, vector<128x512xbf16>, vector<8x512xf32> -> vector<8x512xf32>
    %510 = arith.addf %506, %509 : vector<8x512xf32>
    %511 = vector.extract_strided_slice %510 {offsets = [0, 0], sizes = [8, 128], strides = [1, 1]} : vector<8x512xf32> to vector<8x128xf32>
    %cst_206 = arith.constant 5.000000e-01 : f32
    %512 = vector.broadcast %cst_206 : f32 to vector<8x128xf32>
    %513 = arith.mulf %512, %511 : vector<8x128xf32>
    %514 = math.tanh %513 : vector<8x128xf32>
    %cst_207 = arith.constant 5.000000e-01 : f32
    %515 = vector.broadcast %cst_207 : f32 to vector<8x128xf32>
    %516 = arith.mulf %515, %514 : vector<8x128xf32>
    %cst_208 = arith.constant 5.000000e-01 : f32
    %517 = vector.broadcast %cst_208 : f32 to vector<8x128xf32>
    %518 = arith.addf %516, %517 : vector<8x128xf32>
    %519 = vector.extract_strided_slice %510 {offsets = [0, 128], sizes = [8, 128], strides = [1, 1]} : vector<8x512xf32> to vector<8x128xf32>
    %cst_209 = arith.constant 5.000000e-01 : f32
    %520 = vector.broadcast %cst_209 : f32 to vector<8x128xf32>
    %521 = arith.mulf %520, %519 : vector<8x128xf32>
    %522 = math.tanh %521 : vector<8x128xf32>
    %cst_210 = arith.constant 5.000000e-01 : f32
    %523 = vector.broadcast %cst_210 : f32 to vector<8x128xf32>
    %524 = arith.mulf %523, %522 : vector<8x128xf32>
    %cst_211 = arith.constant 5.000000e-01 : f32
    %525 = vector.broadcast %cst_211 : f32 to vector<8x128xf32>
    %526 = arith.addf %524, %525 : vector<8x128xf32>
    %527 = vector.extract_strided_slice %510 {offsets = [0, 256], sizes = [8, 128], strides = [1, 1]} : vector<8x512xf32> to vector<8x128xf32>
    %528 = math.tanh %527 : vector<8x128xf32>
    %529 = vector.extract_strided_slice %510 {offsets = [0, 384], sizes = [8, 128], strides = [1, 1]} : vector<8x512xf32> to vector<8x128xf32>
    %cst_212 = arith.constant 5.000000e-01 : f32
    %530 = vector.broadcast %cst_212 : f32 to vector<8x128xf32>
    %531 = arith.mulf %530, %529 : vector<8x128xf32>
    %532 = math.tanh %531 : vector<8x128xf32>
    %cst_213 = arith.constant 5.000000e-01 : f32
    %533 = vector.broadcast %cst_213 : f32 to vector<8x128xf32>
    %534 = arith.mulf %533, %532 : vector<8x128xf32>
    %cst_214 = arith.constant 5.000000e-01 : f32
    %535 = vector.broadcast %cst_214 : f32 to vector<8x128xf32>
    %536 = arith.addf %534, %535 : vector<8x128xf32>
    %537 = arith.mulf %526, %500 : vector<8x128xf32>
    %538 = arith.mulf %518, %528 : vector<8x128xf32>
    %539 = arith.addf %537, %538 : vector<8x128xf32>
    %540 = math.tanh %539 : vector<8x128xf32>
    %541 = arith.mulf %536, %540 : vector<8x128xf32>
    %c5_i32_215 = arith.constant 5 : i32
    %c8_i32_216 = arith.constant 8 : i32
    %542 = arith.muli %c5_i32_215, %c8_i32_216 : i32
    %543 = tpu.assume_multiple %542, 8 : i32
    %544 = arith.index_cast %543 : i32 to index
    %c0_217 = arith.constant 0 : index
    %545 = vector.load %arg10[%544, %c0_217] : memref<64x512xf32, #tpu.memory_space<vmem>>, vector<8x512xf32>
    %546 = arith.truncf %541 : vector<8x128xf32> to vector<8x128xbf16>
    %c0_218 = arith.constant 0 : index
    %c0_219 = arith.constant 0 : index
    %547 = vector.load %arg5[%c0_218, %c0_219] : memref<128x512xbf16, #tpu.memory_space<vmem>>, vector<128x512xbf16>
    %cst_220 = arith.constant dense<0.000000e+00> : vector<8x512xf32>
    %548 = tpu.matmul %546, %547, %cst_220 {dimension_numbers = #tpu.dot_dimension_numbers<[1], [0], [0], [1], [0, 0, 1, 1], [], []>} : vector<8x128xbf16>, vector<128x512xbf16>, vector<8x512xf32> -> vector<8x512xf32>
    %549 = arith.addf %545, %548 : vector<8x512xf32>
    %550 = vector.extract_strided_slice %549 {offsets = [0, 0], sizes = [8, 128], strides = [1, 1]} : vector<8x512xf32> to vector<8x128xf32>
    %cst_221 = arith.constant 5.000000e-01 : f32
    %551 = vector.broadcast %cst_221 : f32 to vector<8x128xf32>
    %552 = arith.mulf %551, %550 : vector<8x128xf32>
    %553 = math.tanh %552 : vector<8x128xf32>
    %cst_222 = arith.constant 5.000000e-01 : f32
    %554 = vector.broadcast %cst_222 : f32 to vector<8x128xf32>
    %555 = arith.mulf %554, %553 : vector<8x128xf32>
    %cst_223 = arith.constant 5.000000e-01 : f32
    %556 = vector.broadcast %cst_223 : f32 to vector<8x128xf32>
    %557 = arith.addf %555, %556 : vector<8x128xf32>
    %558 = vector.extract_strided_slice %549 {offsets = [0, 128], sizes = [8, 128], strides = [1, 1]} : vector<8x512xf32> to vector<8x128xf32>
    %cst_224 = arith.constant 5.000000e-01 : f32
    %559 = vector.broadcast %cst_224 : f32 to vector<8x128xf32>
    %560 = arith.mulf %559, %558 : vector<8x128xf32>
    %561 = math.tanh %560 : vector<8x128xf32>
    %cst_225 = arith.constant 5.000000e-01 : f32
    %562 = vector.broadcast %cst_225 : f32 to vector<8x128xf32>
    %563 = arith.mulf %562, %561 : vector<8x128xf32>
    %cst_226 = arith.constant 5.000000e-01 : f32
    %564 = vector.broadcast %cst_226 : f32 to vector<8x128xf32>
    %565 = arith.addf %563, %564 : vector<8x128xf32>
    %566 = vector.extract_strided_slice %549 {offsets = [0, 256], sizes = [8, 128], strides = [1, 1]} : vector<8x512xf32> to vector<8x128xf32>
    %567 = math.tanh %566 : vector<8x128xf32>
    %568 = vector.extract_strided_slice %549 {offsets = [0, 384], sizes = [8, 128], strides = [1, 1]} : vector<8x512xf32> to vector<8x128xf32>
    %cst_227 = arith.constant 5.000000e-01 : f32
    %569 = vector.broadcast %cst_227 : f32 to vector<8x128xf32>
    %570 = arith.mulf %569, %568 : vector<8x128xf32>
    %571 = math.tanh %570 : vector<8x128xf32>
    %cst_228 = arith.constant 5.000000e-01 : f32
    %572 = vector.broadcast %cst_228 : f32 to vector<8x128xf32>
    %573 = arith.mulf %572, %571 : vector<8x128xf32>
    %cst_229 = arith.constant 5.000000e-01 : f32
    %574 = vector.broadcast %cst_229 : f32 to vector<8x128xf32>
    %575 = arith.addf %573, %574 : vector<8x128xf32>
    %576 = arith.mulf %565, %539 : vector<8x128xf32>
    %577 = arith.mulf %557, %567 : vector<8x128xf32>
    %578 = arith.addf %576, %577 : vector<8x128xf32>
    %579 = math.tanh %578 : vector<8x128xf32>
    %580 = arith.mulf %575, %579 : vector<8x128xf32>
    %c6_i32_230 = arith.constant 6 : i32
    %c8_i32_231 = arith.constant 8 : i32
    %581 = arith.muli %c6_i32_230, %c8_i32_231 : i32
    %582 = tpu.assume_multiple %581, 8 : i32
    %583 = arith.index_cast %582 : i32 to index
    %c0_232 = arith.constant 0 : index
    %584 = vector.load %arg10[%583, %c0_232] : memref<64x512xf32, #tpu.memory_space<vmem>>, vector<8x512xf32>
    %585 = arith.truncf %580 : vector<8x128xf32> to vector<8x128xbf16>
    %c0_233 = arith.constant 0 : index
    %c0_234 = arith.constant 0 : index
    %586 = vector.load %arg5[%c0_233, %c0_234] : memref<128x512xbf16, #tpu.memory_space<vmem>>, vector<128x512xbf16>
    %cst_235 = arith.constant dense<0.000000e+00> : vector<8x512xf32>
    %587 = tpu.matmul %585, %586, %cst_235 {dimension_numbers = #tpu.dot_dimension_numbers<[1], [0], [0], [1], [0, 0, 1, 1], [], []>} : vector<8x128xbf16>, vector<128x512xbf16>, vector<8x512xf32> -> vector<8x512xf32>
    %588 = arith.addf %584, %587 : vector<8x512xf32>
    %589 = vector.extract_strided_slice %588 {offsets = [0, 0], sizes = [8, 128], strides = [1, 1]} : vector<8x512xf32> to vector<8x128xf32>
    %cst_236 = arith.constant 5.000000e-01 : f32
    %590 = vector.broadcast %cst_236 : f32 to vector<8x128xf32>
    %591 = arith.mulf %590, %589 : vector<8x128xf32>
    %592 = math.tanh %591 : vector<8x128xf32>
    %cst_237 = arith.constant 5.000000e-01 : f32
    %593 = vector.broadcast %cst_237 : f32 to vector<8x128xf32>
    %594 = arith.mulf %593, %592 : vector<8x128xf32>
    %cst_238 = arith.constant 5.000000e-01 : f32
    %595 = vector.broadcast %cst_238 : f32 to vector<8x128xf32>
    %596 = arith.addf %594, %595 : vector<8x128xf32>
    %597 = vector.extract_strided_slice %588 {offsets = [0, 128], sizes = [8, 128], strides = [1, 1]} : vector<8x512xf32> to vector<8x128xf32>
    %cst_239 = arith.constant 5.000000e-01 : f32
    %598 = vector.broadcast %cst_239 : f32 to vector<8x128xf32>
    %599 = arith.mulf %598, %597 : vector<8x128xf32>
    %600 = math.tanh %599 : vector<8x128xf32>
    %cst_240 = arith.constant 5.000000e-01 : f32
    %601 = vector.broadcast %cst_240 : f32 to vector<8x128xf32>
    %602 = arith.mulf %601, %600 : vector<8x128xf32>
    %cst_241 = arith.constant 5.000000e-01 : f32
    %603 = vector.broadcast %cst_241 : f32 to vector<8x128xf32>
    %604 = arith.addf %602, %603 : vector<8x128xf32>
    %605 = vector.extract_strided_slice %588 {offsets = [0, 256], sizes = [8, 128], strides = [1, 1]} : vector<8x512xf32> to vector<8x128xf32>
    %606 = math.tanh %605 : vector<8x128xf32>
    %607 = vector.extract_strided_slice %588 {offsets = [0, 384], sizes = [8, 128], strides = [1, 1]} : vector<8x512xf32> to vector<8x128xf32>
    %cst_242 = arith.constant 5.000000e-01 : f32
    %608 = vector.broadcast %cst_242 : f32 to vector<8x128xf32>
    %609 = arith.mulf %608, %607 : vector<8x128xf32>
    %610 = math.tanh %609 : vector<8x128xf32>
    %cst_243 = arith.constant 5.000000e-01 : f32
    %611 = vector.broadcast %cst_243 : f32 to vector<8x128xf32>
    %612 = arith.mulf %611, %610 : vector<8x128xf32>
    %cst_244 = arith.constant 5.000000e-01 : f32
    %613 = vector.broadcast %cst_244 : f32 to vector<8x128xf32>
    %614 = arith.addf %612, %613 : vector<8x128xf32>
    %615 = arith.mulf %604, %578 : vector<8x128xf32>
    %616 = arith.mulf %596, %606 : vector<8x128xf32>
    %617 = arith.addf %615, %616 : vector<8x128xf32>
    %618 = math.tanh %617 : vector<8x128xf32>
    %619 = arith.mulf %614, %618 : vector<8x128xf32>
    %c7_i32_245 = arith.constant 7 : i32
    %c8_i32_246 = arith.constant 8 : i32
    %620 = arith.muli %c7_i32_245, %c8_i32_246 : i32
    %621 = tpu.assume_multiple %620, 8 : i32
    %622 = arith.index_cast %621 : i32 to index
    %c0_247 = arith.constant 0 : index
    %623 = vector.load %arg10[%622, %c0_247] : memref<64x512xf32, #tpu.memory_space<vmem>>, vector<8x512xf32>
    %624 = arith.truncf %619 : vector<8x128xf32> to vector<8x128xbf16>
    %c0_248 = arith.constant 0 : index
    %c0_249 = arith.constant 0 : index
    %625 = vector.load %arg5[%c0_248, %c0_249] : memref<128x512xbf16, #tpu.memory_space<vmem>>, vector<128x512xbf16>
    %cst_250 = arith.constant dense<0.000000e+00> : vector<8x512xf32>
    %626 = tpu.matmul %624, %625, %cst_250 {dimension_numbers = #tpu.dot_dimension_numbers<[1], [0], [0], [1], [0, 0, 1, 1], [], []>} : vector<8x128xbf16>, vector<128x512xbf16>, vector<8x512xf32> -> vector<8x512xf32>
    %627 = arith.addf %623, %626 : vector<8x512xf32>
    %628 = vector.extract_strided_slice %627 {offsets = [0, 0], sizes = [8, 128], strides = [1, 1]} : vector<8x512xf32> to vector<8x128xf32>
    %cst_251 = arith.constant 5.000000e-01 : f32
    %629 = vector.broadcast %cst_251 : f32 to vector<8x128xf32>
    %630 = arith.mulf %629, %628 : vector<8x128xf32>
    %631 = math.tanh %630 : vector<8x128xf32>
    %cst_252 = arith.constant 5.000000e-01 : f32
    %632 = vector.broadcast %cst_252 : f32 to vector<8x128xf32>
    %633 = arith.mulf %632, %631 : vector<8x128xf32>
    %cst_253 = arith.constant 5.000000e-01 : f32
    %634 = vector.broadcast %cst_253 : f32 to vector<8x128xf32>
    %635 = arith.addf %633, %634 : vector<8x128xf32>
    %636 = vector.extract_strided_slice %627 {offsets = [0, 128], sizes = [8, 128], strides = [1, 1]} : vector<8x512xf32> to vector<8x128xf32>
    %cst_254 = arith.constant 5.000000e-01 : f32
    %637 = vector.broadcast %cst_254 : f32 to vector<8x128xf32>
    %638 = arith.mulf %637, %636 : vector<8x128xf32>
    %639 = math.tanh %638 : vector<8x128xf32>
    %cst_255 = arith.constant 5.000000e-01 : f32
    %640 = vector.broadcast %cst_255 : f32 to vector<8x128xf32>
    %641 = arith.mulf %640, %639 : vector<8x128xf32>
    %cst_256 = arith.constant 5.000000e-01 : f32
    %642 = vector.broadcast %cst_256 : f32 to vector<8x128xf32>
    %643 = arith.addf %641, %642 : vector<8x128xf32>
    %644 = vector.extract_strided_slice %627 {offsets = [0, 256], sizes = [8, 128], strides = [1, 1]} : vector<8x512xf32> to vector<8x128xf32>
    %645 = math.tanh %644 : vector<8x128xf32>
    %646 = vector.extract_strided_slice %627 {offsets = [0, 384], sizes = [8, 128], strides = [1, 1]} : vector<8x512xf32> to vector<8x128xf32>
    %cst_257 = arith.constant 5.000000e-01 : f32
    %647 = vector.broadcast %cst_257 : f32 to vector<8x128xf32>
    %648 = arith.mulf %647, %646 : vector<8x128xf32>
    %649 = math.tanh %648 : vector<8x128xf32>
    %cst_258 = arith.constant 5.000000e-01 : f32
    %650 = vector.broadcast %cst_258 : f32 to vector<8x128xf32>
    %651 = arith.mulf %650, %649 : vector<8x128xf32>
    %cst_259 = arith.constant 5.000000e-01 : f32
    %652 = vector.broadcast %cst_259 : f32 to vector<8x128xf32>
    %653 = arith.addf %651, %652 : vector<8x128xf32>
    %654 = arith.mulf %643, %617 : vector<8x128xf32>
    %655 = arith.mulf %635, %645 : vector<8x128xf32>
    %656 = arith.addf %654, %655 : vector<8x128xf32>
    %657 = math.tanh %656 : vector<8x128xf32>
    %658 = arith.mulf %653, %657 : vector<8x128xf32>
    %c8_i32_260 = arith.constant 8 : i32
    %cst_261 = arith.constant 0.000000e+00 : f32
    %659 = vector.broadcast %cst_261 : f32 to vector<8x128xf32>
    %660 = arith.maximumf %658, %659 : vector<8x128xf32>
    %661 = arith.truncf %660 : vector<8x128xf32> to vector<8x128xbf16>
    %c0_262 = arith.constant 0 : index
    %c0_263 = arith.constant 0 : index
    %662 = vector.load %arg7[%c0_262, %c0_263] : memref<128x128xbf16, #tpu.memory_space<vmem>>, vector<128x128xbf16>
    %cst_264 = arith.constant dense<0.000000e+00> : vector<8x128xf32>
    %663 = tpu.matmul %661, %662, %cst_264 {dimension_numbers = #tpu.dot_dimension_numbers<[1], [0], [0], [1], [0, 0, 1, 1], [], []>} : vector<8x128xbf16>, vector<128x128xbf16>, vector<8x128xf32> -> vector<8x128xf32>
    %c0_265 = arith.constant 0 : index
    %c0_266 = arith.constant 0 : index
    %664 = vector.load %arg8[%c0_265, %c0_266] : memref<1x128xf32, #tpu.memory_space<vmem>>, vector<1x128xf32>
    %665 = vector.broadcast %664 : vector<1x128xf32> to vector<8x128xf32>
    %666 = arith.addf %663, %665 : vector<8x128xf32>
    %c0_267 = arith.constant 0 : index
    %c0_268 = arith.constant 0 : index
    %667 = vector.load %arg9[%c0_267, %c0_268] : memref<8x128xf32, #tpu.memory_space<vmem>>, vector<8x128xf32>
    tpu.vector_store %arg9[%c0_267, %c0_268], %666 {strides = array<i32>} : memref<8x128xf32, #tpu.memory_space<vmem>>, vector<8x128xf32>,
    return
  }
}

</mosaic_0001>

<llo_original>
// kernel: lstm_model_forward.1
$region0: #{lstm_model_forward.1}
  #allocation0 [shape = 'u32[]', space=smem, size = 0x4, offset = 0x4, fixed_abs, tag = 'smem constant byte address 0x4 - core index']
  #allocation1 [shape = 'u32[72,128]{1,0:T(1,128)}', space=vmem, size = 0x9000, scoped, tag = 'internal scratch']
  #allocation2 [shape = 'f32[64,512]{1,0:T(8,128)}', space=vmem, size = 0x20000, scoped, tag = 'scratch operand']
  #allocation3 [shape = 'f32[64,128]{1,0:T(8,128)}', space=vmem, size = 0x8000, scoped, tag = 'scratch operand']
  #allocation4 [shape = 'f32[64,128]{1,0:T(8,128)}', space=vmem, size = 0x8000, scoped, tag = 'scratch operand']
  %s0 = inlined_call_operand.vmem [shape: bf16[64,128], index: 0, kind: input, shape index: {}]
  %s1 = inlined_call_operand.hbm [shape: bf16[128,512], index: 1, kind: input, shape index: {}]
  %s2 = inlined_call_operand.hbm [shape: bf16[128,512], index: 2, kind: input, shape index: {}]
  %s3 = inlined_call_operand.vmem [shape: f32[1,512], index: 3, kind: input, shape index: {}]
  %s4 = inlined_call_operand.hbm [shape: bf16[128,512], index: 4, kind: input, shape index: {}]
  %s5 = inlined_call_operand.hbm [shape: bf16[128,512], index: 5, kind: input, shape index: {}]
  %s6 = inlined_call_operand.vmem [shape: f32[1,512], index: 6, kind: input, shape index: {}]
  %s7 = inlined_call_operand.vmem [shape: bf16[128,128], index: 7, kind: input, shape index: {}]
  %s8 = inlined_call_operand.vmem [shape: f32[1,128], index: 8, kind: input, shape index: {}]
  %s9 = inlined_call_operand.vmem [shape: f32[8,128], index: 9, kind: output, shape index: {}]
  %s10 = sld [smem:[#allocation0]]
  $region62: #{lstm_model_forward.1} parent=0
    _
  %s12 = ssub.s32 1, %s10
  %s13 = scalar_select 0, %s12, %s10
  $region1: #{lstm_model_forward.1} parent=0
    #allocation5 [shape = 'u8[131072]{0}', space=vmem, size = 0x20000, scoped, tag = 'input window, operand 1, single buffered']
    #allocation6 [shape = 's32[1]{0}', space=sflag, size = 0x4, scoped, tag = 'scoped memory for lstm_model_forward.1']
    #allocation7 [shape = 'u8[131072]{0}', space=vmem, size = 0x20000, scoped, tag = 'input window, operand 2, single buffered']
    #allocation8 [shape = 's32[1]{0}', space=sflag, size = 0x4, scoped, tag = 'scoped memory for lstm_model_forward.1']
    #allocation9 [shape = 'u8[131072]{0}', space=vmem, size = 0x20000, scoped, tag = 'input window, operand 4, single buffered']
    #allocation10 [shape = 'u8[131072]{0}', space=vmem, size = 0x20000, scoped, tag = 'input window, operand 5, single buffered']
    #allocation11 [shape = 's32[1]{0}', space=sflag, size = 0x4, scoped, tag = 'scoped memory for lstm_model_forward.1']
    %14 = vsyncpa [#allocation6], 0
    %15 = vsyncpa [#allocation8], 0
    %16 = vsyncpa [#allocation11], 0
    // Predicated region
    $region2: #{lstm_model_forward.1} parent=1 // pred_check
      _
    $region3: #{lstm_model_forward.1} parent=1 // pred_check_branch
      %18 = sbr.rel (0) target = $region5
    $region4: #{lstm_model_forward.1} parent=1 // pred_region
      _
    $region5: #{lstm_model_forward.1} parent=1 // pred_fallthru
      _
    // Predicated region
    $region6: #{lstm_model_forward.1} parent=1 // pred_check
      _
    $region7: #{lstm_model_forward.1} parent=1 // pred_check_branch
      %20 = sbr.rel (0) target = $region9
    $region8: #{lstm_model_forward.1} parent=1 // pred_region
      %22 = vsyncadd [#allocation6], 0
      %s23 = sshll.u32 %s1, 4
      %s24 = int_to_ptr.hbm [resolvable:$true] %s23
      %s25 = sshll.u32 [#allocation5], 4
      %s26 = int_to_ptr.vmem [resolvable:$true] %s25
      %31 = dma.hbm_to_vmem [thread:$0]  %s24, 4096, %s26, [#allocation6], 256, 256, 16
    $region9: #{lstm_model_forward.1} parent=1 // pred_fallthru
      _
    // Predicated region
    $region10: #{lstm_model_forward.1} parent=1 // pred_check
      _
    $region11: #{lstm_model_forward.1} parent=1 // pred_check_branch
      %33 = sbr.rel (0) target = $region13
    $region12: #{lstm_model_forward.1} parent=1 // pred_region
      %35 = vsyncadd [#allocation8], 0
      %s36 = sshll.u32 %s2, 4
      %s37 = int_to_ptr.hbm [resolvable:$true] %s36
      %s38 = sshll.u32 [#allocation7], 4
      %s39 = int_to_ptr.vmem [resolvable:$true] %s38
      %44 = dma.hbm_to_vmem [thread:$0]  %s37, 4096, %s39, [#allocation8], 256, 256, 16
    $region13: #{lstm_model_forward.1} parent=1 // pred_fallthru
      _
    // Predicated region
    $region14: #{lstm_model_forward.1} parent=1 // pred_check
      _
    $region15: #{lstm_model_forward.1} parent=1 // pred_check_branch
      %46 = sbr.rel (0) target = $region17
    $region16: #{lstm_model_forward.1} parent=1 // pred_region
      _
    $region17: #{lstm_model_forward.1} parent=1 // pred_fallthru
      _
    // Predicated region
    $region18: #{lstm_model_forward.1} parent=1 // pred_check
      _
    $region19: #{lstm_model_forward.1} parent=1 // pred_check_branch
      %48 = sbr.rel (0) target = $region21
    $region20: #{lstm_model_forward.1} parent=1 // pred_region
      %50 = vsyncadd [#allocation8], 0
      %s51 = sshll.u32 %s4, 4
      %s52 = int_to_ptr.hbm [resolvable:$true] %s51
      %s53 = sshll.u32 [#allocation9], 4
      %s54 = int_to_ptr.vmem [resolvable:$true] %s53
      %59 = dma.hbm_to_vmem [thread:$0]  %s52, 4096, %s54, [#allocation8], 256, 256, 16
    $region21: #{lstm_model_forward.1} parent=1 // pred_fallthru
      _
    // Predicated region
    $region22: #{lstm_model_forward.1} parent=1 // pred_check
      _
    $region23: #{lstm_model_forward.1} parent=1 // pred_check_branch
      %61 = sbr.rel (0) target = $region25
    $region24: #{lstm_model_forward.1} parent=1 // pred_region
      %63 = vsyncadd [#allocation11], 0
      %s64 = sshll.u32 %s5, 4
      %s65 = int_to_ptr.hbm [resolvable:$true] %s64
      %s66 = sshll.u32 [#allocation10], 4
      %s67 = int_to_ptr.vmem [resolvable:$true] %s66
      %72 = dma.hbm_to_vmem [thread:$0]  %s65, 4096, %s67, [#allocation11], 256, 256, 16
    $region25: #{lstm_model_forward.1} parent=1 // pred_fallthru
      _
    // Predicated region
    $region26: #{lstm_model_forward.1} parent=1 // pred_check
      _
    $region27: #{lstm_model_forward.1} parent=1 // pred_check_branch
      %74 = sbr.rel (0) target = $region29
    $region28: #{lstm_model_forward.1} parent=1 // pred_region
      _
    $region29: #{lstm_model_forward.1} parent=1 // pred_fallthru
      _
    // Predicated region
    $region30: #{lstm_model_forward.1} parent=1 // pred_check
      _
    $region31: #{lstm_model_forward.1} parent=1 // pred_check_branch
      %76 = sbr.rel (0) target = $region33
    $region32: #{lstm_model_forward.1} parent=1 // pred_region
      _
    $region33: #{lstm_model_forward.1} parent=1 // pred_fallthru
      _
    // Predicated region
    $region34: #{lstm_model_forward.1} parent=1 // pred_check
      _
    $region35: #{lstm_model_forward.1} parent=1 // pred_check_branch
      %78 = sbr.rel (0) target = $region37
    $region36: #{lstm_model_forward.1} parent=1 // pred_region
      _
    $region37: #{lstm_model_forward.1} parent=1 // pred_fallthru
      _
    // Predicated region
    $region38: #{lstm_model_forward.1} parent=1 // pred_check
      _
    $region39: #{lstm_model_forward.1} parent=1 // pred_check_branch
      %80 = sbr.rel (0) target = $region41
    $region40: #{lstm_model_forward.1} parent=1 // pred_region
      %82 = dma.done [#allocation6], 4096
    $region41: #{lstm_model_forward.1} parent=1 // pred_fallthru
      _
    // Predicated region
    $region42: #{lstm_model_forward.1} parent=1 // pred_check
      _
    $region43: #{lstm_model_forward.1} parent=1 // pred_check_branch
      %84 = sbr.rel (0) target = $region45
    $region44: #{lstm_model_forward.1} parent=1 // pred_region
      %86 = dma.done [#allocation8], 4096
    $region45: #{lstm_model_forward.1} parent=1 // pred_fallthru
      _
    // Predicated region
    $region46: #{lstm_model_forward.1} parent=1 // pred_check
      _
    $region47: #{lstm_model_forward.1} parent=1 // pred_check_branch
      %88 = sbr.rel (0) target = $region49
    $region48: #{lstm_model_forward.1} parent=1 // pred_region
      %90 = dma.done [#allocation8], 4096
    $region49: #{lstm_model_forward.1} parent=1 // pred_fallthru
      _
    // Predicated region
    $region50: #{lstm_model_forward.1} parent=1 // pred_check
      _
    $region51: #{lstm_model_forward.1} parent=1 // pred_check_branch
      %92 = sbr.rel (0) target = $region53
    $region52: #{lstm_model_forward.1} parent=1 // pred_region
      %94 = dma.done [#allocation11], 4096
    $region53: #{lstm_model_forward.1} parent=1 // pred_fallthru
      _
    %v96 = vld [vmem:[%s0] sm:$0xf]
    %v97 = vld [vmem:[%s0 + $0x4] sm:$0xf]
    %v98 = vld [vmem:[%s0 + $0x8] sm:$0xf]
    %v99 = vld [vmem:[%s0 + $0xc] sm:$0xf]
    %v100 = vld [vmem:[%s0 + $0x10] sm:$0xf]
    %v101 = vld [vmem:[%s0 + $0x14] sm:$0xf]
    %v102 = vld [vmem:[%s0 + $0x18] sm:$0xf]
    %v103 = vld [vmem:[%s0 + $0x1c] sm:$0xf]
    %v104 = vld [vmem:[#allocation5] sm:$0xff]
    %v105 = vld [vmem:[#allocation5 + $0x8] sm:$0xff]
    %v106 = vld [vmem:[#allocation5 + $0x10] sm:$0xff]
    %v107 = vld [vmem:[#allocation5 + $0x18] sm:$0xff]
    %v108 = vld [vmem:[#allocation5 + $0x20] sm:$0xff]
    %v109 = vld [vmem:[#allocation5 + $0x28] sm:$0xff]
    %v110 = vld [vmem:[#allocation5 + $0x30] sm:$0xff]
    %v111 = vld [vmem:[#allocation5 + $0x38] sm:$0xff]
    %v112 = vld [vmem:[#allocation5 + $0x40] sm:$0xff]
    %v113 = vld [vmem:[#allocation5 + $0x48] sm:$0xff]
    %v114 = vld [vmem:[#allocation5 + $0x50] sm:$0xff]
    %v115 = vld [vmem:[#allocation5 + $0x58] sm:$0xff]
    %v116 = vld [vmem:[#allocation5 + $0x60] sm:$0xff]
    %v117 = vld [vmem:[#allocation5 + $0x68] sm:$0xff]
    %v118 = vld [vmem:[#allocation5 + $0x70] sm:$0xff]
    %v119 = vld [vmem:[#allocation5 + $0x78] sm:$0xff]
    %v120 = vld [vmem:[#allocation5 + $0x80] sm:$0xff]
    %v121 = vld [vmem:[#allocation5 + $0x88] sm:$0xff]
    %v122 = vld [vmem:[#allocation5 + $0x90] sm:$0xff]
    %v123 = vld [vmem:[#allocation5 + $0x98] sm:$0xff]
    %v124 = vld [vmem:[#allocation5 + $0xa0] sm:$0xff]
    %v125 = vld [vmem:[#allocation5 + $0xa8] sm:$0xff]
    %v126 = vld [vmem:[#allocation5 + $0xb0] sm:$0xff]
    %v127 = vld [vmem:[#allocation5 + $0xb8] sm:$0xff]
    %v128 = vld [vmem:[#allocation5 + $0xc0] sm:$0xff]
    %v129 = vld [vmem:[#allocation5 + $0xc8] sm:$0xff]
    %v130 = vld [vmem:[#allocation5 + $0xd0] sm:$0xff]
    %v131 = vld [vmem:[#allocation5 + $0xd8] sm:$0xff]
    %v132 = vld [vmem:[#allocation5 + $0xe0] sm:$0xff]
    %v133 = vld [vmem:[#allocation5 + $0xe8] sm:$0xff]
    %v134 = vld [vmem:[#allocation5 + $0xf0] sm:$0xff]
    %v135 = vld [vmem:[#allocation5 + $0xf8] sm:$0xff]
    %v136 = vld [vmem:[%s3] sm:$0xf]
    %v138 = vperm.slane %v136, 0
    %v139 = vperm.slane %v136, 1
    %v140 = vperm.slane %v136, 2
    %v141 = vperm.slane %v136, 3
    %v154 = vunpack.c.l.b16 %v96
    %v155 = vunpack.c.l.b16 %v97
    %v156 = vunpack.c.l.b16 %v98
    %v157 = vunpack.c.l.b16 %v99
    %v158 = vunpack.c.l.b16 %v100
    %v159 = vunpack.c.l.b16 %v101
    %v160 = vunpack.c.l.b16 %v102
    %v161 = vunpack.c.l.b16 %v103
    %v162 = vpack.c.b16 %v155, %v154
    %v163 = vpack.c.b16 %v157, %v156
    %v164 = vpack.c.b16 %v159, %v158
    %v165 = vpack.c.b16 %v161, %v160
    %v202 = vunpack.c.l.b16 %v104
    %v203 = vunpack.c.h.b16 %v104
    %v204 = vunpack.c.l.b16 %v105
    %v205 = vunpack.c.h.b16 %v105
    %v206 = vunpack.c.l.b16 %v106
    %v207 = vunpack.c.h.b16 %v106
    %v208 = vunpack.c.l.b16 %v107
    %v209 = vunpack.c.h.b16 %v107
    %v210 = vunpack.c.l.b16 %v108
    %v211 = vunpack.c.h.b16 %v108
    %v212 = vunpack.c.l.b16 %v109
    %v213 = vunpack.c.h.b16 %v109
    %v214 = vunpack.c.l.b16 %v110
    %v215 = vunpack.c.h.b16 %v110
    %v216 = vunpack.c.l.b16 %v111
    %v217 = vunpack.c.h.b16 %v111
    %v218 = vunpack.c.l.b16 %v112
    %v219 = vunpack.c.h.b16 %v112
    %v220 = vunpack.c.l.b16 %v113
    %v221 = vunpack.c.h.b16 %v113
    %v222 = vunpack.c.l.b16 %v114
    %v223 = vunpack.c.h.b16 %v114
    %v224 = vunpack.c.l.b16 %v115
    %v225 = vunpack.c.h.b16 %v115
    %v226 = vunpack.c.l.b16 %v116
    %v227 = vunpack.c.h.b16 %v116
    %v228 = vunpack.c.l.b16 %v117
    %v229 = vunpack.c.h.b16 %v117
    %v230 = vunpack.c.l.b16 %v118
    %v231 = vunpack.c.h.b16 %v118
    %v232 = vunpack.c.l.b16 %v119
    %v233 = vunpack.c.h.b16 %v119
    %v234 = vunpack.c.l.b16 %v120
    %v235 = vunpack.c.h.b16 %v120
    %v236 = vunpack.c.l.b16 %v121
    %v237 = vunpack.c.h.b16 %v121
    %v238 = vunpack.c.l.b16 %v122
    %v239 = vunpack.c.h.b16 %v122
    %v240 = vunpack.c.l.b16 %v123
    %v241 = vunpack.c.h.b16 %v123
    %v242 = vunpack.c.l.b16 %v124
    %v243 = vunpack.c.h.b16 %v124
    %v244 = vunpack.c.l.b16 %v125
    %v245 = vunpack.c.h.b16 %v125
    %v246 = vunpack.c.l.b16 %v126
    %v247 = vunpack.c.h.b16 %v126
    %v248 = vunpack.c.l.b16 %v127
    %v249 = vunpack.c.h.b16 %v127
    %v250 = vunpack.c.l.b16 %v128
    %v251 = vunpack.c.h.b16 %v128
    %v252 = vunpack.c.l.b16 %v129
    %v253 = vunpack.c.h.b16 %v129
    %v254 = vunpack.c.l.b16 %v130
    %v255 = vunpack.c.h.b16 %v130
    %v256 = vunpack.c.l.b16 %v131
    %v257 = vunpack.c.h.b16 %v131
    %v258 = vunpack.c.l.b16 %v132
    %v259 = vunpack.c.h.b16 %v132
    %v260 = vunpack.c.l.b16 %v133
    %v261 = vunpack.c.h.b16 %v133
    %v262 = vunpack.c.l.b16 %v134
    %v263 = vunpack.c.h.b16 %v134
    %v264 = vunpack.c.l.b16 %v135
    %v265 = vunpack.c.h.b16 %v135
    %v266 = vpack.c.b16 %v206, %v202
    %v267 = vpack.c.b16 %v207, %v203
    %v268 = vpack.c.b16 %v208, %v204
    %v269 = vpack.c.b16 %v209, %v205
    %v270 = vpack.c.b16 %v214, %v210
    %v271 = vpack.c.b16 %v215, %v211
    %v272 = vpack.c.b16 %v216, %v212
    %v273 = vpack.c.b16 %v217, %v213
    %v274 = vpack.c.b16 %v222, %v218
    %v275 = vpack.c.b16 %v223, %v219
    %v276 = vpack.c.b16 %v224, %v220
    %v277 = vpack.c.b16 %v225, %v221
    %v278 = vpack.c.b16 %v230, %v226
    %v279 = vpack.c.b16 %v231, %v227
    %v280 = vpack.c.b16 %v232, %v228
    %v281 = vpack.c.b16 %v233, %v229
    %v282 = vpack.c.b16 %v238, %v234
    %v283 = vpack.c.b16 %v239, %v235
    %v284 = vpack.c.b16 %v240, %v236
    %v285 = vpack.c.b16 %v241, %v237
    %v286 = vpack.c.b16 %v246, %v242
    %v287 = vpack.c.b16 %v247, %v243
    %v288 = vpack.c.b16 %v248, %v244
    %v289 = vpack.c.b16 %v249, %v245
    %v290 = vpack.c.b16 %v254, %v250
    %v291 = vpack.c.b16 %v255, %v251
    %v292 = vpack.c.b16 %v256, %v252
    %v293 = vpack.c.b16 %v257, %v253
    %v294 = vpack.c.b16 %v262, %v258
    %v295 = vpack.c.b16 %v263, %v259
    %v296 = vpack.c.b16 %v264, %v260
    %v297 = vpack.c.b16 %v265, %v261
    %330 = vmatpush.bf16.msra.mxu0 %v294
    %331 = vmatpush.bf16.msra.mxu0 %v290
    %332 = vmatpush.bf16.msra.mxu0 %v286
    %333 = vmatpush.bf16.msra.mxu0 %v282
    %334 = vmatpush.bf16.msra.mxu0 %v278
    %335 = vmatpush.bf16.msra.mxu0 %v274
    %336 = vmatpush.bf16.msra.mxu0 %v270
    %337 = vmatpush.bf16.msra.mxu0 %v266
    %338 = vmatmul.bf16.gmra.mxu0 %v162
    %v339 = vpop.f32.mrf.mxu0
    %v340 = vadd.f32 %v138, %v339
    %v341 = vpop.f32.mrf.mxu0
    %v342 = vadd.f32 %v138, %v341
    %343 = vmatmul.bf16.gmra.mxu0 %v163
    %v344 = vpop.f32.mrf.mxu0
    %v345 = vadd.f32 %v138, %v344
    %v346 = vpop.f32.mrf.mxu0
    %v347 = vadd.f32 %v138, %v346
    %348 = vmatmul.bf16.gmra.mxu0 %v164
    %v349 = vpop.f32.mrf.mxu0
    %v350 = vadd.f32 %v138, %v349
    %v351 = vpop.f32.mrf.mxu0
    %v352 = vadd.f32 %v138, %v351
    %353 = vmatmul.bf16.gmra.mxu0 %v165
    %v354 = vpop.f32.mrf.mxu0
    %v355 = vadd.f32 %v138, %v354
    %v356 = vpop.f32.mrf.mxu0
    %v357 = vadd.f32 %v138, %v356
    %358 = vdwg.mxu0
    %359 = vmatpush.bf16.msra.mxu0 %v295
    %360 = vmatpush.bf16.msra.mxu0 %v291
    %361 = vmatpush.bf16.msra.mxu0 %v287
    %362 = vmatpush.bf16.msra.mxu0 %v283
    %363 = vmatpush.bf16.msra.mxu0 %v279
    %364 = vmatpush.bf16.msra.mxu0 %v275
    %365 = vmatpush.bf16.msra.mxu0 %v271
    %366 = vmatpush.bf16.msra.mxu0 %v267
    %367 = vmatmul.bf16.gmra.mxu0 %v162
    %v368 = vpop.f32.mrf.mxu0
    %v369 = vadd.f32 %v139, %v368
    %v370 = vpop.f32.mrf.mxu0
    %v371 = vadd.f32 %v139, %v370
    %372 = vmatmul.bf16.gmra.mxu0 %v163
    %v373 = vpop.f32.mrf.mxu0
    %v374 = vadd.f32 %v139, %v373
    %v375 = vpop.f32.mrf.mxu0
    %v376 = vadd.f32 %v139, %v375
    %377 = vmatmul.bf16.gmra.mxu0 %v164
    %v378 = vpop.f32.mrf.mxu0
    %v379 = vadd.f32 %v139, %v378
    %v380 = vpop.f32.mrf.mxu0
    %v381 = vadd.f32 %v139, %v380
    %382 = vmatmul.bf16.gmra.mxu0 %v165
    %v383 = vpop.f32.mrf.mxu0
    %v384 = vadd.f32 %v139, %v383
    %v385 = vpop.f32.mrf.mxu0
    %v386 = vadd.f32 %v139, %v385
    %387 = vdwg.mxu0
    %388 = vmatpush.bf16.msra.mxu0 %v296
    %389 = vmatpush.bf16.msra.mxu0 %v292
    %390 = vmatpush.bf16.msra.mxu0 %v288
    %391 = vmatpush.bf16.msra.mxu0 %v284
    %392 = vmatpush.bf16.msra.mxu0 %v280
    %393 = vmatpush.bf16.msra.mxu0 %v276
    %394 = vmatpush.bf16.msra.mxu0 %v272
    %395 = vmatpush.bf16.msra.mxu0 %v268
    %396 = vmatmul.bf16.gmra.mxu0 %v162
    %v397 = vpop.f32.mrf.mxu0
    %v398 = vadd.f32 %v140, %v397
    %v399 = vpop.f32.mrf.mxu0
    %v400 = vadd.f32 %v140, %v399
    %401 = vmatmul.bf16.gmra.mxu0 %v163
    %v402 = vpop.f32.mrf.mxu0
    %v403 = vadd.f32 %v140, %v402
    %v404 = vpop.f32.mrf.mxu0
    %v405 = vadd.f32 %v140, %v404
    %406 = vmatmul.bf16.gmra.mxu0 %v164
    %v407 = vpop.f32.mrf.mxu0
    %v408 = vadd.f32 %v140, %v407
    %v409 = vpop.f32.mrf.mxu0
    %v410 = vadd.f32 %v140, %v409
    %411 = vmatmul.bf16.gmra.mxu0 %v165
    %v412 = vpop.f32.mrf.mxu0
    %v413 = vadd.f32 %v140, %v412
    %v414 = vpop.f32.mrf.mxu0
    %v415 = vadd.f32 %v140, %v414
    %416 = vdwg.mxu0
    %417 = vmatpush.bf16.msra.mxu0 %v297
    %418 = vmatpush.bf16.msra.mxu0 %v293
    %419 = vmatpush.bf16.msra.mxu0 %v289
    %420 = vmatpush.bf16.msra.mxu0 %v285
    %421 = vmatpush.bf16.msra.mxu0 %v281
    %422 = vmatpush.bf16.msra.mxu0 %v277
    %423 = vmatpush.bf16.msra.mxu0 %v273
    %424 = vmatpush.bf16.msra.mxu0 %v269
    %425 = vmatmul.bf16.gmra.mxu0 %v162
    %v426 = vpop.f32.mrf.mxu0
    %v427 = vadd.f32 %v141, %v426
    %v428 = vpop.f32.mrf.mxu0
    %v429 = vadd.f32 %v141, %v428
    %430 = vmatmul.bf16.gmra.mxu0 %v163
    %v431 = vpop.f32.mrf.mxu0
    %v432 = vadd.f32 %v141, %v431
    %v433 = vpop.f32.mrf.mxu0
    %v434 = vadd.f32 %v141, %v433
    %435 = vmatmul.bf16.gmra.mxu0 %v164
    %v436 = vpop.f32.mrf.mxu0
    %v437 = vadd.f32 %v141, %v436
    %v438 = vpop.f32.mrf.mxu0
    %v439 = vadd.f32 %v141, %v438
    %440 = vmatmul.bf16.gmra.mxu0 %v165
    %v441 = vpop.f32.mrf.mxu0
    %v442 = vadd.f32 %v141, %v441
    %v443 = vpop.f32.mrf.mxu0
    %v444 = vadd.f32 %v141, %v443
    %445 = vdwg.mxu0
    %446 = vst [vmem:[#allocation2] sm:$0xff] %v340
    %447 = vst [vmem:[#allocation2 + $0x8] sm:$0xff] %v369
    %448 = vst [vmem:[#allocation2 + $0x10] sm:$0xff] %v398
    %449 = vst [vmem:[#allocation2 + $0x18] sm:$0xff] %v427
    %450 = vst [vmem:[#allocation2 + $0x20] sm:$0xff] %v342
    %451 = vst [vmem:[#allocation2 + $0x28] sm:$0xff] %v371
    %452 = vst [vmem:[#allocation2 + $0x30] sm:$0xff] %v400
    %453 = vst [vmem:[#allocation2 + $0x38] sm:$0xff] %v429
    %454 = vst [vmem:[#allocation2 + $0x40] sm:$0xff] %v345
    %455 = vst [vmem:[#allocation2 + $0x48] sm:$0xff] %v374
    %456 = vst [vmem:[#allocation2 + $0x50] sm:$0xff] %v403
    %457 = vst [vmem:[#allocation2 + $0x58] sm:$0xff] %v432
    %458 = vst [vmem:[#allocation2 + $0x60] sm:$0xff] %v347
    %459 = vst [vmem:[#allocation2 + $0x68] sm:$0xff] %v376
    %460 = vst [vmem:[#allocation2 + $0x70] sm:$0xff] %v405
    %461 = vst [vmem:[#allocation2 + $0x78] sm:$0xff] %v434
    %462 = vst [vmem:[#allocation2 + $0x80] sm:$0xff] %v350
    %463 = vst [vmem:[#allocation2 + $0x88] sm:$0xff] %v379
    %464 = vst [vmem:[#allocation2 + $0x90] sm:$0xff] %v408
    %465 = vst [vmem:[#allocation2 + $0x98] sm:$0xff] %v437
    %466 = vst [vmem:[#allocation2 + $0xa0] sm:$0xff] %v352
    %467 = vst [vmem:[#allocation2 + $0xa8] sm:$0xff] %v381
    %468 = vst [vmem:[#allocation2 + $0xb0] sm:$0xff] %v410
    %469 = vst [vmem:[#allocation2 + $0xb8] sm:$0xff] %v439
    %470 = vst [vmem:[#allocation2 + $0xc0] sm:$0xff] %v355
    %471 = vst [vmem:[#allocation2 + $0xc8] sm:$0xff] %v384
    %472 = vst [vmem:[#allocation2 + $0xd0] sm:$0xff] %v413
    %473 = vst [vmem:[#allocation2 + $0xd8] sm:$0xff] %v442
    %474 = vst [vmem:[#allocation2 + $0xe0] sm:$0xff] %v357
    %475 = vst [vmem:[#allocation2 + $0xe8] sm:$0xff] %v386
    %476 = vst [vmem:[#allocation2 + $0xf0] sm:$0xff] %v415
    %477 = vst [vmem:[#allocation2 + $0xf8] sm:$0xff] %v444
    %s478 = smul.u32 0, 4
    %s479 = smul.addr %s478, 8
    %s480 = scalar_lea.vmem [#allocation2], %s479
    %v481 = vld [vmem:[%s480] sm:$0xff]
    %v482 = vld [vmem:[%s480 + $0x8] sm:$0xff]
    %v483 = vld [vmem:[%s480 + $0x10] sm:$0xff]
    %v484 = vld [vmem:[%s480 + $0x18] sm:$0xff]
    %v485 = vld [vmem:[#allocation7] sm:$0xff]
    %v486 = vld [vmem:[#allocation7 + $0x8] sm:$0xff]
    %v487 = vld [vmem:[#allocation7 + $0x10] sm:$0xff]
    %v488 = vld [vmem:[#allocation7 + $0x18] sm:$0xff]
    %v489 = vld [vmem:[#allocation7 + $0x20] sm:$0xff]
    %v490 = vld [vmem:[#allocation7 + $0x28] sm:$0xff]
    %v491 = vld [vmem:[#allocation7 + $0x30] sm:$0xff]
    %v492 = vld [vmem:[#allocation7 + $0x38] sm:$0xff]
    %v493 = vld [vmem:[#allocation7 + $0x40] sm:$0xff]
    %v494 = vld [vmem:[#allocation7 + $0x48] sm:$0xff]
    %v495 = vld [vmem:[#allocation7 + $0x50] sm:$0xff]
    %v496 = vld [vmem:[#allocation7 + $0x58] sm:$0xff]
    %v497 = vld [vmem:[#allocation7 + $0x60] sm:$0xff]
    %v498 = vld [vmem:[#allocation7 + $0x68] sm:$0xff]
    %v499 = vld [vmem:[#allocation7 + $0x70] sm:$0xff]
    %v500 = vld [vmem:[#allocation7 + $0x78] sm:$0xff]
    %v501 = vld [vmem:[#allocation7 + $0x80] sm:$0xff]
    %v502 = vld [vmem:[#allocation7 + $0x88] sm:$0xff]
    %v503 = vld [vmem:[#allocation7 + $0x90] sm:$0xff]
    %v504 = vld [vmem:[#allocation7 + $0x98] sm:$0xff]
    %v505 = vld [vmem:[#allocation7 + $0xa0] sm:$0xff]
    %v506 = vld [vmem:[#allocation7 + $0xa8] sm:$0xff]
    %v507 = vld [vmem:[#allocation7 + $0xb0] sm:$0xff]
    %v508 = vld [vmem:[#allocation7 + $0xb8] sm:$0xff]
    %v509 = vld [vmem:[#allocation7 + $0xc0] sm:$0xff]
    %v510 = vld [vmem:[#allocation7 + $0xc8] sm:$0xff]
    %v511 = vld [vmem:[#allocation7 + $0xd0] sm:$0xff]
    %v512 = vld [vmem:[#allocation7 + $0xd8] sm:$0xff]
    %v513 = vld [vmem:[#allocation7 + $0xe0] sm:$0xff]
    %v514 = vld [vmem:[#allocation7 + $0xe8] sm:$0xff]
    %v515 = vld [vmem:[#allocation7 + $0xf0] sm:$0xff]
    %v516 = vld [vmem:[#allocation7 + $0xf8] sm:$0xff]
    %v549 = vunpack.c.l.b16 %v485
    %v550 = vunpack.c.h.b16 %v485
    %v551 = vunpack.c.l.b16 %v486
    %v552 = vunpack.c.h.b16 %v486
    %v553 = vunpack.c.l.b16 %v487
    %v554 = vunpack.c.h.b16 %v487
    %v555 = vunpack.c.l.b16 %v488
    %v556 = vunpack.c.h.b16 %v488
    %v557 = vunpack.c.l.b16 %v489
    %v558 = vunpack.c.h.b16 %v489
    %v559 = vunpack.c.l.b16 %v490
    %v560 = vunpack.c.h.b16 %v490
    %v561 = vunpack.c.l.b16 %v491
    %v562 = vunpack.c.h.b16 %v491
    %v563 = vunpack.c.l.b16 %v492
    %v564 = vunpack.c.h.b16 %v492
    %v565 = vunpack.c.l.b16 %v493
    %v566 = vunpack.c.h.b16 %v493
    %v567 = vunpack.c.l.b16 %v494
    %v568 = vunpack.c.h.b16 %v494
    %v569 = vunpack.c.l.b16 %v495
    %v570 = vunpack.c.h.b16 %v495
    %v571 = vunpack.c.l.b16 %v496
    %v572 = vunpack.c.h.b16 %v496
    %v573 = vunpack.c.l.b16 %v497
    %v574 = vunpack.c.h.b16 %v497
    %v575 = vunpack.c.l.b16 %v498
    %v576 = vunpack.c.h.b16 %v498
    %v577 = vunpack.c.l.b16 %v499
    %v578 = vunpack.c.h.b16 %v499
    %v579 = vunpack.c.l.b16 %v500
    %v580 = vunpack.c.h.b16 %v500
    %v581 = vunpack.c.l.b16 %v501
    %v582 = vunpack.c.h.b16 %v501
    %v583 = vunpack.c.l.b16 %v502
    %v584 = vunpack.c.h.b16 %v502
    %v585 = vunpack.c.l.b16 %v503
    %v586 = vunpack.c.h.b16 %v503
    %v587 = vunpack.c.l.b16 %v504
    %v588 = vunpack.c.h.b16 %v504
    %v589 = vunpack.c.l.b16 %v505
    %v590 = vunpack.c.h.b16 %v505
    %v591 = vunpack.c.l.b16 %v506
    %v592 = vunpack.c.h.b16 %v506
    %v593 = vunpack.c.l.b16 %v507
    %v594 = vunpack.c.h.b16 %v507
    %v595 = vunpack.c.l.b16 %v508
    %v596 = vunpack.c.h.b16 %v508
    %v597 = vunpack.c.l.b16 %v509
    %v598 = vunpack.c.h.b16 %v509
    %v599 = vunpack.c.l.b16 %v510
    %v600 = vunpack.c.h.b16 %v510
    %v601 = vunpack.c.l.b16 %v511
    %v602 = vunpack.c.h.b16 %v511
    %v603 = vunpack.c.l.b16 %v512
    %v604 = vunpack.c.h.b16 %v512
    %v605 = vunpack.c.l.b16 %v513
    %v606 = vunpack.c.h.b16 %v513
    %v607 = vunpack.c.l.b16 %v514
    %v608 = vunpack.c.h.b16 %v514
    %v609 = vunpack.c.l.b16 %v515
    %v610 = vunpack.c.h.b16 %v515
    %v611 = vunpack.c.l.b16 %v516
    %v612 = vunpack.c.h.b16 %v516
    %v613 = vpack.c.b16 %v553, %v549
    %v614 = vpack.c.b16 %v554, %v550
    %v615 = vpack.c.b16 %v555, %v551
    %v616 = vpack.c.b16 %v556, %v552
    %v617 = vpack.c.b16 %v561, %v557
    %v618 = vpack.c.b16 %v562, %v558
    %v619 = vpack.c.b16 %v563, %v559
    %v620 = vpack.c.b16 %v564, %v560
    %v621 = vpack.c.b16 %v569, %v565
    %v622 = vpack.c.b16 %v570, %v566
    %v623 = vpack.c.b16 %v571, %v567
    %v624 = vpack.c.b16 %v572, %v568
    %v625 = vpack.c.b16 %v577, %v573
    %v626 = vpack.c.b16 %v578, %v574
    %v627 = vpack.c.b16 %v579, %v575
    %v628 = vpack.c.b16 %v580, %v576
    %v629 = vpack.c.b16 %v585, %v581
    %v630 = vpack.c.b16 %v586, %v582
    %v631 = vpack.c.b16 %v587, %v583
    %v632 = vpack.c.b16 %v588, %v584
    %v633 = vpack.c.b16 %v593, %v589
    %v634 = vpack.c.b16 %v594, %v590
    %v635 = vpack.c.b16 %v595, %v591
    %v636 = vpack.c.b16 %v596, %v592
    %v637 = vpack.c.b16 %v601, %v597
    %v638 = vpack.c.b16 %v602, %v598
    %v639 = vpack.c.b16 %v603, %v599
    %v640 = vpack.c.b16 %v604, %v600
    %v641 = vpack.c.b16 %v609, %v605
    %v642 = vpack.c.b16 %v610, %v606
    %v643 = vpack.c.b16 %v611, %v607
    %v644 = vpack.c.b16 %v612, %v608
    %677 = vmatpush.bf16.msra.mxu0 %v641
    %678 = vmatpush.bf16.msra.mxu0 %v637
    %679 = vmatpush.bf16.msra.mxu0 %v633
    %680 = vmatpush.bf16.msra.mxu0 %v629
    %681 = vmatpush.bf16.msra.mxu0 %v625
    %682 = vmatpush.bf16.msra.mxu0 %v621
    %683 = vmatpush.bf16.msra.mxu0 %v617
    %684 = vmatpush.bf16.msra.mxu0 %v613
    %685 = vmatmul.bf16.gmra.mxu0 0
    %v686 = vpop.f32.mrf.mxu0
    %v687 = vadd.f32 0.0, %v686
    %v688 = vpop.f32.mrf.mxu0
    %689 = vdwg.mxu0
    %690 = vmatpush.bf16.msra.mxu0 %v642
    %691 = vmatpush.bf16.msra.mxu0 %v638
    %692 = vmatpush.bf16.msra.mxu0 %v634
    %693 = vmatpush.bf16.msra.mxu0 %v630
    %694 = vmatpush.bf16.msra.mxu0 %v626
    %695 = vmatpush.bf16.msra.mxu0 %v622
    %696 = vmatpush.bf16.msra.mxu0 %v618
    %697 = vmatpush.bf16.msra.mxu0 %v614
    %698 = vmatmul.bf16.gmra.mxu0 0
    %v699 = vpop.f32.mrf.mxu0
    %v700 = vadd.f32 0.0, %v699
    %v701 = vpop.f32.mrf.mxu0
    %702 = vdwg.mxu0
    %703 = vmatpush.bf16.msra.mxu0 %v643
    %704 = vmatpush.bf16.msra.mxu0 %v639
    %705 = vmatpush.bf16.msra.mxu0 %v635
    %706 = vmatpush.bf16.msra.mxu0 %v631
    %707 = vmatpush.bf16.msra.mxu0 %v627
    %708 = vmatpush.bf16.msra.mxu0 %v623
    %709 = vmatpush.bf16.msra.mxu0 %v619
    %710 = vmatpush.bf16.msra.mxu0 %v615
    %711 = vmatmul.bf16.gmra.mxu0 0
    %v712 = vpop.f32.mrf.mxu0
    %v713 = vadd.f32 0.0, %v712
    %v714 = vpop.f32.mrf.mxu0
    %715 = vdwg.mxu0
    %716 = vmatpush.bf16.msra.mxu0 %v644
    %717 = vmatpush.bf16.msra.mxu0 %v640
    %718 = vmatpush.bf16.msra.mxu0 %v636
    %719 = vmatpush.bf16.msra.mxu0 %v632
    %720 = vmatpush.bf16.msra.mxu0 %v628
    %721 = vmatpush.bf16.msra.mxu0 %v624
    %722 = vmatpush.bf16.msra.mxu0 %v620
    %723 = vmatpush.bf16.msra.mxu0 %v616
    %724 = vmatmul.bf16.gmra.mxu0 0
    %v725 = vpop.f32.mrf.mxu0
    %v726 = vadd.f32 0.0, %v725
    %v727 = vpop.f32.mrf.mxu0
    %728 = vdwg.mxu0
    %v729 = vadd.f32 %v481, %v687
    %v730 = vadd.f32 %v482, %v700
    %v731 = vadd.f32 %v483, %v713
    %v732 = vadd.f32 %v484, %v726
    %v733 = vmul.f32 %v729, 0.5
    %v734 = vtanh.pop %v733
    %v735 = vmul.f32 %v734, 0.5
    %v736 = vadd.f32 %v735, 0.5
    %v737 = vmul.f32 %v730, 0.5
    %v738 = vtanh.pop %v737
    %v739 = vmul.f32 %v738, 0.5
    %v740 = vadd.f32 %v739, 0.5
    %v741 = vtanh.pop %v731
    %v742 = vmul.f32 %v732, 0.5
    %v743 = vtanh.pop %v742
    %v744 = vmul.f32 %v743, 0.5
    %v745 = vadd.f32 %v744, 0.5
    %v746 = vmul.f32 %v740, 0.0
    %v747 = vmul.f32 %v736, %v741
    %v748 = vadd.f32 %v746, %v747
    %v749 = vtanh.pop %v748
    %v750 = vmul.f32 %v745, %v749
    %751 = vst [vmem:[#allocation3] sm:$0xff] %v750
    %s752 = smul.u32 1, 4
    %s753 = smul.addr %s752, 8
    %s754 = scalar_lea.vmem [#allocation2], %s753
    %v755 = vld [vmem:[%s754] sm:$0xff]
    %v756 = vld [vmem:[%s754 + $0x8] sm:$0xff]
    %v757 = vld [vmem:[%s754 + $0x10] sm:$0xff]
    %v758 = vld [vmem:[%s754 + $0x18] sm:$0xff]
    %v759 = vpack.c.bf16 %v750, %v750
    %v760 = vld [vmem:[#allocation7] sm:$0xff]
    %v761 = vld [vmem:[#allocation7 + $0x8] sm:$0xff]
    %v762 = vld [vmem:[#allocation7 + $0x10] sm:$0xff]
    %v763 = vld [vmem:[#allocation7 + $0x18] sm:$0xff]
    %v764 = vld [vmem:[#allocation7 + $0x20] sm:$0xff]
    %v765 = vld [vmem:[#allocation7 + $0x28] sm:$0xff]
    %v766 = vld [vmem:[#allocation7 + $0x30] sm:$0xff]
    %v767 = vld [vmem:[#allocation7 + $0x38] sm:$0xff]
    %v768 = vld [vmem:[#allocation7 + $0x40] sm:$0xff]
    %v769 = vld [vmem:[#allocation7 + $0x48] sm:$0xff]
    %v770 = vld [vmem:[#allocation7 + $0x50] sm:$0xff]
    %v771 = vld [vmem:[#allocation7 + $0x58] sm:$0xff]
    %v772 = vld [vmem:[#allocation7 + $0x60] sm:$0xff]
    %v773 = vld [vmem:[#allocation7 + $0x68] sm:$0xff]
    %v774 = vld [vmem:[#allocation7 + $0x70] sm:$0xff]
    %v775 = vld [vmem:[#allocation7 + $0x78] sm:$0xff]
    %v776 = vld [vmem:[#allocation7 + $0x80] sm:$0xff]
    %v777 = vld [vmem:[#allocation7 + $0x88] sm:$0xff]
    %v778 = vld [vmem:[#allocation7 + $0x90] sm:$0xff]
    %v779 = vld [vmem:[#allocation7 + $0x98] sm:$0xff]
    %v780 = vld [vmem:[#allocation7 + $0xa0] sm:$0xff]
    %v781 = vld [vmem:[#allocation7 + $0xa8] sm:$0xff]
    %v782 = vld [vmem:[#allocation7 + $0xb0] sm:$0xff]
    %v783 = vld [vmem:[#allocation7 + $0xb8] sm:$0xff]
    %v784 = vld [vmem:[#allocation7 + $0xc0] sm:$0xff]
    %v785 = vld [vmem:[#allocation7 + $0xc8] sm:$0xff]
    %v786 = vld [vmem:[#allocation7 + $0xd0] sm:$0xff]
    %v787 = vld [vmem:[#allocation7 + $0xd8] sm:$0xff]
    %v788 = vld [vmem:[#allocation7 + $0xe0] sm:$0xff]
    %v789 = vld [vmem:[#allocation7 + $0xe8] sm:$0xff]
    %v790 = vld [vmem:[#allocation7 + $0xf0] sm:$0xff]
    %v791 = vld [vmem:[#allocation7 + $0xf8] sm:$0xff]
    %v824 = vunpack.c.l.b16 %v760
    %v825 = vunpack.c.h.b16 %v760
    %v826 = vunpack.c.l.b16 %v761
    %v827 = vunpack.c.h.b16 %v761
    %v828 = vunpack.c.l.b16 %v762
    %v829 = vunpack.c.h.b16 %v762
    %v830 = vunpack.c.l.b16 %v763
    %v831 = vunpack.c.h.b16 %v763
    %v832 = vunpack.c.l.b16 %v764
    %v833 = vunpack.c.h.b16 %v764
    %v834 = vunpack.c.l.b16 %v765
    %v835 = vunpack.c.h.b16 %v765
    %v836 = vunpack.c.l.b16 %v766
    %v837 = vunpack.c.h.b16 %v766
    %v838 = vunpack.c.l.b16 %v767
    %v839 = vunpack.c.h.b16 %v767
    %v840 = vunpack.c.l.b16 %v768
    %v841 = vunpack.c.h.b16 %v768
    %v842 = vunpack.c.l.b16 %v769
    %v843 = vunpack.c.h.b16 %v769
    %v844 = vunpack.c.l.b16 %v770
    %v845 = vunpack.c.h.b16 %v770
    %v846 = vunpack.c.l.b16 %v771
    %v847 = vunpack.c.h.b16 %v771
    %v848 = vunpack.c.l.b16 %v772
    %v849 = vunpack.c.h.b16 %v772
    %v850 = vunpack.c.l.b16 %v773
    %v851 = vunpack.c.h.b16 %v773
    %v852 = vunpack.c.l.b16 %v774
    %v853 = vunpack.c.h.b16 %v774
    %v854 = vunpack.c.l.b16 %v775
    %v855 = vunpack.c.h.b16 %v775
    %v856 = vunpack.c.l.b16 %v776
    %v857 = vunpack.c.h.b16 %v776
    %v858 = vunpack.c.l.b16 %v777
    %v859 = vunpack.c.h.b16 %v777
    %v860 = vunpack.c.l.b16 %v778
    %v861 = vunpack.c.h.b16 %v778
    %v862 = vunpack.c.l.b16 %v779
    %v863 = vunpack.c.h.b16 %v779
    %v864 = vunpack.c.l.b16 %v780
    %v865 = vunpack.c.h.b16 %v780
    %v866 = vunpack.c.l.b16 %v781
    %v867 = vunpack.c.h.b16 %v781
    %v868 = vunpack.c.l.b16 %v782
    %v869 = vunpack.c.h.b16 %v782
    %v870 = vunpack.c.l.b16 %v783
    %v871 = vunpack.c.h.b16 %v783
    %v872 = vunpack.c.l.b16 %v784
    %v873 = vunpack.c.h.b16 %v784
    %v874 = vunpack.c.l.b16 %v785
    %v875 = vunpack.c.h.b16 %v785
    %v876 = vunpack.c.l.b16 %v786
    %v877 = vunpack.c.h.b16 %v786
    %v878 = vunpack.c.l.b16 %v787
    %v879 = vunpack.c.h.b16 %v787
    %v880 = vunpack.c.l.b16 %v788
    %v881 = vunpack.c.h.b16 %v788
    %v882 = vunpack.c.l.b16 %v789
    %v883 = vunpack.c.h.b16 %v789
    %v884 = vunpack.c.l.b16 %v790
    %v885 = vunpack.c.h.b16 %v790
    %v886 = vunpack.c.l.b16 %v791
    %v887 = vunpack.c.h.b16 %v791
    %v888 = vpack.c.b16 %v828, %v824
    %v889 = vpack.c.b16 %v829, %v825
    %v890 = vpack.c.b16 %v830, %v826
    %v891 = vpack.c.b16 %v831, %v827
    %v892 = vpack.c.b16 %v836, %v832
    %v893 = vpack.c.b16 %v837, %v833
    %v894 = vpack.c.b16 %v838, %v834
    %v895 = vpack.c.b16 %v839, %v835
    %v896 = vpack.c.b16 %v844, %v840
    %v897 = vpack.c.b16 %v845, %v841
    %v898 = vpack.c.b16 %v846, %v842
    %v899 = vpack.c.b16 %v847, %v843
    %v900 = vpack.c.b16 %v852, %v848
    %v901 = vpack.c.b16 %v853, %v849
    %v902 = vpack.c.b16 %v854, %v850
    %v903 = vpack.c.b16 %v855, %v851
    %v904 = vpack.c.b16 %v860, %v856
    %v905 = vpack.c.b16 %v861, %v857
    %v906 = vpack.c.b16 %v862, %v858
    %v907 = vpack.c.b16 %v863, %v859
    %v908 = vpack.c.b16 %v868, %v864
    %v909 = vpack.c.b16 %v869, %v865
    %v910 = vpack.c.b16 %v870, %v866
    %v911 = vpack.c.b16 %v871, %v867
    %v912 = vpack.c.b16 %v876, %v872
    %v913 = vpack.c.b16 %v877, %v873
    %v914 = vpack.c.b16 %v878, %v874
    %v915 = vpack.c.b16 %v879, %v875
    %v916 = vpack.c.b16 %v884, %v880
    %v917 = vpack.c.b16 %v885, %v881
    %v918 = vpack.c.b16 %v886, %v882
    %v919 = vpack.c.b16 %v887, %v883
    %952 = vmatpush.bf16.msra.mxu0 %v916
    %953 = vmatpush.bf16.msra.mxu0 %v912
    %954 = vmatpush.bf16.msra.mxu0 %v908
    %955 = vmatpush.bf16.msra.mxu0 %v904
    %956 = vmatpush.bf16.msra.mxu0 %v900
    %957 = vmatpush.bf16.msra.mxu0 %v896
    %958 = vmatpush.bf16.msra.mxu0 %v892
    %959 = vmatpush.bf16.msra.mxu0 %v888
    %960 = vmatmul.bf16.gmra.mxu0 %v759
    %v961 = vpop.f32.mrf.mxu0
    %v962 = vadd.f32 0.0, %v961
    %v963 = vpop.f32.mrf.mxu0
    %964 = vdwg.mxu0
    %965 = vmatpush.bf16.msra.mxu0 %v917
    %966 = vmatpush.bf16.msra.mxu0 %v913
    %967 = vmatpush.bf16.msra.mxu0 %v909
    %968 = vmatpush.bf16.msra.mxu0 %v905
    %969 = vmatpush.bf16.msra.mxu0 %v901
    %970 = vmatpush.bf16.msra.mxu0 %v897
    %971 = vmatpush.bf16.msra.mxu0 %v893
    %972 = vmatpush.bf16.msra.mxu0 %v889
    %973 = vmatmul.bf16.gmra.mxu0 %v759
    %v974 = vpop.f32.mrf.mxu0
    %v975 = vadd.f32 0.0, %v974
    %v976 = vpop.f32.mrf.mxu0
    %977 = vdwg.mxu0
    %978 = vmatpush.bf16.msra.mxu0 %v918
    %979 = vmatpush.bf16.msra.mxu0 %v914
    %980 = vmatpush.bf16.msra.mxu0 %v910
    %981 = vmatpush.bf16.msra.mxu0 %v906
    %982 = vmatpush.bf16.msra.mxu0 %v902
    %983 = vmatpush.bf16.msra.mxu0 %v898
    %984 = vmatpush.bf16.msra.mxu0 %v894
    %985 = vmatpush.bf16.msra.mxu0 %v890
    %986 = vmatmul.bf16.gmra.mxu0 %v759
    %v987 = vpop.f32.mrf.mxu0
    %v988 = vadd.f32 0.0, %v987
    %v989 = vpop.f32.mrf.mxu0
    %990 = vdwg.mxu0
    %991 = vmatpush.bf16.msra.mxu0 %v919
    %992 = vmatpush.bf16.msra.mxu0 %v915
    %993 = vmatpush.bf16.msra.mxu0 %v911
    %994 = vmatpush.bf16.msra.mxu0 %v907
    %995 = vmatpush.bf16.msra.mxu0 %v903
    %996 = vmatpush.bf16.msra.mxu0 %v899
    %997 = vmatpush.bf16.msra.mxu0 %v895
    %998 = vmatpush.bf16.msra.mxu0 %v891
    %999 = vmatmul.bf16.gmra.mxu0 %v759
    %v1000 = vpop.f32.mrf.mxu0
    %v1001 = vadd.f32 0.0, %v1000
    %v1002 = vpop.f32.mrf.mxu0
    %1003 = vdwg.mxu0
    %v1004 = vadd.f32 %v755, %v962
    %v1005 = vadd.f32 %v756, %v975
    %v1006 = vadd.f32 %v757, %v988
    %v1007 = vadd.f32 %v758, %v1001
    %v1008 = vmul.f32 %v1004, 0.5
    %v1009 = vtanh.pop %v1008
    %v1010 = vmul.f32 %v1009, 0.5
    %v1011 = vadd.f32 %v1010, 0.5
    %v1012 = vmul.f32 %v1005, 0.5
    %v1013 = vtanh.pop %v1012
    %v1014 = vmul.f32 %v1013, 0.5
    %v1015 = vadd.f32 %v1014, 0.5
    %v1016 = vtanh.pop %v1006
    %v1017 = vmul.f32 %v1007, 0.5
    %v1018 = vtanh.pop %v1017
    %v1019 = vmul.f32 %v1018, 0.5
    %v1020 = vadd.f32 %v1019, 0.5
    %v1021 = vmul.f32 %v1015, %v748
    %v1022 = vmul.f32 %v1011, %v1016
    %v1023 = vadd.f32 %v1021, %v1022
    %v1024 = vtanh.pop %v1023
    %v1025 = vmul.f32 %v1020, %v1024
    %s1026 = scalar_lea.vmem [#allocation3], 8
    %1027 = vst [vmem:[%s1026] sm:$0xff] %v1025
    %s1028 = smul.u32 2, 4
    %s1029 = smul.addr %s1028, 8
    %s1030 = scalar_lea.vmem [#allocation2], %s1029
    %v1031 = vld [vmem:[%s1030] sm:$0xff]
    %v1032 = vld [vmem:[%s1030 + $0x8] sm:$0xff]
    %v1033 = vld [vmem:[%s1030 + $0x10] sm:$0xff]
    %v1034 = vld [vmem:[%s1030 + $0x18] sm:$0xff]
    %v1035 = vpack.c.bf16 %v1025, %v1025
    %v1036 = vld [vmem:[#allocation7] sm:$0xff]
    %v1037 = vld [vmem:[#allocation7 + $0x8] sm:$0xff]
    %v1038 = vld [vmem:[#allocation7 + $0x10] sm:$0xff]
    %v1039 = vld [vmem:[#allocation7 + $0x18] sm:$0xff]
    %v1040 = vld [vmem:[#allocation7 + $0x20] sm:$0xff]
    %v1041 = vld [vmem:[#allocation7 + $0x28] sm:$0xff]
    %v1042 = vld [vmem:[#allocation7 + $0x30] sm:$0xff]
    %v1043 = vld [vmem:[#allocation7 + $0x38] sm:$0xff]
    %v1044 = vld [vmem:[#allocation7 + $0x40] sm:$0xff]
    %v1045 = vld [vmem:[#allocation7 + $0x48] sm:$0xff]
    %v1046 = vld [vmem:[#allocation7 + $0x50] sm:$0xff]
    %v1047 = vld [vmem:[#allocation7 + $0x58] sm:$0xff]
    %v1048 = vld [vmem:[#allocation7 + $0x60] sm:$0xff]
    %v1049 = vld [vmem:[#allocation7 + $0x68] sm:$0xff]
    %v1050 = vld [vmem:[#allocation7 + $0x70] sm:$0xff]
    %v1051 = vld [vmem:[#allocation7 + $0x78] sm:$0xff]
    %v1052 = vld [vmem:[#allocation7 + $0x80] sm:$0xff]
    %v1053 = vld [vmem:[#allocation7 + $0x88] sm:$0xff]
    %v1054 = vld [vmem:[#allocation7 + $0x90] sm:$0xff]
    %v1055 = vld [vmem:[#allocation7 + $0x98] sm:$0xff]
    %v1056 = vld [vmem:[#allocation7 + $0xa0] sm:$0xff]
    %v1057 = vld [vmem:[#allocation7 + $0xa8] sm:$0xff]
    %v1058 = vld [vmem:[#allocation7 + $0xb0] sm:$0xff]
    %v1059 = vld [vmem:[#allocation7 + $0xb8] sm:$0xff]
    %v1060 = vld [vmem:[#allocation7 + $0xc0] sm:$0xff]
    %v1061 = vld [vmem:[#allocation7 + $0xc8] sm:$0xff]
    %v1062 = vld [vmem:[#allocation7 + $0xd0] sm:$0xff]
    %v1063 = vld [vmem:[#allocation7 + $0xd8] sm:$0xff]
    %v1064 = vld [vmem:[#allocation7 + $0xe0] sm:$0xff]
    %v1065 = vld [vmem:[#allocation7 + $0xe8] sm:$0xff]
    %v1066 = vld [vmem:[#allocation7 + $0xf0] sm:$0xff]
    %v1067 = vld [vmem:[#allocation7 + $0xf8] sm:$0xff]
    %v1100 = vunpack.c.l.b16 %v1036
    %v1101 = vunpack.c.h.b16 %v1036
    %v1102 = vunpack.c.l.b16 %v1037
    %v1103 = vunpack.c.h.b16 %v1037
    %v1104 = vunpack.c.l.b16 %v1038
    %v1105 = vunpack.c.h.b16 %v1038
    %v1106 = vunpack.c.l.b16 %v1039
    %v1107 = vunpack.c.h.b16 %v1039
    %v1108 = vunpack.c.l.b16 %v1040
    %v1109 = vunpack.c.h.b16 %v1040
    %v1110 = vunpack.c.l.b16 %v1041
    %v1111 = vunpack.c.h.b16 %v1041
    %v1112 = vunpack.c.l.b16 %v1042
    %v1113 = vunpack.c.h.b16 %v1042
    %v1114 = vunpack.c.l.b16 %v1043
    %v1115 = vunpack.c.h.b16 %v1043
    %v1116 = vunpack.c.l.b16 %v1044
    %v1117 = vunpack.c.h.b16 %v1044
    %v1118 = vunpack.c.l.b16 %v1045
    %v1119 = vunpack.c.h.b16 %v1045
    %v1120 = vunpack.c.l.b16 %v1046
    %v1121 = vunpack.c.h.b16 %v1046
    %v1122 = vunpack.c.l.b16 %v1047
    %v1123 = vunpack.c.h.b16 %v1047
    %v1124 = vunpack.c.l.b16 %v1048
    %v1125 = vunpack.c.h.b16 %v1048
    %v1126 = vunpack.c.l.b16 %v1049
    %v1127 = vunpack.c.h.b16 %v1049
    %v1128 = vunpack.c.l.b16 %v1050
    %v1129 = vunpack.c.h.b16 %v1050
    %v1130 = vunpack.c.l.b16 %v1051
    %v1131 = vunpack.c.h.b16 %v1051
    %v1132 = vunpack.c.l.b16 %v1052
    %v1133 = vunpack.c.h.b16 %v1052
    %v1134 = vunpack.c.l.b16 %v1053
    %v1135 = vunpack.c.h.b16 %v1053
    %v1136 = vunpack.c.l.b16 %v1054
    %v1137 = vunpack.c.h.b16 %v1054
    %v1138 = vunpack.c.l.b16 %v1055
    %v1139 = vunpack.c.h.b16 %v1055
    %v1140 = vunpack.c.l.b16 %v1056
    %v1141 = vunpack.c.h.b16 %v1056
    %v1142 = vunpack.c.l.b16 %v1057
    %v1143 = vunpack.c.h.b16 %v1057
    %v1144 = vunpack.c.l.b16 %v1058
    %v1145 = vunpack.c.h.b16 %v1058
    %v1146 = vunpack.c.l.b16 %v1059
    %v1147 = vunpack.c.h.b16 %v1059
    %v1148 = vunpack.c.l.b16 %v1060
    %v1149 = vunpack.c.h.b16 %v1060
    %v1150 = vunpack.c.l.b16 %v1061
    %v1151 = vunpack.c.h.b16 %v1061
    %v1152 = vunpack.c.l.b16 %v1062
    %v1153 = vunpack.c.h.b16 %v1062
    %v1154 = vunpack.c.l.b16 %v1063
    %v1155 = vunpack.c.h.b16 %v1063
    %v1156 = vunpack.c.l.b16 %v1064
    %v1157 = vunpack.c.h.b16 %v1064
    %v1158 = vunpack.c.l.b16 %v1065
    %v1159 = vunpack.c.h.b16 %v1065
    %v1160 = vunpack.c.l.b16 %v1066
    %v1161 = vunpack.c.h.b16 %v1066
    %v1162 = vunpack.c.l.b16 %v1067
    %v1163 = vunpack.c.h.b16 %v1067
    %v1164 = vpack.c.b16 %v1104, %v1100
    %v1165 = vpack.c.b16 %v1105, %v1101
    %v1166 = vpack.c.b16 %v1106, %v1102
    %v1167 = vpack.c.b16 %v1107, %v1103
    %v1168 = vpack.c.b16 %v1112, %v1108
    %v1169 = vpack.c.b16 %v1113, %v1109
    %v1170 = vpack.c.b16 %v1114, %v1110
    %v1171 = vpack.c.b16 %v1115, %v1111
    %v1172 = vpack.c.b16 %v1120, %v1116
    %v1173 = vpack.c.b16 %v1121, %v1117
    %v1174 = vpack.c.b16 %v1122, %v1118
    %v1175 = vpack.c.b16 %v1123, %v1119
    %v1176 = vpack.c.b16 %v1128, %v1124
    %v1177 = vpack.c.b16 %v1129, %v1125
    %v1178 = vpack.c.b16 %v1130, %v1126
    %v1179 = vpack.c.b16 %v1131, %v1127
    %v1180 = vpack.c.b16 %v1136, %v1132
    %v1181 = vpack.c.b16 %v1137, %v1133
    %v1182 = vpack.c.b16 %v1138, %v1134
    %v1183 = vpack.c.b16 %v1139, %v1135
    %v1184 = vpack.c.b16 %v1144, %v1140
    %v1185 = vpack.c.b16 %v1145, %v1141
    %v1186 = vpack.c.b16 %v1146, %v1142
    %v1187 = vpack.c.b16 %v1147, %v1143
    %v1188 = vpack.c.b16 %v1152, %v1148
    %v1189 = vpack.c.b16 %v1153, %v1149
    %v1190 = vpack.c.b16 %v1154, %v1150
    %v1191 = vpack.c.b16 %v1155, %v1151
    %v1192 = vpack.c.b16 %v1160, %v1156
    %v1193 = vpack.c.b16 %v1161, %v1157
    %v1194 = vpack.c.b16 %v1162, %v1158
    %v1195 = vpack.c.b16 %v1163, %v1159
    %1228 = vmatpush.bf16.msra.mxu0 %v1192
    %1229 = vmatpush.bf16.msra.mxu0 %v1188
    %1230 = vmatpush.bf16.msra.mxu0 %v1184
    %1231 = vmatpush.bf16.msra.mxu0 %v1180
    %1232 = vmatpush.bf16.msra.mxu0 %v1176
    %1233 = vmatpush.bf16.msra.mxu0 %v1172
    %1234 = vmatpush.bf16.msra.mxu0 %v1168
    %1235 = vmatpush.bf16.msra.mxu0 %v1164
    %1236 = vmatmul.bf16.gmra.mxu0 %v1035
    %v1237 = vpop.f32.mrf.mxu0
    %v1238 = vadd.f32 0.0, %v1237
    %v1239 = vpop.f32.mrf.mxu0
    %1240 = vdwg.mxu0
    %1241 = vmatpush.bf16.msra.mxu0 %v1193
    %1242 = vmatpush.bf16.msra.mxu0 %v1189
    %1243 = vmatpush.bf16.msra.mxu0 %v1185
    %1244 = vmatpush.bf16.msra.mxu0 %v1181
    %1245 = vmatpush.bf16.msra.mxu0 %v1177
    %1246 = vmatpush.bf16.msra.mxu0 %v1173
    %1247 = vmatpush.bf16.msra.mxu0 %v1169
    %1248 = vmatpush.bf16.msra.mxu0 %v1165
    %1249 = vmatmul.bf16.gmra.mxu0 %v1035
    %v1250 = vpop.f32.mrf.mxu0
    %v1251 = vadd.f32 0.0, %v1250
    %v1252 = vpop.f32.mrf.mxu0
    %1253 = vdwg.mxu0
    %1254 = vmatpush.bf16.msra.mxu0 %v1194
    %1255 = vmatpush.bf16.msra.mxu0 %v1190
    %1256 = vmatpush.bf16.msra.mxu0 %v1186
    %1257 = vmatpush.bf16.msra.mxu0 %v1182
    %1258 = vmatpush.bf16.msra.mxu0 %v1178
    %1259 = vmatpush.bf16.msra.mxu0 %v1174
    %1260 = vmatpush.bf16.msra.mxu0 %v1170
    %1261 = vmatpush.bf16.msra.mxu0 %v1166
    %1262 = vmatmul.bf16.gmra.mxu0 %v1035
    %v1263 = vpop.f32.mrf.mxu0
    %v1264 = vadd.f32 0.0, %v1263
    %v1265 = vpop.f32.mrf.mxu0
    %1266 = vdwg.mxu0
    %1267 = vmatpush.bf16.msra.mxu0 %v1195
    %1268 = vmatpush.bf16.msra.mxu0 %v1191
    %1269 = vmatpush.bf16.msra.mxu0 %v1187
    %1270 = vmatpush.bf16.msra.mxu0 %v1183
    %1271 = vmatpush.bf16.msra.mxu0 %v1179
    %1272 = vmatpush.bf16.msra.mxu0 %v1175
    %1273 = vmatpush.bf16.msra.mxu0 %v1171
    %1274 = vmatpush.bf16.msra.mxu0 %v1167
    %1275 = vmatmul.bf16.gmra.mxu0 %v1035
    %v1276 = vpop.f32.mrf.mxu0
    %v1277 = vadd.f32 0.0, %v1276
    %v1278 = vpop.f32.mrf.mxu0
    %1279 = vdwg.mxu0
    %v1280 = vadd.f32 %v1031, %v1238
    %v1281 = vadd.f32 %v1032, %v1251
    %v1282 = vadd.f32 %v1033, %v1264
    %v1283 = vadd.f32 %v1034, %v1277
    %v1284 = vmul.f32 %v1280, 0.5
    %v1285 = vtanh.pop %v1284
    %v1286 = vmul.f32 %v1285, 0.5
    %v1287 = vadd.f32 %v1286, 0.5
    %v1288 = vmul.f32 %v1281, 0.5
    %v1289 = vtanh.pop %v1288
    %v1290 = vmul.f32 %v1289, 0.5
    %v1291 = vadd.f32 %v1290, 0.5
    %v1292 = vtanh.pop %v1282
    %v1293 = vmul.f32 %v1283, 0.5
    %v1294 = vtanh.pop %v1293
    %v1295 = vmul.f32 %v1294, 0.5
    %v1296 = vadd.f32 %v1295, 0.5
    %v1297 = vmul.f32 %v1291, %v1023
    %v1298 = vmul.f32 %v1287, %v1292
    %v1299 = vadd.f32 %v1297, %v1298
    %v1300 = vtanh.pop %v1299
    %v1301 = vmul.f32 %v1296, %v1300
    %s1302 = scalar_lea.vmem [#allocation3], 16
    %1303 = vst [vmem:[%s1302] sm:$0xff] %v1301
    %s1304 = smul.u32 3, 4
    %s1305 = smul.addr %s1304, 8
    %s1306 = scalar_lea.vmem [#allocation2], %s1305
    %v1307 = vld [vmem:[%s1306] sm:$0xff]
    %v1308 = vld [vmem:[%s1306 + $0x8] sm:$0xff]
    %v1309 = vld [vmem:[%s1306 + $0x10] sm:$0xff]
    %v1310 = vld [vmem:[%s1306 + $0x18] sm:$0xff]
    %v1311 = vpack.c.bf16 %v1301, %v1301
    %v1312 = vld [vmem:[#allocation7] sm:$0xff]
    %v1313 = vld [vmem:[#allocation7 + $0x8] sm:$0xff]
    %v1314 = vld [vmem:[#allocation7 + $0x10] sm:$0xff]
    %v1315 = vld [vmem:[#allocation7 + $0x18] sm:$0xff]
    %v1316 = vld [vmem:[#allocation7 + $0x20] sm:$0xff]
    %v1317 = vld [vmem:[#allocation7 + $0x28] sm:$0xff]
    %v1318 = vld [vmem:[#allocation7 + $0x30] sm:$0xff]
    %v1319 = vld [vmem:[#allocation7 + $0x38] sm:$0xff]
    %v1320 = vld [vmem:[#allocation7 + $0x40] sm:$0xff]
    %v1321 = vld [vmem:[#allocation7 + $0x48] sm:$0xff]
    %v1322 = vld [vmem:[#allocation7 + $0x50] sm:$0xff]
    %v1323 = vld [vmem:[#allocation7 + $0x58] sm:$0xff]
    %v1324 = vld [vmem:[#allocation7 + $0x60] sm:$0xff]
    %v1325 = vld [vmem:[#allocation7 + $0x68] sm:$0xff]
    %v1326 = vld [vmem:[#allocation7 + $0x70] sm:$0xff]
    %v1327 = vld [vmem:[#allocation7 + $0x78] sm:$0xff]
    %v1328 = vld [vmem:[#allocation7 + $0x80] sm:$0xff]
    %v1329 = vld [vmem:[#allocation7 + $0x88] sm:$0xff]
    %v1330 = vld [vmem:[#allocation7 + $0x90] sm:$0xff]
    %v1331 = vld [vmem:[#allocation7 + $0x98] sm:$0xff]
    %v1332 = vld [vmem:[#allocation7 + $0xa0] sm:$0xff]
    %v1333 = vld [vmem:[#allocation7 + $0xa8] sm:$0xff]
    %v1334 = vld [vmem:[#allocation7 + $0xb0] sm:$0xff]
    %v1335 = vld [vmem:[#allocation7 + $0xb8] sm:$0xff]
    %v1336 = vld [vmem:[#allocation7 + $0xc0] sm:$0xff]
    %v1337 = vld [vmem:[#allocation7 + $0xc8] sm:$0xff]
    %v1338 = vld [vmem:[#allocation7 + $0xd0] sm:$0xff]
    %v1339 = vld [vmem:[#allocation7 + $0xd8] sm:$0xff]
    %v1340 = vld [vmem:[#allocation7 + $0xe0] sm:$0xff]
    %v1341 = vld [vmem:[#allocation7 + $0xe8] sm:$0xff]
    %v1342 = vld [vmem:[#allocation7 + $0xf0] sm:$0xff]
    %v1343 = vld [vmem:[#allocation7 + $0xf8] sm:$0xff]
    %v1376 = vunpack.c.l.b16 %v1312
    %v1377 = vunpack.c.h.b16 %v1312
    %v1378 = vunpack.c.l.b16 %v1313
    %v1379 = vunpack.c.h.b16 %v1313
    %v1380 = vunpack.c.l.b16 %v1314
    %v1381 = vunpack.c.h.b16 %v1314
    %v1382 = vunpack.c.l.b16 %v1315
    %v1383 = vunpack.c.h.b16 %v1315
    %v1384 = vunpack.c.l.b16 %v1316
    %v1385 = vunpack.c.h.b16 %v1316
    %v1386 = vunpack.c.l.b16 %v1317
    %v1387 = vunpack.c.h.b16 %v1317
    %v1388 = vunpack.c.l.b16 %v1318
    %v1389 = vunpack.c.h.b16 %v1318
    %v1390 = vunpack.c.l.b16 %v1319
    %v1391 = vunpack.c.h.b16 %v1319
    %v1392 = vunpack.c.l.b16 %v1320
    %v1393 = vunpack.c.h.b16 %v1320
    %v1394 = vunpack.c.l.b16 %v1321
    %v1395 = vunpack.c.h.b16 %v1321
    %v1396 = vunpack.c.l.b16 %v1322
    %v1397 = vunpack.c.h.b16 %v1322
    %v1398 = vunpack.c.l.b16 %v1323
    %v1399 = vunpack.c.h.b16 %v1323
    %v1400 = vunpack.c.l.b16 %v1324
    %v1401 = vunpack.c.h.b16 %v1324
    %v1402 = vunpack.c.l.b16 %v1325
    %v1403 = vunpack.c.h.b16 %v1325
    %v1404 = vunpack.c.l.b16 %v1326
    %v1405 = vunpack.c.h.b16 %v1326
    %v1406 = vunpack.c.l.b16 %v1327
    %v1407 = vunpack.c.h.b16 %v1327
    %v1408 = vunpack.c.l.b16 %v1328
    %v1409 = vunpack.c.h.b16 %v1328
    %v1410 = vunpack.c.l.b16 %v1329
    %v1411 = vunpack.c.h.b16 %v1329
    %v1412 = vunpack.c.l.b16 %v1330
    %v1413 = vunpack.c.h.b16 %v1330
    %v1414 = vunpack.c.l.b16 %v1331
    %v1415 = vunpack.c.h.b16 %v1331
    %v1416 = vunpack.c.l.b16 %v1332
    %v1417 = vunpack.c.h.b16 %v1332
    %v1418 = vunpack.c.l.b16 %v1333
    %v1419 = vunpack.c.h.b16 %v1333
    %v1420 = vunpack.c.l.b16 %v1334
    %v1421 = vunpack.c.h.b16 %v1334
    %v1422 = vunpack.c.l.b16 %v1335
    %v1423 = vunpack.c.h.b16 %v1335
    %v1424 = vunpack.c.l.b16 %v1336
    %v1425 = vunpack.c.h.b16 %v1336
    %v1426 = vunpack.c.l.b16 %v1337
    %v1427 = vunpack.c.h.b16 %v1337
    %v1428 = vunpack.c.l.b16 %v1338
    %v1429 = vunpack.c.h.b16 %v1338
    %v1430 = vunpack.c.l.b16 %v1339
    %v1431 = vunpack.c.h.b16 %v1339
    %v1432 = vunpack.c.l.b16 %v1340
    %v1433 = vunpack.c.h.b16 %v1340
    %v1434 = vunpack.c.l.b16 %v1341
    %v1435 = vunpack.c.h.b16 %v1341
    %v1436 = vunpack.c.l.b16 %v1342
    %v1437 = vunpack.c.h.b16 %v1342
    %v1438 = vunpack.c.l.b16 %v1343
    %v1439 = vunpack.c.h.b16 %v1343
    %v1440 = vpack.c.b16 %v1380, %v1376
    %v1441 = vpack.c.b16 %v1381, %v1377
    %v1442 = vpack.c.b16 %v1382, %v1378
    %v1443 = vpack.c.b16 %v1383, %v1379
    %v1444 = vpack.c.b16 %v1388, %v1384
    %v1445 = vpack.c.b16 %v1389, %v1385
    %v1446 = vpack.c.b16 %v1390, %v1386
    %v1447 = vpack.c.b16 %v1391, %v1387
    %v1448 = vpack.c.b16 %v1396, %v1392
    %v1449 = vpack.c.b16 %v1397, %v1393
    %v1450 = vpack.c.b16 %v1398, %v1394
    %v1451 = vpack.c.b16 %v1399, %v1395
    %v1452 = vpack.c.b16 %v1404, %v1400
    %v1453 = vpack.c.b16 %v1405, %v1401
    %v1454 = vpack.c.b16 %v1406, %v1402
    %v1455 = vpack.c.b16 %v1407, %v1403
    %v1456 = vpack.c.b16 %v1412, %v1408
    %v1457 = vpack.c.b16 %v1413, %v1409
    %v1458 = vpack.c.b16 %v1414, %v1410
    %v1459 = vpack.c.b16 %v1415, %v1411
    %v1460 = vpack.c.b16 %v1420, %v1416
    %v1461 = vpack.c.b16 %v1421, %v1417
    %v1462 = vpack.c.b16 %v1422, %v1418
    %v1463 = vpack.c.b16 %v1423, %v1419
    %v1464 = vpack.c.b16 %v1428, %v1424
    %v1465 = vpack.c.b16 %v1429, %v1425
    %v1466 = vpack.c.b16 %v1430, %v1426
    %v1467 = vpack.c.b16 %v1431, %v1427
    %v1468 = vpack.c.b16 %v1436, %v1432
    %v1469 = vpack.c.b16 %v1437, %v1433
    %v1470 = vpack.c.b16 %v1438, %v1434
    %v1471 = vpack.c.b16 %v1439, %v1435
    %1504 = vmatpush.bf16.msra.mxu0 %v1468
    %1505 = vmatpush.bf16.msra.mxu0 %v1464
    %1506 = vmatpush.bf16.msra.mxu0 %v1460
    %1507 = vmatpush.bf16.msra.mxu0 %v1456
    %1508 = vmatpush.bf16.msra.mxu0 %v1452
    %1509 = vmatpush.bf16.msra.mxu0 %v1448
    %1510 = vmatpush.bf16.msra.mxu0 %v1444
    %1511 = vmatpush.bf16.msra.mxu0 %v1440
    %1512 = vmatmul.bf16.gmra.mxu0 %v1311
    %v1513 = vpop.f32.mrf.mxu0
    %v1514 = vadd.f32 0.0, %v1513
    %v1515 = vpop.f32.mrf.mxu0
    %1516 = vdwg.mxu0
    %1517 = vmatpush.bf16.msra.mxu0 %v1469
    %1518 = vmatpush.bf16.msra.mxu0 %v1465
    %1519 = vmatpush.bf16.msra.mxu0 %v1461
    %1520 = vmatpush.bf16.msra.mxu0 %v1457
    %1521 = vmatpush.bf16.msra.mxu0 %v1453
    %1522 = vmatpush.bf16.msra.mxu0 %v1449
    %1523 = vmatpush.bf16.msra.mxu0 %v1445
    %1524 = vmatpush.bf16.msra.mxu0 %v1441
    %1525 = vmatmul.bf16.gmra.mxu0 %v1311
    %v1526 = vpop.f32.mrf.mxu0
    %v1527 = vadd.f32 0.0, %v1526
    %v1528 = vpop.f32.mrf.mxu0
    %1529 = vdwg.mxu0
    %1530 = vmatpush.bf16.msra.mxu0 %v1470
    %1531 = vmatpush.bf16.msra.mxu0 %v1466
    %1532 = vmatpush.bf16.msra.mxu0 %v1462
    %1533 = vmatpush.bf16.msra.mxu0 %v1458
    %1534 = vmatpush.bf16.msra.mxu0 %v1454
    %1535 = vmatpush.bf16.msra.mxu0 %v1450
    %1536 = vmatpush.bf16.msra.mxu0 %v1446
    %1537 = vmatpush.bf16.msra.mxu0 %v1442
    %1538 = vmatmul.bf16.gmra.mxu0 %v1311
    %v1539 = vpop.f32.mrf.mxu0
    %v1540 = vadd.f32 0.0, %v1539
    %v1541 = vpop.f32.mrf.mxu0
    %1542 = vdwg.mxu0
    %1543 = vmatpush.bf16.msra.mxu0 %v1471
    %1544 = vmatpush.bf16.msra.mxu0 %v1467
    %1545 = vmatpush.bf16.msra.mxu0 %v1463
    %1546 = vmatpush.bf16.msra.mxu0 %v1459
    %1547 = vmatpush.bf16.msra.mxu0 %v1455
    %1548 = vmatpush.bf16.msra.mxu0 %v1451
    %1549 = vmatpush.bf16.msra.mxu0 %v1447
    %1550 = vmatpush.bf16.msra.mxu0 %v1443
    %1551 = vmatmul.bf16.gmra.mxu0 %v1311
    %v1552 = vpop.f32.mrf.mxu0
    %v1553 = vadd.f32 0.0, %v1552
    %v1554 = vpop.f32.mrf.mxu0
    %1555 = vdwg.mxu0
    %v1556 = vadd.f32 %v1307, %v1514
    %v1557 = vadd.f32 %v1308, %v1527
    %v1558 = vadd.f32 %v1309, %v1540
    %v1559 = vadd.f32 %v1310, %v1553
    %v1560 = vmul.f32 %v1556, 0.5
    %v1561 = vtanh.pop %v1560
    %v1562 = vmul.f32 %v1561, 0.5
    %v1563 = vadd.f32 %v1562, 0.5
    %v1564 = vmul.f32 %v1557, 0.5
    %v1565 = vtanh.pop %v1564
    %v1566 = vmul.f32 %v1565, 0.5
    %v1567 = vadd.f32 %v1566, 0.5
    %v1568 = vtanh.pop %v1558
    %v1569 = vmul.f32 %v1559, 0.5
    %v1570 = vtanh.pop %v1569
    %v1571 = vmul.f32 %v1570, 0.5
    %v1572 = vadd.f32 %v1571, 0.5
    %v1573 = vmul.f32 %v1567, %v1299
    %v1574 = vmul.f32 %v1563, %v1568
    %v1575 = vadd.f32 %v1573, %v1574
    %v1576 = vtanh.pop %v1575
    %v1577 = vmul.f32 %v1572, %v1576
    %s1578 = scalar_lea.vmem [#allocation3], 24
    %1579 = vst [vmem:[%s1578] sm:$0xff] %v1577
    %s1580 = smul.u32 4, 4
    %s1581 = smul.addr %s1580, 8
    %s1582 = scalar_lea.vmem [#allocation2], %s1581
    %v1583 = vld [vmem:[%s1582] sm:$0xff]
    %v1584 = vld [vmem:[%s1582 + $0x8] sm:$0xff]
    %v1585 = vld [vmem:[%s1582 + $0x10] sm:$0xff]
    %v1586 = vld [vmem:[%s1582 + $0x18] sm:$0xff]
    %v1587 = vpack.c.bf16 %v1577, %v1577
    %v1588 = vld [vmem:[#allocation7] sm:$0xff]
    %v1589 = vld [vmem:[#allocation7 + $0x8] sm:$0xff]
    %v1590 = vld [vmem:[#allocation7 + $0x10] sm:$0xff]
    %v1591 = vld [vmem:[#allocation7 + $0x18] sm:$0xff]
    %v1592 = vld [vmem:[#allocation7 + $0x20] sm:$0xff]
    %v1593 = vld [vmem:[#allocation7 + $0x28] sm:$0xff]
    %v1594 = vld [vmem:[#allocation7 + $0x30] sm:$0xff]
    %v1595 = vld [vmem:[#allocation7 + $0x38] sm:$0xff]
    %v1596 = vld [vmem:[#allocation7 + $0x40] sm:$0xff]
    %v1597 = vld [vmem:[#allocation7 + $0x48] sm:$0xff]
    %v1598 = vld [vmem:[#allocation7 + $0x50] sm:$0xff]
    %v1599 = vld [vmem:[#allocation7 + $0x58] sm:$0xff]
    %v1600 = vld [vmem:[#allocation7 + $0x60] sm:$0xff]
    %v1601 = vld [vmem:[#allocation7 + $0x68] sm:$0xff]
    %v1602 = vld [vmem:[#allocation7 + $0x70] sm:$0xff]
    %v1603 = vld [vmem:[#allocation7 + $0x78] sm:$0xff]
    %v1604 = vld [vmem:[#allocation7 + $0x80] sm:$0xff]
    %v1605 = vld [vmem:[#allocation7 + $0x88] sm:$0xff]
    %v1606 = vld [vmem:[#allocation7 + $0x90] sm:$0xff]
    %v1607 = vld [vmem:[#allocation7 + $0x98] sm:$0xff]
    %v1608 = vld [vmem:[#allocation7 + $0xa0] sm:$0xff]
    %v1609 = vld [vmem:[#allocation7 + $0xa8] sm:$0xff]
    %v1610 = vld [vmem:[#allocation7 + $0xb0] sm:$0xff]
    %v1611 = vld [vmem:[#allocation7 + $0xb8] sm:$0xff]
    %v1612 = vld [vmem:[#allocation7 + $0xc0] sm:$0xff]
    %v1613 = vld [vmem:[#allocation7 + $0xc8] sm:$0xff]
    %v1614 = vld [vmem:[#allocation7 + $0xd0] sm:$0xff]
    %v1615 = vld [vmem:[#allocation7 + $0xd8] sm:$0xff]
    %v1616 = vld [vmem:[#allocation7 + $0xe0] sm:$0xff]
    %v1617 = vld [vmem:[#allocation7 + $0xe8] sm:$0xff]
    %v1618 = vld [vmem:[#allocation7 + $0xf0] sm:$0xff]
    %v1619 = vld [vmem:[#allocation7 + $0xf8] sm:$0xff]
    %v1652 = vunpack.c.l.b16 %v1588
    %v1653 = vunpack.c.h.b16 %v1588
    %v1654 = vunpack.c.l.b16 %v1589
    %v1655 = vunpack.c.h.b16 %v1589
    %v1656 = vunpack.c.l.b16 %v1590
    %v1657 = vunpack.c.h.b16 %v1590
    %v1658 = vunpack.c.l.b16 %v1591
    %v1659 = vunpack.c.h.b16 %v1591
    %v1660 = vunpack.c.l.b16 %v1592
    %v1661 = vunpack.c.h.b16 %v1592
    %v1662 = vunpack.c.l.b16 %v1593
    %v1663 = vunpack.c.h.b16 %v1593
    %v1664 = vunpack.c.l.b16 %v1594
    %v1665 = vunpack.c.h.b16 %v1594
    %v1666 = vunpack.c.l.b16 %v1595
    %v1667 = vunpack.c.h.b16 %v1595
    %v1668 = vunpack.c.l.b16 %v1596
    %v1669 = vunpack.c.h.b16 %v1596
    %v1670 = vunpack.c.l.b16 %v1597
    %v1671 = vunpack.c.h.b16 %v1597
    %v1672 = vunpack.c.l.b16 %v1598
    %v1673 = vunpack.c.h.b16 %v1598
    %v1674 = vunpack.c.l.b16 %v1599
    %v1675 = vunpack.c.h.b16 %v1599
    %v1676 = vunpack.c.l.b16 %v1600
    %v1677 = vunpack.c.h.b16 %v1600
    %v1678 = vunpack.c.l.b16 %v1601
    %v1679 = vunpack.c.h.b16 %v1601
    %v1680 = vunpack.c.l.b16 %v1602
    %v1681 = vunpack.c.h.b16 %v1602
    %v1682 = vunpack.c.l.b16 %v1603
    %v1683 = vunpack.c.h.b16 %v1603
    %v1684 = vunpack.c.l.b16 %v1604
    %v1685 = vunpack.c.h.b16 %v1604
    %v1686 = vunpack.c.l.b16 %v1605
    %v1687 = vunpack.c.h.b16 %v1605
    %v1688 = vunpack.c.l.b16 %v1606
    %v1689 = vunpack.c.h.b16 %v1606
    %v1690 = vunpack.c.l.b16 %v1607
    %v1691 = vunpack.c.h.b16 %v1607
    %v1692 = vunpack.c.l.b16 %v1608
    %v1693 = vunpack.c.h.b16 %v1608
    %v1694 = vunpack.c.l.b16 %v1609
    %v1695 = vunpack.c.h.b16 %v1609
    %v1696 = vunpack.c.l.b16 %v1610
    %v1697 = vunpack.c.h.b16 %v1610
    %v1698 = vunpack.c.l.b16 %v1611
    %v1699 = vunpack.c.h.b16 %v1611
    %v1700 = vunpack.c.l.b16 %v1612
    %v1701 = vunpack.c.h.b16 %v1612
    %v1702 = vunpack.c.l.b16 %v1613
    %v1703 = vunpack.c.h.b16 %v1613
    %v1704 = vunpack.c.l.b16 %v1614
    %v1705 = vunpack.c.h.b16 %v1614
    %v1706 = vunpack.c.l.b16 %v1615
    %v1707 = vunpack.c.h.b16 %v1615
    %v1708 = vunpack.c.l.b16 %v1616
    %v1709 = vunpack.c.h.b16 %v1616
    %v1710 = vunpack.c.l.b16 %v1617
    %v1711 = vunpack.c.h.b16 %v1617
    %v1712 = vunpack.c.l.b16 %v1618
    %v1713 = vunpack.c.h.b16 %v1618
    %v1714 = vunpack.c.l.b16 %v1619
    %v1715 = vunpack.c.h.b16 %v1619
    %v1716 = vpack.c.b16 %v1656, %v1652
    %v1717 = vpack.c.b16 %v1657, %v1653
    %v1718 = vpack.c.b16 %v1658, %v1654
    %v1719 = vpack.c.b16 %v1659, %v1655
    %v1720 = vpack.c.b16 %v1664, %v1660
    %v1721 = vpack.c.b16 %v1665, %v1661
    %v1722 = vpack.c.b16 %v1666, %v1662
    %v1723 = vpack.c.b16 %v1667, %v1663
    %v1724 = vpack.c.b16 %v1672, %v1668
    %v1725 = vpack.c.b16 %v1673, %v1669
    %v1726 = vpack.c.b16 %v1674, %v1670
    %v1727 = vpack.c.b16 %v1675, %v1671
    %v1728 = vpack.c.b16 %v1680, %v1676
    %v1729 = vpack.c.b16 %v1681, %v1677
    %v1730 = vpack.c.b16 %v1682, %v1678
    %v1731 = vpack.c.b16 %v1683, %v1679
    %v1732 = vpack.c.b16 %v1688, %v1684
    %v1733 = vpack.c.b16 %v1689, %v1685
    %v1734 = vpack.c.b16 %v1690, %v1686
    %v1735 = vpack.c.b16 %v1691, %v1687
    %v1736 = vpack.c.b16 %v1696, %v1692
    %v1737 = vpack.c.b16 %v1697, %v1693
    %v1738 = vpack.c.b16 %v1698, %v1694
    %v1739 = vpack.c.b16 %v1699, %v1695
    %v1740 = vpack.c.b16 %v1704, %v1700
    %v1741 = vpack.c.b16 %v1705, %v1701
    %v1742 = vpack.c.b16 %v1706, %v1702
    %v1743 = vpack.c.b16 %v1707, %v1703
    %v1744 = vpack.c.b16 %v1712, %v1708
    %v1745 = vpack.c.b16 %v1713, %v1709
    %v1746 = vpack.c.b16 %v1714, %v1710
    %v1747 = vpack.c.b16 %v1715, %v1711
    %1780 = vmatpush.bf16.msra.mxu0 %v1744
    %1781 = vmatpush.bf16.msra.mxu0 %v1740
    %1782 = vmatpush.bf16.msra.mxu0 %v1736
    %1783 = vmatpush.bf16.msra.mxu0 %v1732
    %1784 = vmatpush.bf16.msra.mxu0 %v1728
    %1785 = vmatpush.bf16.msra.mxu0 %v1724
    %1786 = vmatpush.bf16.msra.mxu0 %v1720
    %1787 = vmatpush.bf16.msra.mxu0 %v1716
    %1788 = vmatmul.bf16.gmra.mxu0 %v1587
    %v1789 = vpop.f32.mrf.mxu0
    %v1790 = vadd.f32 0.0, %v1789
    %v1791 = vpop.f32.mrf.mxu0
    %1792 = vdwg.mxu0
    %1793 = vmatpush.bf16.msra.mxu0 %v1745
    %1794 = vmatpush.bf16.msra.mxu0 %v1741
    %1795 = vmatpush.bf16.msra.mxu0 %v1737
    %1796 = vmatpush.bf16.msra.mxu0 %v1733
    %1797 = vmatpush.bf16.msra.mxu0 %v1729
    %1798 = vmatpush.bf16.msra.mxu0 %v1725
    %1799 = vmatpush.bf16.msra.mxu0 %v1721
    %1800 = vmatpush.bf16.msra.mxu0 %v1717
    %1801 = vmatmul.bf16.gmra.mxu0 %v1587
    %v1802 = vpop.f32.mrf.mxu0
    %v1803 = vadd.f32 0.0, %v1802
    %v1804 = vpop.f32.mrf.mxu0
    %1805 = vdwg.mxu0
    %1806 = vmatpush.bf16.msra.mxu0 %v1746
    %1807 = vmatpush.bf16.msra.mxu0 %v1742
    %1808 = vmatpush.bf16.msra.mxu0 %v1738
    %1809 = vmatpush.bf16.msra.mxu0 %v1734
    %1810 = vmatpush.bf16.msra.mxu0 %v1730
    %1811 = vmatpush.bf16.msra.mxu0 %v1726
    %1812 = vmatpush.bf16.msra.mxu0 %v1722
    %1813 = vmatpush.bf16.msra.mxu0 %v1718
    %1814 = vmatmul.bf16.gmra.mxu0 %v1587
    %v1815 = vpop.f32.mrf.mxu0
    %v1816 = vadd.f32 0.0, %v1815
    %v1817 = vpop.f32.mrf.mxu0
    %1818 = vdwg.mxu0
    %1819 = vmatpush.bf16.msra.mxu0 %v1747
    %1820 = vmatpush.bf16.msra.mxu0 %v1743
    %1821 = vmatpush.bf16.msra.mxu0 %v1739
    %1822 = vmatpush.bf16.msra.mxu0 %v1735
    %1823 = vmatpush.bf16.msra.mxu0 %v1731
    %1824 = vmatpush.bf16.msra.mxu0 %v1727
    %1825 = vmatpush.bf16.msra.mxu0 %v1723
    %1826 = vmatpush.bf16.msra.mxu0 %v1719
    %1827 = vmatmul.bf16.gmra.mxu0 %v1587
    %v1828 = vpop.f32.mrf.mxu0
    %v1829 = vadd.f32 0.0, %v1828
    %v1830 = vpop.f32.mrf.mxu0
    %1831 = vdwg.mxu0
    %v1832 = vadd.f32 %v1583, %v1790
    %v1833 = vadd.f32 %v1584, %v1803
    %v1834 = vadd.f32 %v1585, %v1816
    %v1835 = vadd.f32 %v1586, %v1829
    %v1836 = vmul.f32 %v1832, 0.5
    %v1837 = vtanh.pop %v1836
    %v1838 = vmul.f32 %v1837, 0.5
    %v1839 = vadd.f32 %v1838, 0.5
    %v1840 = vmul.f32 %v1833, 0.5
    %v1841 = vtanh.pop %v1840
    %v1842 = vmul.f32 %v1841, 0.5
    %v1843 = vadd.f32 %v1842, 0.5
    %v1844 = vtanh.pop %v1834
    %v1845 = vmul.f32 %v1835, 0.5
    %v1846 = vtanh.pop %v1845
    %v1847 = vmul.f32 %v1846, 0.5
    %v1848 = vadd.f32 %v1847, 0.5
    %v1849 = vmul.f32 %v1843, %v1575
    %v1850 = vmul.f32 %v1839, %v1844
    %v1851 = vadd.f32 %v1849, %v1850
    %v1852 = vtanh.pop %v1851
    %v1853 = vmul.f32 %v1848, %v1852
    %s1854 = scalar_lea.vmem [#allocation3], 32
    %1855 = vst [vmem:[%s1854] sm:$0xff] %v1853
    %s1856 = smul.u32 5, 4
    %s1857 = smul.addr %s1856, 8
    %s1858 = scalar_lea.vmem [#allocation2], %s1857
    %v1859 = vld [vmem:[%s1858] sm:$0xff]
    %v1860 = vld [vmem:[%s1858 + $0x8] sm:$0xff]
    %v1861 = vld [vmem:[%s1858 + $0x10] sm:$0xff]
    %v1862 = vld [vmem:[%s1858 + $0x18] sm:$0xff]
    %v1863 = vpack.c.bf16 %v1853, %v1853
    %v1864 = vld [vmem:[#allocation7] sm:$0xff]
    %v1865 = vld [vmem:[#allocation7 + $0x8] sm:$0xff]
    %v1866 = vld [vmem:[#allocation7 + $0x10] sm:$0xff]
    %v1867 = vld [vmem:[#allocation7 + $0x18] sm:$0xff]
    %v1868 = vld [vmem:[#allocation7 + $0x20] sm:$0xff]
    %v1869 = vld [vmem:[#allocation7 + $0x28] sm:$0xff]
    %v1870 = vld [vmem:[#allocation7 + $0x30] sm:$0xff]
    %v1871 = vld [vmem:[#allocation7 + $0x38] sm:$0xff]
    %v1872 = vld [vmem:[#allocation7 + $0x40] sm:$0xff]
    %v1873 = vld [vmem:[#allocation7 + $0x48] sm:$0xff]
    %v1874 = vld [vmem:[#allocation7 + $0x50] sm:$0xff]
    %v1875 = vld [vmem:[#allocation7 + $0x58] sm:$0xff]
    %v1876 = vld [vmem:[#allocation7 + $0x60] sm:$0xff]
    %v1877 = vld [vmem:[#allocation7 + $0x68] sm:$0xff]
    %v1878 = vld [vmem:[#allocation7 + $0x70] sm:$0xff]
    %v1879 = vld [vmem:[#allocation7 + $0x78] sm:$0xff]
    %v1880 = vld [vmem:[#allocation7 + $0x80] sm:$0xff]
    %v1881 = vld [vmem:[#allocation7 + $0x88] sm:$0xff]
    %v1882 = vld [vmem:[#allocation7 + $0x90] sm:$0xff]
    %v1883 = vld [vmem:[#allocation7 + $0x98] sm:$0xff]
    %v1884 = vld [vmem:[#allocation7 + $0xa0] sm:$0xff]
    %v1885 = vld [vmem:[#allocation7 + $0xa8] sm:$0xff]
    %v1886 = vld [vmem:[#allocation7 + $0xb0] sm:$0xff]
    %v1887 = vld [vmem:[#allocation7 + $0xb8] sm:$0xff]
    %v1888 = vld [vmem:[#allocation7 + $0xc0] sm:$0xff]
    %v1889 = vld [vmem:[#allocation7 + $0xc8] sm:$0xff]
    %v1890 = vld [vmem:[#allocation7 + $0xd0] sm:$0xff]
    %v1891 = vld [vmem:[#allocation7 + $0xd8] sm:$0xff]
    %v1892 = vld [vmem:[#allocation7 + $0xe0] sm:$0xff]
    %v1893 = vld [vmem:[#allocation7 + $0xe8] sm:$0xff]
    %v1894 = vld [vmem:[#allocation7 + $0xf0] sm:$0xff]
    %v1895 = vld [vmem:[#allocation7 + $0xf8] sm:$0xff]
    %v1928 = vunpack.c.l.b16 %v1864
    %v1929 = vunpack.c.h.b16 %v1864
    %v1930 = vunpack.c.l.b16 %v1865
    %v1931 = vunpack.c.h.b16 %v1865
    %v1932 = vunpack.c.l.b16 %v1866
    %v1933 = vunpack.c.h.b16 %v1866
    %v1934 = vunpack.c.l.b16 %v1867
    %v1935 = vunpack.c.h.b16 %v1867
    %v1936 = vunpack.c.l.b16 %v1868
    %v1937 = vunpack.c.h.b16 %v1868
    %v1938 = vunpack.c.l.b16 %v1869
    %v1939 = vunpack.c.h.b16 %v1869
    %v1940 = vunpack.c.l.b16 %v1870
    %v1941 = vunpack.c.h.b16 %v1870
    %v1942 = vunpack.c.l.b16 %v1871
    %v1943 = vunpack.c.h.b16 %v1871
    %v1944 = vunpack.c.l.b16 %v1872
    %v1945 = vunpack.c.h.b16 %v1872
    %v1946 = vunpack.c.l.b16 %v1873
    %v1947 = vunpack.c.h.b16 %v1873
    %v1948 = vunpack.c.l.b16 %v1874
    %v1949 = vunpack.c.h.b16 %v1874
    %v1950 = vunpack.c.l.b16 %v1875
    %v1951 = vunpack.c.h.b16 %v1875
    %v1952 = vunpack.c.l.b16 %v1876
    %v1953 = vunpack.c.h.b16 %v1876
    %v1954 = vunpack.c.l.b16 %v1877
    %v1955 = vunpack.c.h.b16 %v1877
    %v1956 = vunpack.c.l.b16 %v1878
    %v1957 = vunpack.c.h.b16 %v1878
    %v1958 = vunpack.c.l.b16 %v1879
    %v1959 = vunpack.c.h.b16 %v1879
    %v1960 = vunpack.c.l.b16 %v1880
    %v1961 = vunpack.c.h.b16 %v1880
    %v1962 = vunpack.c.l.b16 %v1881
    %v1963 = vunpack.c.h.b16 %v1881
    %v1964 = vunpack.c.l.b16 %v1882
    %v1965 = vunpack.c.h.b16 %v1882
    %v1966 = vunpack.c.l.b16 %v1883
    %v1967 = vunpack.c.h.b16 %v1883
    %v1968 = vunpack.c.l.b16 %v1884
    %v1969 = vunpack.c.h.b16 %v1884
    %v1970 = vunpack.c.l.b16 %v1885
    %v1971 = vunpack.c.h.b16 %v1885
    %v1972 = vunpack.c.l.b16 %v1886
    %v1973 = vunpack.c.h.b16 %v1886
    %v1974 = vunpack.c.l.b16 %v1887
    %v1975 = vunpack.c.h.b16 %v1887
    %v1976 = vunpack.c.l.b16 %v1888
    %v1977 = vunpack.c.h.b16 %v1888
    %v1978 = vunpack.c.l.b16 %v1889
    %v1979 = vunpack.c.h.b16 %v1889
    %v1980 = vunpack.c.l.b16 %v1890
    %v1981 = vunpack.c.h.b16 %v1890
    %v1982 = vunpack.c.l.b16 %v1891
    %v1983 = vunpack.c.h.b16 %v1891
    %v1984 = vunpack.c.l.b16 %v1892
    %v1985 = vunpack.c.h.b16 %v1892
    %v1986 = vunpack.c.l.b16 %v1893
    %v1987 = vunpack.c.h.b16 %v1893
    %v1988 = vunpack.c.l.b16 %v1894
    %v1989 = vunpack.c.h.b16 %v1894
    %v1990 = vunpack.c.l.b16 %v1895
    %v1991 = vunpack.c.h.b16 %v1895
    %v1992 = vpack.c.b16 %v1932, %v1928
    %v1993 = vpack.c.b16 %v1933, %v1929
    %v1994 = vpack.c.b16 %v1934, %v1930
    %v1995 = vpack.c.b16 %v1935, %v1931
    %v1996 = vpack.c.b16 %v1940, %v1936
    %v1997 = vpack.c.b16 %v1941, %v1937
    %v1998 = vpack.c.b16 %v1942, %v1938
    %v1999 = vpack.c.b16 %v1943, %v1939
    %v2000 = vpack.c.b16 %v1948, %v1944
    %v2001 = vpack.c.b16 %v1949, %v1945
    %v2002 = vpack.c.b16 %v1950, %v1946
    %v2003 = vpack.c.b16 %v1951, %v1947
    %v2004 = vpack.c.b16 %v1956, %v1952
    %v2005 = vpack.c.b16 %v1957, %v1953
    %v2006 = vpack.c.b16 %v1958, %v1954
    %v2007 = vpack.c.b16 %v1959, %v1955
    %v2008 = vpack.c.b16 %v1964, %v1960
    %v2009 = vpack.c.b16 %v1965, %v1961
    %v2010 = vpack.c.b16 %v1966, %v1962
    %v2011 = vpack.c.b16 %v1967, %v1963
    %v2012 = vpack.c.b16 %v1972, %v1968
    %v2013 = vpack.c.b16 %v1973, %v1969
    %v2014 = vpack.c.b16 %v1974, %v1970
    %v2015 = vpack.c.b16 %v1975, %v1971
    %v2016 = vpack.c.b16 %v1980, %v1976
    %v2017 = vpack.c.b16 %v1981, %v1977
    %v2018 = vpack.c.b16 %v1982, %v1978
    %v2019 = vpack.c.b16 %v1983, %v1979
    %v2020 = vpack.c.b16 %v1988, %v1984
    %v2021 = vpack.c.b16 %v1989, %v1985
    %v2022 = vpack.c.b16 %v1990, %v1986
    %v2023 = vpack.c.b16 %v1991, %v1987
    %2056 = vmatpush.bf16.msra.mxu0 %v2020
    %2057 = vmatpush.bf16.msra.mxu0 %v2016
    %2058 = vmatpush.bf16.msra.mxu0 %v2012
    %2059 = vmatpush.bf16.msra.mxu0 %v2008
    %2060 = vmatpush.bf16.msra.mxu0 %v2004
    %2061 = vmatpush.bf16.msra.mxu0 %v2000
    %2062 = vmatpush.bf16.msra.mxu0 %v1996
    %2063 = vmatpush.bf16.msra.mxu0 %v1992
    %2064 = vmatmul.bf16.gmra.mxu0 %v1863
    %v2065 = vpop.f32.mrf.mxu0
    %v2066 = vadd.f32 0.0, %v2065
    %v2067 = vpop.f32.mrf.mxu0
    %2068 = vdwg.mxu0
    %2069 = vmatpush.bf16.msra.mxu0 %v2021
    %2070 = vmatpush.bf16.msra.mxu0 %v2017
    %2071 = vmatpush.bf16.msra.mxu0 %v2013
    %2072 = vmatpush.bf16.msra.mxu0 %v2009
    %2073 = vmatpush.bf16.msra.mxu0 %v2005
    %2074 = vmatpush.bf16.msra.mxu0 %v2001
    %2075 = vmatpush.bf16.msra.mxu0 %v1997
    %2076 = vmatpush.bf16.msra.mxu0 %v1993
    %2077 = vmatmul.bf16.gmra.mxu0 %v1863
    %v2078 = vpop.f32.mrf.mxu0
    %v2079 = vadd.f32 0.0, %v2078
    %v2080 = vpop.f32.mrf.mxu0
    %2081 = vdwg.mxu0
    %2082 = vmatpush.bf16.msra.mxu0 %v2022
    %2083 = vmatpush.bf16.msra.mxu0 %v2018
    %2084 = vmatpush.bf16.msra.mxu0 %v2014
    %2085 = vmatpush.bf16.msra.mxu0 %v2010
    %2086 = vmatpush.bf16.msra.mxu0 %v2006
    %2087 = vmatpush.bf16.msra.mxu0 %v2002
    %2088 = vmatpush.bf16.msra.mxu0 %v1998
    %2089 = vmatpush.bf16.msra.mxu0 %v1994
    %2090 = vmatmul.bf16.gmra.mxu0 %v1863
    %v2091 = vpop.f32.mrf.mxu0
    %v2092 = vadd.f32 0.0, %v2091
    %v2093 = vpop.f32.mrf.mxu0
    %2094 = vdwg.mxu0
    %2095 = vmatpush.bf16.msra.mxu0 %v2023
    %2096 = vmatpush.bf16.msra.mxu0 %v2019
    %2097 = vmatpush.bf16.msra.mxu0 %v2015
    %2098 = vmatpush.bf16.msra.mxu0 %v2011
    %2099 = vmatpush.bf16.msra.mxu0 %v2007
    %2100 = vmatpush.bf16.msra.mxu0 %v2003
    %2101 = vmatpush.bf16.msra.mxu0 %v1999
    %2102 = vmatpush.bf16.msra.mxu0 %v1995
    %2103 = vmatmul.bf16.gmra.mxu0 %v1863
    %v2104 = vpop.f32.mrf.mxu0
    %v2105 = vadd.f32 0.0, %v2104
    %v2106 = vpop.f32.mrf.mxu0
    %2107 = vdwg.mxu0
    %v2108 = vadd.f32 %v1859, %v2066
    %v2109 = vadd.f32 %v1860, %v2079
    %v2110 = vadd.f32 %v1861, %v2092
    %v2111 = vadd.f32 %v1862, %v2105
    %v2112 = vmul.f32 %v2108, 0.5
    %v2113 = vtanh.pop %v2112
    %v2114 = vmul.f32 %v2113, 0.5
    %v2115 = vadd.f32 %v2114, 0.5
    %v2116 = vmul.f32 %v2109, 0.5
    %v2117 = vtanh.pop %v2116
    %v2118 = vmul.f32 %v2117, 0.5
    %v2119 = vadd.f32 %v2118, 0.5
    %v2120 = vtanh.pop %v2110
    %v2121 = vmul.f32 %v2111, 0.5
    %v2122 = vtanh.pop %v2121
    %v2123 = vmul.f32 %v2122, 0.5
    %v2124 = vadd.f32 %v2123, 0.5
    %v2125 = vmul.f32 %v2119, %v1851
    %v2126 = vmul.f32 %v2115, %v2120
    %v2127 = vadd.f32 %v2125, %v2126
    %v2128 = vtanh.pop %v2127
    %v2129 = vmul.f32 %v2124, %v2128
    %s2130 = scalar_lea.vmem [#allocation3], 40
    %2131 = vst [vmem:[%s2130] sm:$0xff] %v2129
    %s2132 = smul.u32 6, 4
    %s2133 = smul.addr %s2132, 8
    %s2134 = scalar_lea.vmem [#allocation2], %s2133
    %v2135 = vld [vmem:[%s2134] sm:$0xff]
    %v2136 = vld [vmem:[%s2134 + $0x8] sm:$0xff]
    %v2137 = vld [vmem:[%s2134 + $0x10] sm:$0xff]
    %v2138 = vld [vmem:[%s2134 + $0x18] sm:$0xff]
    %v2139 = vpack.c.bf16 %v2129, %v2129
    %v2140 = vld [vmem:[#allocation7] sm:$0xff]
    %v2141 = vld [vmem:[#allocation7 + $0x8] sm:$0xff]
    %v2142 = vld [vmem:[#allocation7 + $0x10] sm:$0xff]
    %v2143 = vld [vmem:[#allocation7 + $0x18] sm:$0xff]
    %v2144 = vld [vmem:[#allocation7 + $0x20] sm:$0xff]
    %v2145 = vld [vmem:[#allocation7 + $0x28] sm:$0xff]
    %v2146 = vld [vmem:[#allocation7 + $0x30] sm:$0xff]
    %v2147 = vld [vmem:[#allocation7 + $0x38] sm:$0xff]
    %v2148 = vld [vmem:[#allocation7 + $0x40] sm:$0xff]
    %v2149 = vld [vmem:[#allocation7 + $0x48] sm:$0xff]
    %v2150 = vld [vmem:[#allocation7 + $0x50] sm:$0xff]
    %v2151 = vld [vmem:[#allocation7 + $0x58] sm:$0xff]
    %v2152 = vld [vmem:[#allocation7 + $0x60] sm:$0xff]
    %v2153 = vld [vmem:[#allocation7 + $0x68] sm:$0xff]
    %v2154 = vld [vmem:[#allocation7 + $0x70] sm:$0xff]
    %v2155 = vld [vmem:[#allocation7 + $0x78] sm:$0xff]
    %v2156 = vld [vmem:[#allocation7 + $0x80] sm:$0xff]
    %v2157 = vld [vmem:[#allocation7 + $0x88] sm:$0xff]
    %v2158 = vld [vmem:[#allocation7 + $0x90] sm:$0xff]
    %v2159 = vld [vmem:[#allocation7 + $0x98] sm:$0xff]
    %v2160 = vld [vmem:[#allocation7 + $0xa0] sm:$0xff]
    %v2161 = vld [vmem:[#allocation7 + $0xa8] sm:$0xff]
    %v2162 = vld [vmem:[#allocation7 + $0xb0] sm:$0xff]
    %v2163 = vld [vmem:[#allocation7 + $0xb8] sm:$0xff]
    %v2164 = vld [vmem:[#allocation7 + $0xc0] sm:$0xff]
    %v2165 = vld [vmem:[#allocation7 + $0xc8] sm:$0xff]
    %v2166 = vld [vmem:[#allocation7 + $0xd0] sm:$0xff]
    %v2167 = vld [vmem:[#allocation7 + $0xd8] sm:$0xff]
    %v2168 = vld [vmem:[#allocation7 + $0xe0] sm:$0xff]
    %v2169 = vld [vmem:[#allocation7 + $0xe8] sm:$0xff]
    %v2170 = vld [vmem:[#allocation7 + $0xf0] sm:$0xff]
    %v2171 = vld [vmem:[#allocation7 + $0xf8] sm:$0xff]
    %v2204 = vunpack.c.l.b16 %v2140
    %v2205 = vunpack.c.h.b16 %v2140
    %v2206 = vunpack.c.l.b16 %v2141
    %v2207 = vunpack.c.h.b16 %v2141
    %v2208 = vunpack.c.l.b16 %v2142
    %v2209 = vunpack.c.h.b16 %v2142
    %v2210 = vunpack.c.l.b16 %v2143
    %v2211 = vunpack.c.h.b16 %v2143
    %v2212 = vunpack.c.l.b16 %v2144
    %v2213 = vunpack.c.h.b16 %v2144
    %v2214 = vunpack.c.l.b16 %v2145
    %v2215 = vunpack.c.h.b16 %v2145
    %v2216 = vunpack.c.l.b16 %v2146
    %v2217 = vunpack.c.h.b16 %v2146
    %v2218 = vunpack.c.l.b16 %v2147
    %v2219 = vunpack.c.h.b16 %v2147
    %v2220 = vunpack.c.l.b16 %v2148
    %v2221 = vunpack.c.h.b16 %v2148
    %v2222 = vunpack.c.l.b16 %v2149
    %v2223 = vunpack.c.h.b16 %v2149
    %v2224 = vunpack.c.l.b16 %v2150
    %v2225 = vunpack.c.h.b16 %v2150
    %v2226 = vunpack.c.l.b16 %v2151
    %v2227 = vunpack.c.h.b16 %v2151
    %v2228 = vunpack.c.l.b16 %v2152
    %v2229 = vunpack.c.h.b16 %v2152
    %v2230 = vunpack.c.l.b16 %v2153
    %v2231 = vunpack.c.h.b16 %v2153
    %v2232 = vunpack.c.l.b16 %v2154
    %v2233 = vunpack.c.h.b16 %v2154
    %v2234 = vunpack.c.l.b16 %v2155
    %v2235 = vunpack.c.h.b16 %v2155
    %v2236 = vunpack.c.l.b16 %v2156
    %v2237 = vunpack.c.h.b16 %v2156
    %v2238 = vunpack.c.l.b16 %v2157
    %v2239 = vunpack.c.h.b16 %v2157
    %v2240 = vunpack.c.l.b16 %v2158
    %v2241 = vunpack.c.h.b16 %v2158
    %v2242 = vunpack.c.l.b16 %v2159
    %v2243 = vunpack.c.h.b16 %v2159
    %v2244 = vunpack.c.l.b16 %v2160
    %v2245 = vunpack.c.h.b16 %v2160
    %v2246 = vunpack.c.l.b16 %v2161
    %v2247 = vunpack.c.h.b16 %v2161
    %v2248 = vunpack.c.l.b16 %v2162
    %v2249 = vunpack.c.h.b16 %v2162
    %v2250 = vunpack.c.l.b16 %v2163
    %v2251 = vunpack.c.h.b16 %v2163
    %v2252 = vunpack.c.l.b16 %v2164
    %v2253 = vunpack.c.h.b16 %v2164
    %v2254 = vunpack.c.l.b16 %v2165
    %v2255 = vunpack.c.h.b16 %v2165
    %v2256 = vunpack.c.l.b16 %v2166
    %v2257 = vunpack.c.h.b16 %v2166
    %v2258 = vunpack.c.l.b16 %v2167
    %v2259 = vunpack.c.h.b16 %v2167
    %v2260 = vunpack.c.l.b16 %v2168
    %v2261 = vunpack.c.h.b16 %v2168
    %v2262 = vunpack.c.l.b16 %v2169
    %v2263 = vunpack.c.h.b16 %v2169
    %v2264 = vunpack.c.l.b16 %v2170
    %v2265 = vunpack.c.h.b16 %v2170
    %v2266 = vunpack.c.l.b16 %v2171
    %v2267 = vunpack.c.h.b16 %v2171
    %v2268 = vpack.c.b16 %v2208, %v2204
    %v2269 = vpack.c.b16 %v2209, %v2205
    %v2270 = vpack.c.b16 %v2210, %v2206
    %v2271 = vpack.c.b16 %v2211, %v2207
    %v2272 = vpack.c.b16 %v2216, %v2212
    %v2273 = vpack.c.b16 %v2217, %v2213
    %v2274 = vpack.c.b16 %v2218, %v2214
    %v2275 = vpack.c.b16 %v2219, %v2215
    %v2276 = vpack.c.b16 %v2224, %v2220
    %v2277 = vpack.c.b16 %v2225, %v2221
    %v2278 = vpack.c.b16 %v2226, %v2222
    %v2279 = vpack.c.b16 %v2227, %v2223
    %v2280 = vpack.c.b16 %v2232, %v2228
    %v2281 = vpack.c.b16 %v2233, %v2229
    %v2282 = vpack.c.b16 %v2234, %v2230
    %v2283 = vpack.c.b16 %v2235, %v2231
    %v2284 = vpack.c.b16 %v2240, %v2236
    %v2285 = vpack.c.b16 %v2241, %v2237
    %v2286 = vpack.c.b16 %v2242, %v2238
    %v2287 = vpack.c.b16 %v2243, %v2239
    %v2288 = vpack.c.b16 %v2248, %v2244
    %v2289 = vpack.c.b16 %v2249, %v2245
    %v2290 = vpack.c.b16 %v2250, %v2246
    %v2291 = vpack.c.b16 %v2251, %v2247
    %v2292 = vpack.c.b16 %v2256, %v2252
    %v2293 = vpack.c.b16 %v2257, %v2253
    %v2294 = vpack.c.b16 %v2258, %v2254
    %v2295 = vpack.c.b16 %v2259, %v2255
    %v2296 = vpack.c.b16 %v2264, %v2260
    %v2297 = vpack.c.b16 %v2265, %v2261
    %v2298 = vpack.c.b16 %v2266, %v2262
    %v2299 = vpack.c.b16 %v2267, %v2263
    %2332 = vmatpush.bf16.msra.mxu0 %v2296
    %2333 = vmatpush.bf16.msra.mxu0 %v2292
    %2334 = vmatpush.bf16.msra.mxu0 %v2288
    %2335 = vmatpush.bf16.msra.mxu0 %v2284
    %2336 = vmatpush.bf16.msra.mxu0 %v2280
    %2337 = vmatpush.bf16.msra.mxu0 %v2276
    %2338 = vmatpush.bf16.msra.mxu0 %v2272
    %2339 = vmatpush.bf16.msra.mxu0 %v2268
    %2340 = vmatmul.bf16.gmra.mxu0 %v2139
    %v2341 = vpop.f32.mrf.mxu0
    %v2342 = vadd.f32 0.0, %v2341
    %v2343 = vpop.f32.mrf.mxu0
    %2344 = vdwg.mxu0
    %2345 = vmatpush.bf16.msra.mxu0 %v2297
    %2346 = vmatpush.bf16.msra.mxu0 %v2293
    %2347 = vmatpush.bf16.msra.mxu0 %v2289
    %2348 = vmatpush.bf16.msra.mxu0 %v2285
    %2349 = vmatpush.bf16.msra.mxu0 %v2281
    %2350 = vmatpush.bf16.msra.mxu0 %v2277
    %2351 = vmatpush.bf16.msra.mxu0 %v2273
    %2352 = vmatpush.bf16.msra.mxu0 %v2269
    %2353 = vmatmul.bf16.gmra.mxu0 %v2139
    %v2354 = vpop.f32.mrf.mxu0
    %v2355 = vadd.f32 0.0, %v2354
    %v2356 = vpop.f32.mrf.mxu0
    %2357 = vdwg.mxu0
    %2358 = vmatpush.bf16.msra.mxu0 %v2298
    %2359 = vmatpush.bf16.msra.mxu0 %v2294
    %2360 = vmatpush.bf16.msra.mxu0 %v2290
    %2361 = vmatpush.bf16.msra.mxu0 %v2286
    %2362 = vmatpush.bf16.msra.mxu0 %v2282
    %2363 = vmatpush.bf16.msra.mxu0 %v2278
    %2364 = vmatpush.bf16.msra.mxu0 %v2274
    %2365 = vmatpush.bf16.msra.mxu0 %v2270
    %2366 = vmatmul.bf16.gmra.mxu0 %v2139
    %v2367 = vpop.f32.mrf.mxu0
    %v2368 = vadd.f32 0.0, %v2367
    %v2369 = vpop.f32.mrf.mxu0
    %2370 = vdwg.mxu0
    %2371 = vmatpush.bf16.msra.mxu0 %v2299
    %2372 = vmatpush.bf16.msra.mxu0 %v2295
    %2373 = vmatpush.bf16.msra.mxu0 %v2291
    %2374 = vmatpush.bf16.msra.mxu0 %v2287
    %2375 = vmatpush.bf16.msra.mxu0 %v2283
    %2376 = vmatpush.bf16.msra.mxu0 %v2279
    %2377 = vmatpush.bf16.msra.mxu0 %v2275
    %2378 = vmatpush.bf16.msra.mxu0 %v2271
    %2379 = vmatmul.bf16.gmra.mxu0 %v2139
    %v2380 = vpop.f32.mrf.mxu0
    %v2381 = vadd.f32 0.0, %v2380
    %v2382 = vpop.f32.mrf.mxu0
    %2383 = vdwg.mxu0
    %v2384 = vadd.f32 %v2135, %v2342
    %v2385 = vadd.f32 %v2136, %v2355
    %v2386 = vadd.f32 %v2137, %v2368
    %v2387 = vadd.f32 %v2138, %v2381
    %v2388 = vmul.f32 %v2384, 0.5
    %v2389 = vtanh.pop %v2388
    %v2390 = vmul.f32 %v2389, 0.5
    %v2391 = vadd.f32 %v2390, 0.5
    %v2392 = vmul.f32 %v2385, 0.5
    %v2393 = vtanh.pop %v2392
    %v2394 = vmul.f32 %v2393, 0.5
    %v2395 = vadd.f32 %v2394, 0.5
    %v2396 = vtanh.pop %v2386
    %v2397 = vmul.f32 %v2387, 0.5
    %v2398 = vtanh.pop %v2397
    %v2399 = vmul.f32 %v2398, 0.5
    %v2400 = vadd.f32 %v2399, 0.5
    %v2401 = vmul.f32 %v2395, %v2127
    %v2402 = vmul.f32 %v2391, %v2396
    %v2403 = vadd.f32 %v2401, %v2402
    %v2404 = vtanh.pop %v2403
    %v2405 = vmul.f32 %v2400, %v2404
    %s2406 = scalar_lea.vmem [#allocation3], 48
    %2407 = vst [vmem:[%s2406] sm:$0xff] %v2405
    %s2408 = smul.u32 7, 4
    %s2409 = smul.addr %s2408, 8
    %s2410 = scalar_lea.vmem [#allocation2], %s2409
    %v2411 = vld [vmem:[%s2410] sm:$0xff]
    %v2412 = vld [vmem:[%s2410 + $0x8] sm:$0xff]
    %v2413 = vld [vmem:[%s2410 + $0x10] sm:$0xff]
    %v2414 = vld [vmem:[%s2410 + $0x18] sm:$0xff]
    %v2415 = vpack.c.bf16 %v2405, %v2405
    %v2416 = vld [vmem:[#allocation7] sm:$0xff]
    %v2417 = vld [vmem:[#allocation7 + $0x8] sm:$0xff]
    %v2418 = vld [vmem:[#allocation7 + $0x10] sm:$0xff]
    %v2419 = vld [vmem:[#allocation7 + $0x18] sm:$0xff]
    %v2420 = vld [vmem:[#allocation7 + $0x20] sm:$0xff]
    %v2421 = vld [vmem:[#allocation7 + $0x28] sm:$0xff]
    %v2422 = vld [vmem:[#allocation7 + $0x30] sm:$0xff]
    %v2423 = vld [vmem:[#allocation7 + $0x38] sm:$0xff]
    %v2424 = vld [vmem:[#allocation7 + $0x40] sm:$0xff]
    %v2425 = vld [vmem:[#allocation7 + $0x48] sm:$0xff]
    %v2426 = vld [vmem:[#allocation7 + $0x50] sm:$0xff]
    %v2427 = vld [vmem:[#allocation7 + $0x58] sm:$0xff]
    %v2428 = vld [vmem:[#allocation7 + $0x60] sm:$0xff]
    %v2429 = vld [vmem:[#allocation7 + $0x68] sm:$0xff]
    %v2430 = vld [vmem:[#allocation7 + $0x70] sm:$0xff]
    %v2431 = vld [vmem:[#allocation7 + $0x78] sm:$0xff]
    %v2432 = vld [vmem:[#allocation7 + $0x80] sm:$0xff]
    %v2433 = vld [vmem:[#allocation7 + $0x88] sm:$0xff]
    %v2434 = vld [vmem:[#allocation7 + $0x90] sm:$0xff]
    %v2435 = vld [vmem:[#allocation7 + $0x98] sm:$0xff]
    %v2436 = vld [vmem:[#allocation7 + $0xa0] sm:$0xff]
    %v2437 = vld [vmem:[#allocation7 + $0xa8] sm:$0xff]
    %v2438 = vld [vmem:[#allocation7 + $0xb0] sm:$0xff]
    %v2439 = vld [vmem:[#allocation7 + $0xb8] sm:$0xff]
    %v2440 = vld [vmem:[#allocation7 + $0xc0] sm:$0xff]
    %v2441 = vld [vmem:[#allocation7 + $0xc8] sm:$0xff]
    %v2442 = vld [vmem:[#allocation7 + $0xd0] sm:$0xff]
    %v2443 = vld [vmem:[#allocation7 + $0xd8] sm:$0xff]
    %v2444 = vld [vmem:[#allocation7 + $0xe0] sm:$0xff]
    %v2445 = vld [vmem:[#allocation7 + $0xe8] sm:$0xff]
    %v2446 = vld [vmem:[#allocation7 + $0xf0] sm:$0xff]
    %v2447 = vld [vmem:[#allocation7 + $0xf8] sm:$0xff]
    %v2480 = vunpack.c.l.b16 %v2416
    %v2481 = vunpack.c.h.b16 %v2416
    %v2482 = vunpack.c.l.b16 %v2417
    %v2483 = vunpack.c.h.b16 %v2417
    %v2484 = vunpack.c.l.b16 %v2418
    %v2485 = vunpack.c.h.b16 %v2418
    %v2486 = vunpack.c.l.b16 %v2419
    %v2487 = vunpack.c.h.b16 %v2419
    %v2488 = vunpack.c.l.b16 %v2420
    %v2489 = vunpack.c.h.b16 %v2420
    %v2490 = vunpack.c.l.b16 %v2421
    %v2491 = vunpack.c.h.b16 %v2421
    %v2492 = vunpack.c.l.b16 %v2422
    %v2493 = vunpack.c.h.b16 %v2422
    %v2494 = vunpack.c.l.b16 %v2423
    %v2495 = vunpack.c.h.b16 %v2423
    %v2496 = vunpack.c.l.b16 %v2424
    %v2497 = vunpack.c.h.b16 %v2424
    %v2498 = vunpack.c.l.b16 %v2425
    %v2499 = vunpack.c.h.b16 %v2425
    %v2500 = vunpack.c.l.b16 %v2426
    %v2501 = vunpack.c.h.b16 %v2426
    %v2502 = vunpack.c.l.b16 %v2427
    %v2503 = vunpack.c.h.b16 %v2427
    %v2504 = vunpack.c.l.b16 %v2428
    %v2505 = vunpack.c.h.b16 %v2428
    %v2506 = vunpack.c.l.b16 %v2429
    %v2507 = vunpack.c.h.b16 %v2429
    %v2508 = vunpack.c.l.b16 %v2430
    %v2509 = vunpack.c.h.b16 %v2430
    %v2510 = vunpack.c.l.b16 %v2431
    %v2511 = vunpack.c.h.b16 %v2431
    %v2512 = vunpack.c.l.b16 %v2432
    %v2513 = vunpack.c.h.b16 %v2432
    %v2514 = vunpack.c.l.b16 %v2433
    %v2515 = vunpack.c.h.b16 %v2433
    %v2516 = vunpack.c.l.b16 %v2434
    %v2517 = vunpack.c.h.b16 %v2434
    %v2518 = vunpack.c.l.b16 %v2435
    %v2519 = vunpack.c.h.b16 %v2435
    %v2520 = vunpack.c.l.b16 %v2436
    %v2521 = vunpack.c.h.b16 %v2436
    %v2522 = vunpack.c.l.b16 %v2437
    %v2523 = vunpack.c.h.b16 %v2437
    %v2524 = vunpack.c.l.b16 %v2438
    %v2525 = vunpack.c.h.b16 %v2438
    %v2526 = vunpack.c.l.b16 %v2439
    %v2527 = vunpack.c.h.b16 %v2439
    %v2528 = vunpack.c.l.b16 %v2440
    %v2529 = vunpack.c.h.b16 %v2440
    %v2530 = vunpack.c.l.b16 %v2441
    %v2531 = vunpack.c.h.b16 %v2441
    %v2532 = vunpack.c.l.b16 %v2442
    %v2533 = vunpack.c.h.b16 %v2442
    %v2534 = vunpack.c.l.b16 %v2443
    %v2535 = vunpack.c.h.b16 %v2443
    %v2536 = vunpack.c.l.b16 %v2444
    %v2537 = vunpack.c.h.b16 %v2444
    %v2538 = vunpack.c.l.b16 %v2445
    %v2539 = vunpack.c.h.b16 %v2445
    %v2540 = vunpack.c.l.b16 %v2446
    %v2541 = vunpack.c.h.b16 %v2446
    %v2542 = vunpack.c.l.b16 %v2447
    %v2543 = vunpack.c.h.b16 %v2447
    %v2544 = vpack.c.b16 %v2484, %v2480
    %v2545 = vpack.c.b16 %v2485, %v2481
    %v2546 = vpack.c.b16 %v2486, %v2482
    %v2547 = vpack.c.b16 %v2487, %v2483
    %v2548 = vpack.c.b16 %v2492, %v2488
    %v2549 = vpack.c.b16 %v2493, %v2489
    %v2550 = vpack.c.b16 %v2494, %v2490
    %v2551 = vpack.c.b16 %v2495, %v2491
    %v2552 = vpack.c.b16 %v2500, %v2496
    %v2553 = vpack.c.b16 %v2501, %v2497
    %v2554 = vpack.c.b16 %v2502, %v2498
    %v2555 = vpack.c.b16 %v2503, %v2499
    %v2556 = vpack.c.b16 %v2508, %v2504
    %v2557 = vpack.c.b16 %v2509, %v2505
    %v2558 = vpack.c.b16 %v2510, %v2506
    %v2559 = vpack.c.b16 %v2511, %v2507
    %v2560 = vpack.c.b16 %v2516, %v2512
    %v2561 = vpack.c.b16 %v2517, %v2513
    %v2562 = vpack.c.b16 %v2518, %v2514
    %v2563 = vpack.c.b16 %v2519, %v2515
    %v2564 = vpack.c.b16 %v2524, %v2520
    %v2565 = vpack.c.b16 %v2525, %v2521
    %v2566 = vpack.c.b16 %v2526, %v2522
    %v2567 = vpack.c.b16 %v2527, %v2523
    %v2568 = vpack.c.b16 %v2532, %v2528
    %v2569 = vpack.c.b16 %v2533, %v2529
    %v2570 = vpack.c.b16 %v2534, %v2530
    %v2571 = vpack.c.b16 %v2535, %v2531
    %v2572 = vpack.c.b16 %v2540, %v2536
    %v2573 = vpack.c.b16 %v2541, %v2537
    %v2574 = vpack.c.b16 %v2542, %v2538
    %v2575 = vpack.c.b16 %v2543, %v2539
    %2608 = vmatpush.bf16.msra.mxu0 %v2572
    %2609 = vmatpush.bf16.msra.mxu0 %v2568
    %2610 = vmatpush.bf16.msra.mxu0 %v2564
    %2611 = vmatpush.bf16.msra.mxu0 %v2560
    %2612 = vmatpush.bf16.msra.mxu0 %v2556
    %2613 = vmatpush.bf16.msra.mxu0 %v2552
    %2614 = vmatpush.bf16.msra.mxu0 %v2548
    %2615 = vmatpush.bf16.msra.mxu0 %v2544
    %2616 = vmatmul.bf16.gmra.mxu0 %v2415
    %v2617 = vpop.f32.mrf.mxu0
    %v2618 = vadd.f32 0.0, %v2617
    %v2619 = vpop.f32.mrf.mxu0
    %2620 = vdwg.mxu0
    %2621 = vmatpush.bf16.msra.mxu0 %v2573
    %2622 = vmatpush.bf16.msra.mxu0 %v2569
    %2623 = vmatpush.bf16.msra.mxu0 %v2565
    %2624 = vmatpush.bf16.msra.mxu0 %v2561
    %2625 = vmatpush.bf16.msra.mxu0 %v2557
    %2626 = vmatpush.bf16.msra.mxu0 %v2553
    %2627 = vmatpush.bf16.msra.mxu0 %v2549
    %2628 = vmatpush.bf16.msra.mxu0 %v2545
    %2629 = vmatmul.bf16.gmra.mxu0 %v2415
    %v2630 = vpop.f32.mrf.mxu0
    %v2631 = vadd.f32 0.0, %v2630
    %v2632 = vpop.f32.mrf.mxu0
    %2633 = vdwg.mxu0
    %2634 = vmatpush.bf16.msra.mxu0 %v2574
    %2635 = vmatpush.bf16.msra.mxu0 %v2570
    %2636 = vmatpush.bf16.msra.mxu0 %v2566
    %2637 = vmatpush.bf16.msra.mxu0 %v2562
    %2638 = vmatpush.bf16.msra.mxu0 %v2558
    %2639 = vmatpush.bf16.msra.mxu0 %v2554
    %2640 = vmatpush.bf16.msra.mxu0 %v2550
    %2641 = vmatpush.bf16.msra.mxu0 %v2546
    %2642 = vmatmul.bf16.gmra.mxu0 %v2415
    %v2643 = vpop.f32.mrf.mxu0
    %v2644 = vadd.f32 0.0, %v2643
    %v2645 = vpop.f32.mrf.mxu0
    %2646 = vdwg.mxu0
    %2647 = vmatpush.bf16.msra.mxu0 %v2575
    %2648 = vmatpush.bf16.msra.mxu0 %v2571
    %2649 = vmatpush.bf16.msra.mxu0 %v2567
    %2650 = vmatpush.bf16.msra.mxu0 %v2563
    %2651 = vmatpush.bf16.msra.mxu0 %v2559
    %2652 = vmatpush.bf16.msra.mxu0 %v2555
    %2653 = vmatpush.bf16.msra.mxu0 %v2551
    %2654 = vmatpush.bf16.msra.mxu0 %v2547
    %2655 = vmatmul.bf16.gmra.mxu0 %v2415
    %v2656 = vpop.f32.mrf.mxu0
    %v2657 = vadd.f32 0.0, %v2656
    %v2658 = vpop.f32.mrf.mxu0
    %2659 = vdwg.mxu0
    %v2660 = vadd.f32 %v2411, %v2618
    %v2661 = vadd.f32 %v2412, %v2631
    %v2662 = vadd.f32 %v2413, %v2644
    %v2663 = vadd.f32 %v2414, %v2657
    %v2664 = vmul.f32 %v2660, 0.5
    %v2665 = vtanh.pop %v2664
    %v2666 = vmul.f32 %v2665, 0.5
    %v2667 = vadd.f32 %v2666, 0.5
    %v2668 = vmul.f32 %v2661, 0.5
    %v2669 = vtanh.pop %v2668
    %v2670 = vmul.f32 %v2669, 0.5
    %v2671 = vadd.f32 %v2670, 0.5
    %v2672 = vtanh.pop %v2662
    %v2673 = vmul.f32 %v2663, 0.5
    %v2674 = vtanh.pop %v2673
    %v2675 = vmul.f32 %v2674, 0.5
    %v2676 = vadd.f32 %v2675, 0.5
    %v2677 = vmul.f32 %v2671, %v2403
    %v2678 = vmul.f32 %v2667, %v2672
    %v2679 = vadd.f32 %v2677, %v2678
    %v2680 = vtanh.pop %v2679
    %v2681 = vmul.f32 %v2676, %v2680
    %s2682 = scalar_lea.vmem [#allocation3], 56
    %2683 = vst [vmem:[%s2682] sm:$0xff] %v2681
    %v2684 = vld [vmem:[#allocation3] sm:$0xff]
    %v2685 = vld [vmem:[#allocation3 + $0x8] sm:$0xff]
    %v2686 = vld [vmem:[#allocation3 + $0x10] sm:$0xff]
    %v2687 = vld [vmem:[#allocation3 + $0x18] sm:$0xff]
    %v2688 = vld [vmem:[#allocation3 + $0x20] sm:$0xff]
    %v2689 = vld [vmem:[#allocation3 + $0x28] sm:$0xff]
    %v2690 = vld [vmem:[#allocation3 + $0x30] sm:$0xff]
    %v2691 = vld [vmem:[#allocation3 + $0x38] sm:$0xff]
    %v2692 = vpack.c.bf16 %v2685, %v2684
    %v2693 = vpack.c.bf16 %v2687, %v2686
    %v2694 = vpack.c.bf16 %v2689, %v2688
    %v2695 = vpack.c.bf16 %v2691, %v2690
    %v2696 = vld [vmem:[#allocation9] sm:$0xff]
    %v2697 = vld [vmem:[#allocation9 + $0x8] sm:$0xff]
    %v2698 = vld [vmem:[#allocation9 + $0x10] sm:$0xff]
    %v2699 = vld [vmem:[#allocation9 + $0x18] sm:$0xff]
    %v2700 = vld [vmem:[#allocation9 + $0x20] sm:$0xff]
    %v2701 = vld [vmem:[#allocation9 + $0x28] sm:$0xff]
    %v2702 = vld [vmem:[#allocation9 + $0x30] sm:$0xff]
    %v2703 = vld [vmem:[#allocation9 + $0x38] sm:$0xff]
    %v2704 = vld [vmem:[#allocation9 + $0x40] sm:$0xff]
    %v2705 = vld [vmem:[#allocation9 + $0x48] sm:$0xff]
    %v2706 = vld [vmem:[#allocation9 + $0x50] sm:$0xff]
    %v2707 = vld [vmem:[#allocation9 + $0x58] sm:$0xff]
    %v2708 = vld [vmem:[#allocation9 + $0x60] sm:$0xff]
    %v2709 = vld [vmem:[#allocation9 + $0x68] sm:$0xff]
    %v2710 = vld [vmem:[#allocation9 + $0x70] sm:$0xff]
    %v2711 = vld [vmem:[#allocation9 + $0x78] sm:$0xff]
    %v2712 = vld [vmem:[#allocation9 + $0x80] sm:$0xff]
    %v2713 = vld [vmem:[#allocation9 + $0x88] sm:$0xff]
    %v2714 = vld [vmem:[#allocation9 + $0x90] sm:$0xff]
    %v2715 = vld [vmem:[#allocation9 + $0x98] sm:$0xff]
    %v2716 = vld [vmem:[#allocation9 + $0xa0] sm:$0xff]
    %v2717 = vld [vmem:[#allocation9 + $0xa8] sm:$0xff]
    %v2718 = vld [vmem:[#allocation9 + $0xb0] sm:$0xff]
    %v2719 = vld [vmem:[#allocation9 + $0xb8] sm:$0xff]
    %v2720 = vld [vmem:[#allocation9 + $0xc0] sm:$0xff]
    %v2721 = vld [vmem:[#allocation9 + $0xc8] sm:$0xff]
    %v2722 = vld [vmem:[#allocation9 + $0xd0] sm:$0xff]
    %v2723 = vld [vmem:[#allocation9 + $0xd8] sm:$0xff]
    %v2724 = vld [vmem:[#allocation9 + $0xe0] sm:$0xff]
    %v2725 = vld [vmem:[#allocation9 + $0xe8] sm:$0xff]
    %v2726 = vld [vmem:[#allocation9 + $0xf0] sm:$0xff]
    %v2727 = vld [vmem:[#allocation9 + $0xf8] sm:$0xff]
    %v2728 = vld [vmem:[%s6] sm:$0xf]
    %v2730 = vperm.slane %v2728, 0
    %v2731 = vperm.slane %v2728, 1
    %v2732 = vperm.slane %v2728, 2
    %v2733 = vperm.slane %v2728, 3
    %v2770 = vunpack.c.l.b16 %v2696
    %v2771 = vunpack.c.h.b16 %v2696
    %v2772 = vunpack.c.l.b16 %v2697
    %v2773 = vunpack.c.h.b16 %v2697
    %v2774 = vunpack.c.l.b16 %v2698
    %v2775 = vunpack.c.h.b16 %v2698
    %v2776 = vunpack.c.l.b16 %v2699
    %v2777 = vunpack.c.h.b16 %v2699
    %v2778 = vunpack.c.l.b16 %v2700
    %v2779 = vunpack.c.h.b16 %v2700
    %v2780 = vunpack.c.l.b16 %v2701
    %v2781 = vunpack.c.h.b16 %v2701
    %v2782 = vunpack.c.l.b16 %v2702
    %v2783 = vunpack.c.h.b16 %v2702
    %v2784 = vunpack.c.l.b16 %v2703
    %v2785 = vunpack.c.h.b16 %v2703
    %v2786 = vunpack.c.l.b16 %v2704
    %v2787 = vunpack.c.h.b16 %v2704
    %v2788 = vunpack.c.l.b16 %v2705
    %v2789 = vunpack.c.h.b16 %v2705
    %v2790 = vunpack.c.l.b16 %v2706
    %v2791 = vunpack.c.h.b16 %v2706
    %v2792 = vunpack.c.l.b16 %v2707
    %v2793 = vunpack.c.h.b16 %v2707
    %v2794 = vunpack.c.l.b16 %v2708
    %v2795 = vunpack.c.h.b16 %v2708
    %v2796 = vunpack.c.l.b16 %v2709
    %v2797 = vunpack.c.h.b16 %v2709
    %v2798 = vunpack.c.l.b16 %v2710
    %v2799 = vunpack.c.h.b16 %v2710
    %v2800 = vunpack.c.l.b16 %v2711
    %v2801 = vunpack.c.h.b16 %v2711
    %v2802 = vunpack.c.l.b16 %v2712
    %v2803 = vunpack.c.h.b16 %v2712
    %v2804 = vunpack.c.l.b16 %v2713
    %v2805 = vunpack.c.h.b16 %v2713
    %v2806 = vunpack.c.l.b16 %v2714
    %v2807 = vunpack.c.h.b16 %v2714
    %v2808 = vunpack.c.l.b16 %v2715
    %v2809 = vunpack.c.h.b16 %v2715
    %v2810 = vunpack.c.l.b16 %v2716
    %v2811 = vunpack.c.h.b16 %v2716
    %v2812 = vunpack.c.l.b16 %v2717
    %v2813 = vunpack.c.h.b16 %v2717
    %v2814 = vunpack.c.l.b16 %v2718
    %v2815 = vunpack.c.h.b16 %v2718
    %v2816 = vunpack.c.l.b16 %v2719
    %v2817 = vunpack.c.h.b16 %v2719
    %v2818 = vunpack.c.l.b16 %v2720
    %v2819 = vunpack.c.h.b16 %v2720
    %v2820 = vunpack.c.l.b16 %v2721
    %v2821 = vunpack.c.h.b16 %v2721
    %v2822 = vunpack.c.l.b16 %v2722
    %v2823 = vunpack.c.h.b16 %v2722
    %v2824 = vunpack.c.l.b16 %v2723
    %v2825 = vunpack.c.h.b16 %v2723
    %v2826 = vunpack.c.l.b16 %v2724
    %v2827 = vunpack.c.h.b16 %v2724
    %v2828 = vunpack.c.l.b16 %v2725
    %v2829 = vunpack.c.h.b16 %v2725
    %v2830 = vunpack.c.l.b16 %v2726
    %v2831 = vunpack.c.h.b16 %v2726
    %v2832 = vunpack.c.l.b16 %v2727
    %v2833 = vunpack.c.h.b16 %v2727
    %v2834 = vpack.c.b16 %v2774, %v2770
    %v2835 = vpack.c.b16 %v2775, %v2771
    %v2836 = vpack.c.b16 %v2776, %v2772
    %v2837 = vpack.c.b16 %v2777, %v2773
    %v2838 = vpack.c.b16 %v2782, %v2778
    %v2839 = vpack.c.b16 %v2783, %v2779
    %v2840 = vpack.c.b16 %v2784, %v2780
    %v2841 = vpack.c.b16 %v2785, %v2781
    %v2842 = vpack.c.b16 %v2790, %v2786
    %v2843 = vpack.c.b16 %v2791, %v2787
    %v2844 = vpack.c.b16 %v2792, %v2788
    %v2845 = vpack.c.b16 %v2793, %v2789
    %v2846 = vpack.c.b16 %v2798, %v2794
    %v2847 = vpack.c.b16 %v2799, %v2795
    %v2848 = vpack.c.b16 %v2800, %v2796
    %v2849 = vpack.c.b16 %v2801, %v2797
    %v2850 = vpack.c.b16 %v2806, %v2802
    %v2851 = vpack.c.b16 %v2807, %v2803
    %v2852 = vpack.c.b16 %v2808, %v2804
    %v2853 = vpack.c.b16 %v2809, %v2805
    %v2854 = vpack.c.b16 %v2814, %v2810
    %v2855 = vpack.c.b16 %v2815, %v2811
    %v2856 = vpack.c.b16 %v2816, %v2812
    %v2857 = vpack.c.b16 %v2817, %v2813
    %v2858 = vpack.c.b16 %v2822, %v2818
    %v2859 = vpack.c.b16 %v2823, %v2819
    %v2860 = vpack.c.b16 %v2824, %v2820
    %v2861 = vpack.c.b16 %v2825, %v2821
    %v2862 = vpack.c.b16 %v2830, %v2826
    %v2863 = vpack.c.b16 %v2831, %v2827
    %v2864 = vpack.c.b16 %v2832, %v2828
    %v2865 = vpack.c.b16 %v2833, %v2829
    %2898 = vmatpush.bf16.msra.mxu0 %v2862
    %2899 = vmatpush.bf16.msra.mxu0 %v2858
    %2900 = vmatpush.bf16.msra.mxu0 %v2854
    %2901 = vmatpush.bf16.msra.mxu0 %v2850
    %2902 = vmatpush.bf16.msra.mxu0 %v2846
    %2903 = vmatpush.bf16.msra.mxu0 %v2842
    %2904 = vmatpush.bf16.msra.mxu0 %v2838
    %2905 = vmatpush.bf16.msra.mxu0 %v2834
    %2906 = vmatmul.bf16.gmra.mxu0 %v2692
    %v2907 = vpop.f32.mrf.mxu0
    %v2908 = vadd.f32 %v2730, %v2907
    %v2909 = vpop.f32.mrf.mxu0
    %v2910 = vadd.f32 %v2730, %v2909
    %2911 = vmatmul.bf16.gmra.mxu0 %v2693
    %v2912 = vpop.f32.mrf.mxu0
    %v2913 = vadd.f32 %v2730, %v2912
    %v2914 = vpop.f32.mrf.mxu0
    %v2915 = vadd.f32 %v2730, %v2914
    %2916 = vmatmul.bf16.gmra.mxu0 %v2694
    %v2917 = vpop.f32.mrf.mxu0
    %v2918 = vadd.f32 %v2730, %v2917
    %v2919 = vpop.f32.mrf.mxu0
    %v2920 = vadd.f32 %v2730, %v2919
    %2921 = vmatmul.bf16.gmra.mxu0 %v2695
    %v2922 = vpop.f32.mrf.mxu0
    %v2923 = vadd.f32 %v2730, %v2922
    %v2924 = vpop.f32.mrf.mxu0
    %v2925 = vadd.f32 %v2730, %v2924
    %2926 = vdwg.mxu0
    %2927 = vmatpush.bf16.msra.mxu0 %v2863
    %2928 = vmatpush.bf16.msra.mxu0 %v2859
    %2929 = vmatpush.bf16.msra.mxu0 %v2855
    %2930 = vmatpush.bf16.msra.mxu0 %v2851
    %2931 = vmatpush.bf16.msra.mxu0 %v2847
    %2932 = vmatpush.bf16.msra.mxu0 %v2843
    %2933 = vmatpush.bf16.msra.mxu0 %v2839
    %2934 = vmatpush.bf16.msra.mxu0 %v2835
    %2935 = vmatmul.bf16.gmra.mxu0 %v2692
    %v2936 = vpop.f32.mrf.mxu0
    %v2937 = vadd.f32 %v2731, %v2936
    %v2938 = vpop.f32.mrf.mxu0
    %v2939 = vadd.f32 %v2731, %v2938
    %2940 = vmatmul.bf16.gmra.mxu0 %v2693
    %v2941 = vpop.f32.mrf.mxu0
    %v2942 = vadd.f32 %v2731, %v2941
    %v2943 = vpop.f32.mrf.mxu0
    %v2944 = vadd.f32 %v2731, %v2943
    %2945 = vmatmul.bf16.gmra.mxu0 %v2694
    %v2946 = vpop.f32.mrf.mxu0
    %v2947 = vadd.f32 %v2731, %v2946
    %v2948 = vpop.f32.mrf.mxu0
    %v2949 = vadd.f32 %v2731, %v2948
    %2950 = vmatmul.bf16.gmra.mxu0 %v2695
    %v2951 = vpop.f32.mrf.mxu0
    %v2952 = vadd.f32 %v2731, %v2951
    %v2953 = vpop.f32.mrf.mxu0
    %v2954 = vadd.f32 %v2731, %v2953
    %2955 = vdwg.mxu0
    %2956 = vmatpush.bf16.msra.mxu0 %v2864
    %2957 = vmatpush.bf16.msra.mxu0 %v2860
    %2958 = vmatpush.bf16.msra.mxu0 %v2856
    %2959 = vmatpush.bf16.msra.mxu0 %v2852
    %2960 = vmatpush.bf16.msra.mxu0 %v2848
    %2961 = vmatpush.bf16.msra.mxu0 %v2844
    %2962 = vmatpush.bf16.msra.mxu0 %v2840
    %2963 = vmatpush.bf16.msra.mxu0 %v2836
    %2964 = vmatmul.bf16.gmra.mxu0 %v2692
    %v2965 = vpop.f32.mrf.mxu0
    %v2966 = vadd.f32 %v2732, %v2965
    %v2967 = vpop.f32.mrf.mxu0
    %v2968 = vadd.f32 %v2732, %v2967
    %2969 = vmatmul.bf16.gmra.mxu0 %v2693
    %v2970 = vpop.f32.mrf.mxu0
    %v2971 = vadd.f32 %v2732, %v2970
    %v2972 = vpop.f32.mrf.mxu0
    %v2973 = vadd.f32 %v2732, %v2972
    %2974 = vmatmul.bf16.gmra.mxu0 %v2694
    %v2975 = vpop.f32.mrf.mxu0
    %v2976 = vadd.f32 %v2732, %v2975
    %v2977 = vpop.f32.mrf.mxu0
    %v2978 = vadd.f32 %v2732, %v2977
    %2979 = vmatmul.bf16.gmra.mxu0 %v2695
    %v2980 = vpop.f32.mrf.mxu0
    %v2981 = vadd.f32 %v2732, %v2980
    %v2982 = vpop.f32.mrf.mxu0
    %v2983 = vadd.f32 %v2732, %v2982
    %2984 = vdwg.mxu0
    %2985 = vmatpush.bf16.msra.mxu0 %v2865
    %2986 = vmatpush.bf16.msra.mxu0 %v2861
    %2987 = vmatpush.bf16.msra.mxu0 %v2857
    %2988 = vmatpush.bf16.msra.mxu0 %v2853
    %2989 = vmatpush.bf16.msra.mxu0 %v2849
    %2990 = vmatpush.bf16.msra.mxu0 %v2845
    %2991 = vmatpush.bf16.msra.mxu0 %v2841
    %2992 = vmatpush.bf16.msra.mxu0 %v2837
    %2993 = vmatmul.bf16.gmra.mxu0 %v2692
    %v2994 = vpop.f32.mrf.mxu0
    %v2995 = vadd.f32 %v2733, %v2994
    %v2996 = vpop.f32.mrf.mxu0
    %v2997 = vadd.f32 %v2733, %v2996
    %2998 = vmatmul.bf16.gmra.mxu0 %v2693
    %v2999 = vpop.f32.mrf.mxu0
    %v3000 = vadd.f32 %v2733, %v2999
    %v3001 = vpop.f32.mrf.mxu0
    %v3002 = vadd.f32 %v2733, %v3001
    %3003 = vmatmul.bf16.gmra.mxu0 %v2694
    %v3004 = vpop.f32.mrf.mxu0
    %v3005 = vadd.f32 %v2733, %v3004
    %v3006 = vpop.f32.mrf.mxu0
    %v3007 = vadd.f32 %v2733, %v3006
    %3008 = vmatmul.bf16.gmra.mxu0 %v2695
    %v3009 = vpop.f32.mrf.mxu0
    %v3010 = vadd.f32 %v2733, %v3009
    %v3011 = vpop.f32.mrf.mxu0
    %v3012 = vadd.f32 %v2733, %v3011
    %3013 = vdwg.mxu0
    %3014 = vst [vmem:[#allocation2] sm:$0xff] %v2908
    %3015 = vst [vmem:[#allocation2 + $0x8] sm:$0xff] %v2937
    %3016 = vst [vmem:[#allocation2 + $0x10] sm:$0xff] %v2966
    %3017 = vst [vmem:[#allocation2 + $0x18] sm:$0xff] %v2995
    %3018 = vst [vmem:[#allocation2 + $0x20] sm:$0xff] %v2910
    %3019 = vst [vmem:[#allocation2 + $0x28] sm:$0xff] %v2939
    %3020 = vst [vmem:[#allocation2 + $0x30] sm:$0xff] %v2968
    %3021 = vst [vmem:[#allocation2 + $0x38] sm:$0xff] %v2997
    %3022 = vst [vmem:[#allocation2 + $0x40] sm:$0xff] %v2913
    %3023 = vst [vmem:[#allocation2 + $0x48] sm:$0xff] %v2942
    %3024 = vst [vmem:[#allocation2 + $0x50] sm:$0xff] %v2971
    %3025 = vst [vmem:[#allocation2 + $0x58] sm:$0xff] %v3000
    %3026 = vst [vmem:[#allocation2 + $0x60] sm:$0xff] %v2915
    %3027 = vst [vmem:[#allocation2 + $0x68] sm:$0xff] %v2944
    %3028 = vst [vmem:[#allocation2 + $0x70] sm:$0xff] %v2973
    %3029 = vst [vmem:[#allocation2 + $0x78] sm:$0xff] %v3002
    %3030 = vst [vmem:[#allocation2 + $0x80] sm:$0xff] %v2918
    %3031 = vst [vmem:[#allocation2 + $0x88] sm:$0xff] %v2947
    %3032 = vst [vmem:[#allocation2 + $0x90] sm:$0xff] %v2976
    %3033 = vst [vmem:[#allocation2 + $0x98] sm:$0xff] %v3005
    %3034 = vst [vmem:[#allocation2 + $0xa0] sm:$0xff] %v2920
    %3035 = vst [vmem:[#allocation2 + $0xa8] sm:$0xff] %v2949
    %3036 = vst [vmem:[#allocation2 + $0xb0] sm:$0xff] %v2978
    %3037 = vst [vmem:[#allocation2 + $0xb8] sm:$0xff] %v3007
    %3038 = vst [vmem:[#allocation2 + $0xc0] sm:$0xff] %v2923
    %3039 = vst [vmem:[#allocation2 + $0xc8] sm:$0xff] %v2952
    %3040 = vst [vmem:[#allocation2 + $0xd0] sm:$0xff] %v2981
    %3041 = vst [vmem:[#allocation2 + $0xd8] sm:$0xff] %v3010
    %3042 = vst [vmem:[#allocation2 + $0xe0] sm:$0xff] %v2925
    %3043 = vst [vmem:[#allocation2 + $0xe8] sm:$0xff] %v2954
    %3044 = vst [vmem:[#allocation2 + $0xf0] sm:$0xff] %v2983
    %3045 = vst [vmem:[#allocation2 + $0xf8] sm:$0xff] %v3012
    %v3046 = vld [vmem:[%s480] sm:$0xff]
    %v3047 = vld [vmem:[%s480 + $0x8] sm:$0xff]
    %v3048 = vld [vmem:[%s480 + $0x10] sm:$0xff]
    %v3049 = vld [vmem:[%s480 + $0x18] sm:$0xff]
    %v3050 = vld [vmem:[#allocation10] sm:$0xff]
    %v3051 = vld [vmem:[#allocation10 + $0x8] sm:$0xff]
    %v3052 = vld [vmem:[#allocation10 + $0x10] sm:$0xff]
    %v3053 = vld [vmem:[#allocation10 + $0x18] sm:$0xff]
    %v3054 = vld [vmem:[#allocation10 + $0x20] sm:$0xff]
    %v3055 = vld [vmem:[#allocation10 + $0x28] sm:$0xff]
    %v3056 = vld [vmem:[#allocation10 + $0x30] sm:$0xff]
    %v3057 = vld [vmem:[#allocation10 + $0x38] sm:$0xff]
    %v3058 = vld [vmem:[#allocation10 + $0x40] sm:$0xff]
    %v3059 = vld [vmem:[#allocation10 + $0x48] sm:$0xff]
    %v3060 = vld [vmem:[#allocation10 + $0x50] sm:$0xff]
    %v3061 = vld [vmem:[#allocation10 + $0x58] sm:$0xff]
    %v3062 = vld [vmem:[#allocation10 + $0x60] sm:$0xff]
    %v3063 = vld [vmem:[#allocation10 + $0x68] sm:$0xff]
    %v3064 = vld [vmem:[#allocation10 + $0x70] sm:$0xff]
    %v3065 = vld [vmem:[#allocation10 + $0x78] sm:$0xff]
    %v3066 = vld [vmem:[#allocation10 + $0x80] sm:$0xff]
    %v3067 = vld [vmem:[#allocation10 + $0x88] sm:$0xff]
    %v3068 = vld [vmem:[#allocation10 + $0x90] sm:$0xff]
    %v3069 = vld [vmem:[#allocation10 + $0x98] sm:$0xff]
    %v3070 = vld [vmem:[#allocation10 + $0xa0] sm:$0xff]
    %v3071 = vld [vmem:[#allocation10 + $0xa8] sm:$0xff]
    %v3072 = vld [vmem:[#allocation10 + $0xb0] sm:$0xff]
    %v3073 = vld [vmem:[#allocation10 + $0xb8] sm:$0xff]
    %v3074 = vld [vmem:[#allocation10 + $0xc0] sm:$0xff]
    %v3075 = vld [vmem:[#allocation10 + $0xc8] sm:$0xff]
    %v3076 = vld [vmem:[#allocation10 + $0xd0] sm:$0xff]
    %v3077 = vld [vmem:[#allocation10 + $0xd8] sm:$0xff]
    %v3078 = vld [vmem:[#allocation10 + $0xe0] sm:$0xff]
    %v3079 = vld [vmem:[#allocation10 + $0xe8] sm:$0xff]
    %v3080 = vld [vmem:[#allocation10 + $0xf0] sm:$0xff]
    %v3081 = vld [vmem:[#allocation10 + $0xf8] sm:$0xff]
    %v3114 = vunpack.c.l.b16 %v3050
    %v3115 = vunpack.c.h.b16 %v3050
    %v3116 = vunpack.c.l.b16 %v3051
    %v3117 = vunpack.c.h.b16 %v3051
    %v3118 = vunpack.c.l.b16 %v3052
    %v3119 = vunpack.c.h.b16 %v3052
    %v3120 = vunpack.c.l.b16 %v3053
    %v3121 = vunpack.c.h.b16 %v3053
    %v3122 = vunpack.c.l.b16 %v3054
    %v3123 = vunpack.c.h.b16 %v3054
    %v3124 = vunpack.c.l.b16 %v3055
    %v3125 = vunpack.c.h.b16 %v3055
    %v3126 = vunpack.c.l.b16 %v3056
    %v3127 = vunpack.c.h.b16 %v3056
    %v3128 = vunpack.c.l.b16 %v3057
    %v3129 = vunpack.c.h.b16 %v3057
    %v3130 = vunpack.c.l.b16 %v3058
    %v3131 = vunpack.c.h.b16 %v3058
    %v3132 = vunpack.c.l.b16 %v3059
    %v3133 = vunpack.c.h.b16 %v3059
    %v3134 = vunpack.c.l.b16 %v3060
    %v3135 = vunpack.c.h.b16 %v3060
    %v3136 = vunpack.c.l.b16 %v3061
    %v3137 = vunpack.c.h.b16 %v3061
    %v3138 = vunpack.c.l.b16 %v3062
    %v3139 = vunpack.c.h.b16 %v3062
    %v3140 = vunpack.c.l.b16 %v3063
    %v3141 = vunpack.c.h.b16 %v3063
    %v3142 = vunpack.c.l.b16 %v3064
    %v3143 = vunpack.c.h.b16 %v3064
    %v3144 = vunpack.c.l.b16 %v3065
    %v3145 = vunpack.c.h.b16 %v3065
    %v3146 = vunpack.c.l.b16 %v3066
    %v3147 = vunpack.c.h.b16 %v3066
    %v3148 = vunpack.c.l.b16 %v3067
    %v3149 = vunpack.c.h.b16 %v3067
    %v3150 = vunpack.c.l.b16 %v3068
    %v3151 = vunpack.c.h.b16 %v3068
    %v3152 = vunpack.c.l.b16 %v3069
    %v3153 = vunpack.c.h.b16 %v3069
    %v3154 = vunpack.c.l.b16 %v3070
    %v3155 = vunpack.c.h.b16 %v3070
    %v3156 = vunpack.c.l.b16 %v3071
    %v3157 = vunpack.c.h.b16 %v3071
    %v3158 = vunpack.c.l.b16 %v3072
    %v3159 = vunpack.c.h.b16 %v3072
    %v3160 = vunpack.c.l.b16 %v3073
    %v3161 = vunpack.c.h.b16 %v3073
    %v3162 = vunpack.c.l.b16 %v3074
    %v3163 = vunpack.c.h.b16 %v3074
    %v3164 = vunpack.c.l.b16 %v3075
    %v3165 = vunpack.c.h.b16 %v3075
    %v3166 = vunpack.c.l.b16 %v3076
    %v3167 = vunpack.c.h.b16 %v3076
    %v3168 = vunpack.c.l.b16 %v3077
    %v3169 = vunpack.c.h.b16 %v3077
    %v3170 = vunpack.c.l.b16 %v3078
    %v3171 = vunpack.c.h.b16 %v3078
    %v3172 = vunpack.c.l.b16 %v3079
    %v3173 = vunpack.c.h.b16 %v3079
    %v3174 = vunpack.c.l.b16 %v3080
    %v3175 = vunpack.c.h.b16 %v3080
    %v3176 = vunpack.c.l.b16 %v3081
    %v3177 = vunpack.c.h.b16 %v3081
    %v3178 = vpack.c.b16 %v3118, %v3114
    %v3179 = vpack.c.b16 %v3119, %v3115
    %v3180 = vpack.c.b16 %v3120, %v3116
    %v3181 = vpack.c.b16 %v3121, %v3117
    %v3182 = vpack.c.b16 %v3126, %v3122
    %v3183 = vpack.c.b16 %v3127, %v3123
    %v3184 = vpack.c.b16 %v3128, %v3124
    %v3185 = vpack.c.b16 %v3129, %v3125
    %v3186 = vpack.c.b16 %v3134, %v3130
    %v3187 = vpack.c.b16 %v3135, %v3131
    %v3188 = vpack.c.b16 %v3136, %v3132
    %v3189 = vpack.c.b16 %v3137, %v3133
    %v3190 = vpack.c.b16 %v3142, %v3138
    %v3191 = vpack.c.b16 %v3143, %v3139
    %v3192 = vpack.c.b16 %v3144, %v3140
    %v3193 = vpack.c.b16 %v3145, %v3141
    %v3194 = vpack.c.b16 %v3150, %v3146
    %v3195 = vpack.c.b16 %v3151, %v3147
    %v3196 = vpack.c.b16 %v3152, %v3148
    %v3197 = vpack.c.b16 %v3153, %v3149
    %v3198 = vpack.c.b16 %v3158, %v3154
    %v3199 = vpack.c.b16 %v3159, %v3155
    %v3200 = vpack.c.b16 %v3160, %v3156
    %v3201 = vpack.c.b16 %v3161, %v3157
    %v3202 = vpack.c.b16 %v3166, %v3162
    %v3203 = vpack.c.b16 %v3167, %v3163
    %v3204 = vpack.c.b16 %v3168, %v3164
    %v3205 = vpack.c.b16 %v3169, %v3165
    %v3206 = vpack.c.b16 %v3174, %v3170
    %v3207 = vpack.c.b16 %v3175, %v3171
    %v3208 = vpack.c.b16 %v3176, %v3172
    %v3209 = vpack.c.b16 %v3177, %v3173
    %3242 = vmatpush.bf16.msra.mxu0 %v3206
    %3243 = vmatpush.bf16.msra.mxu0 %v3202
    %3244 = vmatpush.bf16.msra.mxu0 %v3198
    %3245 = vmatpush.bf16.msra.mxu0 %v3194
    %3246 = vmatpush.bf16.msra.mxu0 %v3190
    %3247 = vmatpush.bf16.msra.mxu0 %v3186
    %3248 = vmatpush.bf16.msra.mxu0 %v3182
    %3249 = vmatpush.bf16.msra.mxu0 %v3178
    %3250 = vmatmul.bf16.gmra.mxu0 0
    %v3251 = vpop.f32.mrf.mxu0
    %v3252 = vadd.f32 0.0, %v3251
    %v3253 = vpop.f32.mrf.mxu0
    %3254 = vdwg.mxu0
    %3255 = vmatpush.bf16.msra.mxu0 %v3207
    %3256 = vmatpush.bf16.msra.mxu0 %v3203
    %3257 = vmatpush.bf16.msra.mxu0 %v3199
    %3258 = vmatpush.bf16.msra.mxu0 %v3195
    %3259 = vmatpush.bf16.msra.mxu0 %v3191
    %3260 = vmatpush.bf16.msra.mxu0 %v3187
    %3261 = vmatpush.bf16.msra.mxu0 %v3183
    %3262 = vmatpush.bf16.msra.mxu0 %v3179
    %3263 = vmatmul.bf16.gmra.mxu0 0
    %v3264 = vpop.f32.mrf.mxu0
    %v3265 = vadd.f32 0.0, %v3264
    %v3266 = vpop.f32.mrf.mxu0
    %3267 = vdwg.mxu0
    %3268 = vmatpush.bf16.msra.mxu0 %v3208
    %3269 = vmatpush.bf16.msra.mxu0 %v3204
    %3270 = vmatpush.bf16.msra.mxu0 %v3200
    %3271 = vmatpush.bf16.msra.mxu0 %v3196
    %3272 = vmatpush.bf16.msra.mxu0 %v3192
    %3273 = vmatpush.bf16.msra.mxu0 %v3188
    %3274 = vmatpush.bf16.msra.mxu0 %v3184
    %3275 = vmatpush.bf16.msra.mxu0 %v3180
    %3276 = vmatmul.bf16.gmra.mxu0 0
    %v3277 = vpop.f32.mrf.mxu0
    %v3278 = vadd.f32 0.0, %v3277
    %v3279 = vpop.f32.mrf.mxu0
    %3280 = vdwg.mxu0
    %3281 = vmatpush.bf16.msra.mxu0 %v3209
    %3282 = vmatpush.bf16.msra.mxu0 %v3205
    %3283 = vmatpush.bf16.msra.mxu0 %v3201
    %3284 = vmatpush.bf16.msra.mxu0 %v3197
    %3285 = vmatpush.bf16.msra.mxu0 %v3193
    %3286 = vmatpush.bf16.msra.mxu0 %v3189
    %3287 = vmatpush.bf16.msra.mxu0 %v3185
    %3288 = vmatpush.bf16.msra.mxu0 %v3181
    %3289 = vmatmul.bf16.gmra.mxu0 0
    %v3290 = vpop.f32.mrf.mxu0
    %v3291 = vadd.f32 0.0, %v3290
    %v3292 = vpop.f32.mrf.mxu0
    %3293 = vdwg.mxu0
    %v3294 = vadd.f32 %v3046, %v3252
    %v3295 = vadd.f32 %v3047, %v3265
    %v3296 = vadd.f32 %v3048, %v3278
    %v3297 = vadd.f32 %v3049, %v3291
    %v3298 = vmul.f32 %v3294, 0.5
    %v3299 = vtanh.pop %v3298
    %v3300 = vmul.f32 %v3299, 0.5
    %v3301 = vadd.f32 %v3300, 0.5
    %v3302 = vmul.f32 %v3295, 0.5
    %v3303 = vtanh.pop %v3302
    %v3304 = vmul.f32 %v3303, 0.5
    %v3305 = vadd.f32 %v3304, 0.5
    %v3306 = vtanh.pop %v3296
    %v3307 = vmul.f32 %v3297, 0.5
    %v3308 = vtanh.pop %v3307
    %v3309 = vmul.f32 %v3308, 0.5
    %v3310 = vadd.f32 %v3309, 0.5
    %v3311 = vmul.f32 %v3305, 0.0
    %v3312 = vmul.f32 %v3301, %v3306
    %v3313 = vadd.f32 %v3311, %v3312
    %v3314 = vtanh.pop %v3313
    %v3315 = vmul.f32 %v3310, %v3314
    %v3316 = vld [vmem:[%s754] sm:$0xff]
    %v3317 = vld [vmem:[%s754 + $0x8] sm:$0xff]
    %v3318 = vld [vmem:[%s754 + $0x10] sm:$0xff]
    %v3319 = vld [vmem:[%s754 + $0x18] sm:$0xff]
    %v3320 = vpack.c.bf16 %v3315, %v3315
    %3321 = vmatpush.bf16.msra.mxu0 %v3206
    %3322 = vmatpush.bf16.msra.mxu0 %v3202
    %3323 = vmatpush.bf16.msra.mxu0 %v3198
    %3324 = vmatpush.bf16.msra.mxu0 %v3194
    %3325 = vmatpush.bf16.msra.mxu0 %v3190
    %3326 = vmatpush.bf16.msra.mxu0 %v3186
    %3327 = vmatpush.bf16.msra.mxu0 %v3182
    %3328 = vmatpush.bf16.msra.mxu0 %v3178
    %3329 = vmatmul.bf16.gmra.mxu0 %v3320
    %v3330 = vpop.f32.mrf.mxu0
    %v3331 = vadd.f32 0.0, %v3330
    %v3332 = vpop.f32.mrf.mxu0
    %3333 = vdwg.mxu0
    %3334 = vmatpush.bf16.msra.mxu0 %v3207
    %3335 = vmatpush.bf16.msra.mxu0 %v3203
    %3336 = vmatpush.bf16.msra.mxu0 %v3199
    %3337 = vmatpush.bf16.msra.mxu0 %v3195
    %3338 = vmatpush.bf16.msra.mxu0 %v3191
    %3339 = vmatpush.bf16.msra.mxu0 %v3187
    %3340 = vmatpush.bf16.msra.mxu0 %v3183
    %3341 = vmatpush.bf16.msra.mxu0 %v3179
    %3342 = vmatmul.bf16.gmra.mxu0 %v3320
    %v3343 = vpop.f32.mrf.mxu0
    %v3344 = vadd.f32 0.0, %v3343
    %v3345 = vpop.f32.mrf.mxu0
    %3346 = vdwg.mxu0
    %3347 = vmatpush.bf16.msra.mxu0 %v3208
    %3348 = vmatpush.bf16.msra.mxu0 %v3204
    %3349 = vmatpush.bf16.msra.mxu0 %v3200
    %3350 = vmatpush.bf16.msra.mxu0 %v3196
    %3351 = vmatpush.bf16.msra.mxu0 %v3192
    %3352 = vmatpush.bf16.msra.mxu0 %v3188
    %3353 = vmatpush.bf16.msra.mxu0 %v3184
    %3354 = vmatpush.bf16.msra.mxu0 %v3180
    %3355 = vmatmul.bf16.gmra.mxu0 %v3320
    %v3356 = vpop.f32.mrf.mxu0
    %v3357 = vadd.f32 0.0, %v3356
    %v3358 = vpop.f32.mrf.mxu0
    %3359 = vdwg.mxu0
    %3360 = vmatpush.bf16.msra.mxu0 %v3209
    %3361 = vmatpush.bf16.msra.mxu0 %v3205
    %3362 = vmatpush.bf16.msra.mxu0 %v3201
    %3363 = vmatpush.bf16.msra.mxu0 %v3197
    %3364 = vmatpush.bf16.msra.mxu0 %v3193
    %3365 = vmatpush.bf16.msra.mxu0 %v3189
    %3366 = vmatpush.bf16.msra.mxu0 %v3185
    %3367 = vmatpush.bf16.msra.mxu0 %v3181
    %3368 = vmatmul.bf16.gmra.mxu0 %v3320
    %v3369 = vpop.f32.mrf.mxu0
    %v3370 = vadd.f32 0.0, %v3369
    %v3371 = vpop.f32.mrf.mxu0
    %3372 = vdwg.mxu0
    %v3373 = vadd.f32 %v3316, %v3331
    %v3374 = vadd.f32 %v3317, %v3344
    %v3375 = vadd.f32 %v3318, %v3357
    %v3376 = vadd.f32 %v3319, %v3370
    %v3377 = vmul.f32 %v3373, 0.5
    %v3378 = vtanh.pop %v3377
    %v3379 = vmul.f32 %v3378, 0.5
    %v3380 = vadd.f32 %v3379, 0.5
    %v3381 = vmul.f32 %v3374, 0.5
    %v3382 = vtanh.pop %v3381
    %v3383 = vmul.f32 %v3382, 0.5
    %v3384 = vadd.f32 %v3383, 0.5
    %v3385 = vtanh.pop %v3375
    %v3386 = vmul.f32 %v3376, 0.5
    %v3387 = vtanh.pop %v3386
    %v3388 = vmul.f32 %v3387, 0.5
    %v3389 = vadd.f32 %v3388, 0.5
    %v3390 = vmul.f32 %v3384, %v3313
    %v3391 = vmul.f32 %v3380, %v3385
    %v3392 = vadd.f32 %v3390, %v3391
    %v3393 = vtanh.pop %v3392
    %v3394 = vmul.f32 %v3389, %v3393
    %v3395 = vld [vmem:[%s1030] sm:$0xff]
    %v3396 = vld [vmem:[%s1030 + $0x8] sm:$0xff]
    %v3397 = vld [vmem:[%s1030 + $0x10] sm:$0xff]
    %v3398 = vld [vmem:[%s1030 + $0x18] sm:$0xff]
    %v3399 = vpack.c.bf16 %v3394, %v3394
    %3400 = vmatpush.bf16.msra.mxu0 %v3206
    %3401 = vmatpush.bf16.msra.mxu0 %v3202
    %3402 = vmatpush.bf16.msra.mxu0 %v3198
    %3403 = vmatpush.bf16.msra.mxu0 %v3194
    %3404 = vmatpush.bf16.msra.mxu0 %v3190
    %3405 = vmatpush.bf16.msra.mxu0 %v3186
    %3406 = vmatpush.bf16.msra.mxu0 %v3182
    %3407 = vmatpush.bf16.msra.mxu0 %v3178
    %3408 = vmatmul.bf16.gmra.mxu0 %v3399
    %v3409 = vpop.f32.mrf.mxu0
    %v3410 = vadd.f32 0.0, %v3409
    %v3411 = vpop.f32.mrf.mxu0
    %3412 = vdwg.mxu0
    %3413 = vmatpush.bf16.msra.mxu0 %v3207
    %3414 = vmatpush.bf16.msra.mxu0 %v3203
    %3415 = vmatpush.bf16.msra.mxu0 %v3199
    %3416 = vmatpush.bf16.msra.mxu0 %v3195
    %3417 = vmatpush.bf16.msra.mxu0 %v3191
    %3418 = vmatpush.bf16.msra.mxu0 %v3187
    %3419 = vmatpush.bf16.msra.mxu0 %v3183
    %3420 = vmatpush.bf16.msra.mxu0 %v3179
    %3421 = vmatmul.bf16.gmra.mxu0 %v3399
    %v3422 = vpop.f32.mrf.mxu0
    %v3423 = vadd.f32 0.0, %v3422
    %v3424 = vpop.f32.mrf.mxu0
    %3425 = vdwg.mxu0
    %3426 = vmatpush.bf16.msra.mxu0 %v3208
    %3427 = vmatpush.bf16.msra.mxu0 %v3204
    %3428 = vmatpush.bf16.msra.mxu0 %v3200
    %3429 = vmatpush.bf16.msra.mxu0 %v3196
    %3430 = vmatpush.bf16.msra.mxu0 %v3192
    %3431 = vmatpush.bf16.msra.mxu0 %v3188
    %3432 = vmatpush.bf16.msra.mxu0 %v3184
    %3433 = vmatpush.bf16.msra.mxu0 %v3180
    %3434 = vmatmul.bf16.gmra.mxu0 %v3399
    %v3435 = vpop.f32.mrf.mxu0
    %v3436 = vadd.f32 0.0, %v3435
    %v3437 = vpop.f32.mrf.mxu0
    %3438 = vdwg.mxu0
    %3439 = vmatpush.bf16.msra.mxu0 %v3209
    %3440 = vmatpush.bf16.msra.mxu0 %v3205
    %3441 = vmatpush.bf16.msra.mxu0 %v3201
    %3442 = vmatpush.bf16.msra.mxu0 %v3197
    %3443 = vmatpush.bf16.msra.mxu0 %v3193
    %3444 = vmatpush.bf16.msra.mxu0 %v3189
    %3445 = vmatpush.bf16.msra.mxu0 %v3185
    %3446 = vmatpush.bf16.msra.mxu0 %v3181
    %3447 = vmatmul.bf16.gmra.mxu0 %v3399
    %v3448 = vpop.f32.mrf.mxu0
    %v3449 = vadd.f32 0.0, %v3448
    %v3450 = vpop.f32.mrf.mxu0
    %3451 = vdwg.mxu0
    %v3452 = vadd.f32 %v3395, %v3410
    %v3453 = vadd.f32 %v3396, %v3423
    %v3454 = vadd.f32 %v3397, %v3436
    %v3455 = vadd.f32 %v3398, %v3449
    %v3456 = vmul.f32 %v3452, 0.5
    %v3457 = vtanh.pop %v3456
    %v3458 = vmul.f32 %v3457, 0.5
    %v3459 = vadd.f32 %v3458, 0.5
    %v3460 = vmul.f32 %v3453, 0.5
    %v3461 = vtanh.pop %v3460
    %v3462 = vmul.f32 %v3461, 0.5
    %v3463 = vadd.f32 %v3462, 0.5
    %v3464 = vtanh.pop %v3454
    %v3465 = vmul.f32 %v3455, 0.5
    %v3466 = vtanh.pop %v3465
    %v3467 = vmul.f32 %v3466, 0.5
    %v3468 = vadd.f32 %v3467, 0.5
    %v3469 = vmul.f32 %v3463, %v3392
    %v3470 = vmul.f32 %v3459, %v3464
    %v3471 = vadd.f32 %v3469, %v3470
    %v3472 = vtanh.pop %v3471
    %v3473 = vmul.f32 %v3468, %v3472
    %v3474 = vld [vmem:[%s1306] sm:$0xff]
    %v3475 = vld [vmem:[%s1306 + $0x8] sm:$0xff]
    %v3476 = vld [vmem:[%s1306 + $0x10] sm:$0xff]
    %v3477 = vld [vmem:[%s1306 + $0x18] sm:$0xff]
    %v3478 = vpack.c.bf16 %v3473, %v3473
    %3479 = vmatpush.bf16.msra.mxu0 %v3206
    %3480 = vmatpush.bf16.msra.mxu0 %v3202
    %3481 = vmatpush.bf16.msra.mxu0 %v3198
    %3482 = vmatpush.bf16.msra.mxu0 %v3194
    %3483 = vmatpush.bf16.msra.mxu0 %v3190
    %3484 = vmatpush.bf16.msra.mxu0 %v3186
    %3485 = vmatpush.bf16.msra.mxu0 %v3182
    %3486 = vmatpush.bf16.msra.mxu0 %v3178
    %3487 = vmatmul.bf16.gmra.mxu0 %v3478
    %v3488 = vpop.f32.mrf.mxu0
    %v3489 = vadd.f32 0.0, %v3488
    %v3490 = vpop.f32.mrf.mxu0
    %3491 = vdwg.mxu0
    %3492 = vmatpush.bf16.msra.mxu0 %v3207
    %3493 = vmatpush.bf16.msra.mxu0 %v3203
    %3494 = vmatpush.bf16.msra.mxu0 %v3199
    %3495 = vmatpush.bf16.msra.mxu0 %v3195
    %3496 = vmatpush.bf16.msra.mxu0 %v3191
    %3497 = vmatpush.bf16.msra.mxu0 %v3187
    %3498 = vmatpush.bf16.msra.mxu0 %v3183
    %3499 = vmatpush.bf16.msra.mxu0 %v3179
    %3500 = vmatmul.bf16.gmra.mxu0 %v3478
    %v3501 = vpop.f32.mrf.mxu0
    %v3502 = vadd.f32 0.0, %v3501
    %v3503 = vpop.f32.mrf.mxu0
    %3504 = vdwg.mxu0
    %3505 = vmatpush.bf16.msra.mxu0 %v3208
    %3506 = vmatpush.bf16.msra.mxu0 %v3204
    %3507 = vmatpush.bf16.msra.mxu0 %v3200
    %3508 = vmatpush.bf16.msra.mxu0 %v3196
    %3509 = vmatpush.bf16.msra.mxu0 %v3192
    %3510 = vmatpush.bf16.msra.mxu0 %v3188
    %3511 = vmatpush.bf16.msra.mxu0 %v3184
    %3512 = vmatpush.bf16.msra.mxu0 %v3180
    %3513 = vmatmul.bf16.gmra.mxu0 %v3478
    %v3514 = vpop.f32.mrf.mxu0
    %v3515 = vadd.f32 0.0, %v3514
    %v3516 = vpop.f32.mrf.mxu0
    %3517 = vdwg.mxu0
    %3518 = vmatpush.bf16.msra.mxu0 %v3209
    %3519 = vmatpush.bf16.msra.mxu0 %v3205
    %3520 = vmatpush.bf16.msra.mxu0 %v3201
    %3521 = vmatpush.bf16.msra.mxu0 %v3197
    %3522 = vmatpush.bf16.msra.mxu0 %v3193
    %3523 = vmatpush.bf16.msra.mxu0 %v3189
    %3524 = vmatpush.bf16.msra.mxu0 %v3185
    %3525 = vmatpush.bf16.msra.mxu0 %v3181
    %3526 = vmatmul.bf16.gmra.mxu0 %v3478
    %v3527 = vpop.f32.mrf.mxu0
    %v3528 = vadd.f32 0.0, %v3527
    %v3529 = vpop.f32.mrf.mxu0
    %3530 = vdwg.mxu0
    %v3531 = vadd.f32 %v3474, %v3489
    %v3532 = vadd.f32 %v3475, %v3502
    %v3533 = vadd.f32 %v3476, %v3515
    %v3534 = vadd.f32 %v3477, %v3528
    %v3535 = vmul.f32 %v3531, 0.5
    %v3536 = vtanh.pop %v3535
    %v3537 = vmul.f32 %v3536, 0.5
    %v3538 = vadd.f32 %v3537, 0.5
    %v3539 = vmul.f32 %v3532, 0.5
    %v3540 = vtanh.pop %v3539
    %v3541 = vmul.f32 %v3540, 0.5
    %v3542 = vadd.f32 %v3541, 0.5
    %v3543 = vtanh.pop %v3533
    %v3544 = vmul.f32 %v3534, 0.5
    %v3545 = vtanh.pop %v3544
    %v3546 = vmul.f32 %v3545, 0.5
    %v3547 = vadd.f32 %v3546, 0.5
    %v3548 = vmul.f32 %v3542, %v3471
    %v3549 = vmul.f32 %v3538, %v3543
    %v3550 = vadd.f32 %v3548, %v3549
    %v3551 = vtanh.pop %v3550
    %v3552 = vmul.f32 %v3547, %v3551
    %v3553 = vld [vmem:[%s1582] sm:$0xff]
    %v3554 = vld [vmem:[%s1582 + $0x8] sm:$0xff]
    %v3555 = vld [vmem:[%s1582 + $0x10] sm:$0xff]
    %v3556 = vld [vmem:[%s1582 + $0x18] sm:$0xff]
    %v3557 = vpack.c.bf16 %v3552, %v3552
    %3558 = vmatpush.bf16.msra.mxu0 %v3206
    %3559 = vmatpush.bf16.msra.mxu0 %v3202
    %3560 = vmatpush.bf16.msra.mxu0 %v3198
    %3561 = vmatpush.bf16.msra.mxu0 %v3194
    %3562 = vmatpush.bf16.msra.mxu0 %v3190
    %3563 = vmatpush.bf16.msra.mxu0 %v3186
    %3564 = vmatpush.bf16.msra.mxu0 %v3182
    %3565 = vmatpush.bf16.msra.mxu0 %v3178
    %3566 = vmatmul.bf16.gmra.mxu0 %v3557
    %v3567 = vpop.f32.mrf.mxu0
    %v3568 = vadd.f32 0.0, %v3567
    %v3569 = vpop.f32.mrf.mxu0
    %3570 = vdwg.mxu0
    %3571 = vmatpush.bf16.msra.mxu0 %v3207
    %3572 = vmatpush.bf16.msra.mxu0 %v3203
    %3573 = vmatpush.bf16.msra.mxu0 %v3199
    %3574 = vmatpush.bf16.msra.mxu0 %v3195
    %3575 = vmatpush.bf16.msra.mxu0 %v3191
    %3576 = vmatpush.bf16.msra.mxu0 %v3187
    %3577 = vmatpush.bf16.msra.mxu0 %v3183
    %3578 = vmatpush.bf16.msra.mxu0 %v3179
    %3579 = vmatmul.bf16.gmra.mxu0 %v3557
    %v3580 = vpop.f32.mrf.mxu0
    %v3581 = vadd.f32 0.0, %v3580
    %v3582 = vpop.f32.mrf.mxu0
    %3583 = vdwg.mxu0
    %3584 = vmatpush.bf16.msra.mxu0 %v3208
    %3585 = vmatpush.bf16.msra.mxu0 %v3204
    %3586 = vmatpush.bf16.msra.mxu0 %v3200
    %3587 = vmatpush.bf16.msra.mxu0 %v3196
    %3588 = vmatpush.bf16.msra.mxu0 %v3192
    %3589 = vmatpush.bf16.msra.mxu0 %v3188
    %3590 = vmatpush.bf16.msra.mxu0 %v3184
    %3591 = vmatpush.bf16.msra.mxu0 %v3180
    %3592 = vmatmul.bf16.gmra.mxu0 %v3557
    %v3593 = vpop.f32.mrf.mxu0
    %v3594 = vadd.f32 0.0, %v3593
    %v3595 = vpop.f32.mrf.mxu0
    %3596 = vdwg.mxu0
    %3597 = vmatpush.bf16.msra.mxu0 %v3209
    %3598 = vmatpush.bf16.msra.mxu0 %v3205
    %3599 = vmatpush.bf16.msra.mxu0 %v3201
    %3600 = vmatpush.bf16.msra.mxu0 %v3197
    %3601 = vmatpush.bf16.msra.mxu0 %v3193
    %3602 = vmatpush.bf16.msra.mxu0 %v3189
    %3603 = vmatpush.bf16.msra.mxu0 %v3185
    %3604 = vmatpush.bf16.msra.mxu0 %v3181
    %3605 = vmatmul.bf16.gmra.mxu0 %v3557
    %v3606 = vpop.f32.mrf.mxu0
    %v3607 = vadd.f32 0.0, %v3606
    %v3608 = vpop.f32.mrf.mxu0
    %3609 = vdwg.mxu0
    %v3610 = vadd.f32 %v3553, %v3568
    %v3611 = vadd.f32 %v3554, %v3581
    %v3612 = vadd.f32 %v3555, %v3594
    %v3613 = vadd.f32 %v3556, %v3607
    %v3614 = vmul.f32 %v3610, 0.5
    %v3615 = vtanh.pop %v3614
    %v3616 = vmul.f32 %v3615, 0.5
    %v3617 = vadd.f32 %v3616, 0.5
    %v3618 = vmul.f32 %v3611, 0.5
    %v3619 = vtanh.pop %v3618
    %v3620 = vmul.f32 %v3619, 0.5
    %v3621 = vadd.f32 %v3620, 0.5
    %v3622 = vtanh.pop %v3612
    %v3623 = vmul.f32 %v3613, 0.5
    %v3624 = vtanh.pop %v3623
    %v3625 = vmul.f32 %v3624, 0.5
    %v3626 = vadd.f32 %v3625, 0.5
    %v3627 = vmul.f32 %v3621, %v3550
    %v3628 = vmul.f32 %v3617, %v3622
    %v3629 = vadd.f32 %v3627, %v3628
    %v3630 = vtanh.pop %v3629
    %v3631 = vmul.f32 %v3626, %v3630
    %v3632 = vld [vmem:[%s1858] sm:$0xff]
    %v3633 = vld [vmem:[%s1858 + $0x8] sm:$0xff]
    %v3634 = vld [vmem:[%s1858 + $0x10] sm:$0xff]
    %v3635 = vld [vmem:[%s1858 + $0x18] sm:$0xff]
    %v3636 = vpack.c.bf16 %v3631, %v3631
    %3637 = vmatpush.bf16.msra.mxu0 %v3206
    %3638 = vmatpush.bf16.msra.mxu0 %v3202
    %3639 = vmatpush.bf16.msra.mxu0 %v3198
    %3640 = vmatpush.bf16.msra.mxu0 %v3194
    %3641 = vmatpush.bf16.msra.mxu0 %v3190
    %3642 = vmatpush.bf16.msra.mxu0 %v3186
    %3643 = vmatpush.bf16.msra.mxu0 %v3182
    %3644 = vmatpush.bf16.msra.mxu0 %v3178
    %3645 = vmatmul.bf16.gmra.mxu0 %v3636
    %v3646 = vpop.f32.mrf.mxu0
    %v3647 = vadd.f32 0.0, %v3646
    %v3648 = vpop.f32.mrf.mxu0
    %3649 = vdwg.mxu0
    %3650 = vmatpush.bf16.msra.mxu0 %v3207
    %3651 = vmatpush.bf16.msra.mxu0 %v3203
    %3652 = vmatpush.bf16.msra.mxu0 %v3199
    %3653 = vmatpush.bf16.msra.mxu0 %v3195
    %3654 = vmatpush.bf16.msra.mxu0 %v3191
    %3655 = vmatpush.bf16.msra.mxu0 %v3187
    %3656 = vmatpush.bf16.msra.mxu0 %v3183
    %3657 = vmatpush.bf16.msra.mxu0 %v3179
    %3658 = vmatmul.bf16.gmra.mxu0 %v3636
    %v3659 = vpop.f32.mrf.mxu0
    %v3660 = vadd.f32 0.0, %v3659
    %v3661 = vpop.f32.mrf.mxu0
    %3662 = vdwg.mxu0
    %3663 = vmatpush.bf16.msra.mxu0 %v3208
    %3664 = vmatpush.bf16.msra.mxu0 %v3204
    %3665 = vmatpush.bf16.msra.mxu0 %v3200
    %3666 = vmatpush.bf16.msra.mxu0 %v3196
    %3667 = vmatpush.bf16.msra.mxu0 %v3192
    %3668 = vmatpush.bf16.msra.mxu0 %v3188
    %3669 = vmatpush.bf16.msra.mxu0 %v3184
    %3670 = vmatpush.bf16.msra.mxu0 %v3180
    %3671 = vmatmul.bf16.gmra.mxu0 %v3636
    %v3672 = vpop.f32.mrf.mxu0
    %v3673 = vadd.f32 0.0, %v3672
    %v3674 = vpop.f32.mrf.mxu0
    %3675 = vdwg.mxu0
    %3676 = vmatpush.bf16.msra.mxu0 %v3209
    %3677 = vmatpush.bf16.msra.mxu0 %v3205
    %3678 = vmatpush.bf16.msra.mxu0 %v3201
    %3679 = vmatpush.bf16.msra.mxu0 %v3197
    %3680 = vmatpush.bf16.msra.mxu0 %v3193
    %3681 = vmatpush.bf16.msra.mxu0 %v3189
    %3682 = vmatpush.bf16.msra.mxu0 %v3185
    %3683 = vmatpush.bf16.msra.mxu0 %v3181
    %3684 = vmatmul.bf16.gmra.mxu0 %v3636
    %v3685 = vpop.f32.mrf.mxu0
    %v3686 = vadd.f32 0.0, %v3685
    %v3687 = vpop.f32.mrf.mxu0
    %3688 = vdwg.mxu0
    %v3689 = vadd.f32 %v3632, %v3647
    %v3690 = vadd.f32 %v3633, %v3660
    %v3691 = vadd.f32 %v3634, %v3673
    %v3692 = vadd.f32 %v3635, %v3686
    %v3693 = vmul.f32 %v3689, 0.5
    %v3694 = vtanh.pop %v3693
    %v3695 = vmul.f32 %v3694, 0.5
    %v3696 = vadd.f32 %v3695, 0.5
    %v3697 = vmul.f32 %v3690, 0.5
    %v3698 = vtanh.pop %v3697
    %v3699 = vmul.f32 %v3698, 0.5
    %v3700 = vadd.f32 %v3699, 0.5
    %v3701 = vtanh.pop %v3691
    %v3702 = vmul.f32 %v3692, 0.5
    %v3703 = vtanh.pop %v3702
    %v3704 = vmul.f32 %v3703, 0.5
    %v3705 = vadd.f32 %v3704, 0.5
    %v3706 = vmul.f32 %v3700, %v3629
    %v3707 = vmul.f32 %v3696, %v3701
    %v3708 = vadd.f32 %v3706, %v3707
    %v3709 = vtanh.pop %v3708
    %v3710 = vmul.f32 %v3705, %v3709
    %v3711 = vld [vmem:[%s2134] sm:$0xff]
    %v3712 = vld [vmem:[%s2134 + $0x8] sm:$0xff]
    %v3713 = vld [vmem:[%s2134 + $0x10] sm:$0xff]
    %v3714 = vld [vmem:[%s2134 + $0x18] sm:$0xff]
    %v3715 = vpack.c.bf16 %v3710, %v3710
    %3716 = vmatpush.bf16.msra.mxu0 %v3206
    %3717 = vmatpush.bf16.msra.mxu0 %v3202
    %3718 = vmatpush.bf16.msra.mxu0 %v3198
    %3719 = vmatpush.bf16.msra.mxu0 %v3194
    %3720 = vmatpush.bf16.msra.mxu0 %v3190
    %3721 = vmatpush.bf16.msra.mxu0 %v3186
    %3722 = vmatpush.bf16.msra.mxu0 %v3182
    %3723 = vmatpush.bf16.msra.mxu0 %v3178
    %3724 = vmatmul.bf16.gmra.mxu0 %v3715
    %v3725 = vpop.f32.mrf.mxu0
    %v3726 = vadd.f32 0.0, %v3725
    %v3727 = vpop.f32.mrf.mxu0
    %3728 = vdwg.mxu0
    %3729 = vmatpush.bf16.msra.mxu0 %v3207
    %3730 = vmatpush.bf16.msra.mxu0 %v3203
    %3731 = vmatpush.bf16.msra.mxu0 %v3199
    %3732 = vmatpush.bf16.msra.mxu0 %v3195
    %3733 = vmatpush.bf16.msra.mxu0 %v3191
    %3734 = vmatpush.bf16.msra.mxu0 %v3187
    %3735 = vmatpush.bf16.msra.mxu0 %v3183
    %3736 = vmatpush.bf16.msra.mxu0 %v3179
    %3737 = vmatmul.bf16.gmra.mxu0 %v3715
    %v3738 = vpop.f32.mrf.mxu0
    %v3739 = vadd.f32 0.0, %v3738
    %v3740 = vpop.f32.mrf.mxu0
    %3741 = vdwg.mxu0
    %3742 = vmatpush.bf16.msra.mxu0 %v3208
    %3743 = vmatpush.bf16.msra.mxu0 %v3204
    %3744 = vmatpush.bf16.msra.mxu0 %v3200
    %3745 = vmatpush.bf16.msra.mxu0 %v3196
    %3746 = vmatpush.bf16.msra.mxu0 %v3192
    %3747 = vmatpush.bf16.msra.mxu0 %v3188
    %3748 = vmatpush.bf16.msra.mxu0 %v3184
    %3749 = vmatpush.bf16.msra.mxu0 %v3180
    %3750 = vmatmul.bf16.gmra.mxu0 %v3715
    %v3751 = vpop.f32.mrf.mxu0
    %v3752 = vadd.f32 0.0, %v3751
    %v3753 = vpop.f32.mrf.mxu0
    %3754 = vdwg.mxu0
    %3755 = vmatpush.bf16.msra.mxu0 %v3209
    %3756 = vmatpush.bf16.msra.mxu0 %v3205
    %3757 = vmatpush.bf16.msra.mxu0 %v3201
    %3758 = vmatpush.bf16.msra.mxu0 %v3197
    %3759 = vmatpush.bf16.msra.mxu0 %v3193
    %3760 = vmatpush.bf16.msra.mxu0 %v3189
    %3761 = vmatpush.bf16.msra.mxu0 %v3185
    %3762 = vmatpush.bf16.msra.mxu0 %v3181
    %3763 = vmatmul.bf16.gmra.mxu0 %v3715
    %v3764 = vpop.f32.mrf.mxu0
    %v3765 = vadd.f32 0.0, %v3764
    %v3766 = vpop.f32.mrf.mxu0
    %3767 = vdwg.mxu0
    %v3768 = vadd.f32 %v3711, %v3726
    %v3769 = vadd.f32 %v3712, %v3739
    %v3770 = vadd.f32 %v3713, %v3752
    %v3771 = vadd.f32 %v3714, %v3765
    %v3772 = vmul.f32 %v3768, 0.5
    %v3773 = vtanh.pop %v3772
    %v3774 = vmul.f32 %v3773, 0.5
    %v3775 = vadd.f32 %v3774, 0.5
    %v3776 = vmul.f32 %v3769, 0.5
    %v3777 = vtanh.pop %v3776
    %v3778 = vmul.f32 %v3777, 0.5
    %v3779 = vadd.f32 %v3778, 0.5
    %v3780 = vtanh.pop %v3770
    %v3781 = vmul.f32 %v3771, 0.5
    %v3782 = vtanh.pop %v3781
    %v3783 = vmul.f32 %v3782, 0.5
    %v3784 = vadd.f32 %v3783, 0.5
    %v3785 = vmul.f32 %v3779, %v3708
    %v3786 = vmul.f32 %v3775, %v3780
    %v3787 = vadd.f32 %v3785, %v3786
    %v3788 = vtanh.pop %v3787
    %v3789 = vmul.f32 %v3784, %v3788
    %v3790 = vld [vmem:[%s2410] sm:$0xff]
    %v3791 = vld [vmem:[%s2410 + $0x8] sm:$0xff]
    %v3792 = vld [vmem:[%s2410 + $0x10] sm:$0xff]
    %v3793 = vld [vmem:[%s2410 + $0x18] sm:$0xff]
    %v3794 = vpack.c.bf16 %v3789, %v3789
    %3795 = vmatpush.bf16.msra.mxu0 %v3206
    %3796 = vmatpush.bf16.msra.mxu0 %v3202
    %3797 = vmatpush.bf16.msra.mxu0 %v3198
    %3798 = vmatpush.bf16.msra.mxu0 %v3194
    %3799 = vmatpush.bf16.msra.mxu0 %v3190
    %3800 = vmatpush.bf16.msra.mxu0 %v3186
    %3801 = vmatpush.bf16.msra.mxu0 %v3182
    %3802 = vmatpush.bf16.msra.mxu0 %v3178
    %3803 = vmatmul.bf16.gmra.mxu0 %v3794
    %v3804 = vpop.f32.mrf.mxu0
    %v3805 = vadd.f32 0.0, %v3804
    %v3806 = vpop.f32.mrf.mxu0
    %3807 = vdwg.mxu0
    %3808 = vmatpush.bf16.msra.mxu0 %v3207
    %3809 = vmatpush.bf16.msra.mxu0 %v3203
    %3810 = vmatpush.bf16.msra.mxu0 %v3199
    %3811 = vmatpush.bf16.msra.mxu0 %v3195
    %3812 = vmatpush.bf16.msra.mxu0 %v3191
    %3813 = vmatpush.bf16.msra.mxu0 %v3187
    %3814 = vmatpush.bf16.msra.mxu0 %v3183
    %3815 = vmatpush.bf16.msra.mxu0 %v3179
    %3816 = vmatmul.bf16.gmra.mxu0 %v3794
    %v3817 = vpop.f32.mrf.mxu0
    %v3818 = vadd.f32 0.0, %v3817
    %v3819 = vpop.f32.mrf.mxu0
    %3820 = vdwg.mxu0
    %3821 = vmatpush.bf16.msra.mxu0 %v3208
    %3822 = vmatpush.bf16.msra.mxu0 %v3204
    %3823 = vmatpush.bf16.msra.mxu0 %v3200
    %3824 = vmatpush.bf16.msra.mxu0 %v3196
    %3825 = vmatpush.bf16.msra.mxu0 %v3192
    %3826 = vmatpush.bf16.msra.mxu0 %v3188
    %3827 = vmatpush.bf16.msra.mxu0 %v3184
    %3828 = vmatpush.bf16.msra.mxu0 %v3180
    %3829 = vmatmul.bf16.gmra.mxu0 %v3794
    %v3830 = vpop.f32.mrf.mxu0
    %v3831 = vadd.f32 0.0, %v3830
    %v3832 = vpop.f32.mrf.mxu0
    %3833 = vdwg.mxu0
    %3834 = vmatpush.bf16.msra.mxu0 %v3209
    %3835 = vmatpush.bf16.msra.mxu0 %v3205
    %3836 = vmatpush.bf16.msra.mxu0 %v3201
    %3837 = vmatpush.bf16.msra.mxu0 %v3197
    %3838 = vmatpush.bf16.msra.mxu0 %v3193
    %3839 = vmatpush.bf16.msra.mxu0 %v3189
    %3840 = vmatpush.bf16.msra.mxu0 %v3185
    %3841 = vmatpush.bf16.msra.mxu0 %v3181
    %3842 = vmatmul.bf16.gmra.mxu0 %v3794
    %v3843 = vpop.f32.mrf.mxu0
    %v3844 = vadd.f32 0.0, %v3843
    %v3845 = vpop.f32.mrf.mxu0
    %3846 = vdwg.mxu0
    %v3847 = vadd.f32 %v3790, %v3805
    %v3848 = vadd.f32 %v3791, %v3818
    %v3849 = vadd.f32 %v3792, %v3831
    %v3850 = vadd.f32 %v3793, %v3844
    %v3851 = vmul.f32 %v3847, 0.5
    %v3852 = vtanh.pop %v3851
    %v3853 = vmul.f32 %v3852, 0.5
    %v3854 = vadd.f32 %v3853, 0.5
    %v3855 = vmul.f32 %v3848, 0.5
    %v3856 = vtanh.pop %v3855
    %v3857 = vmul.f32 %v3856, 0.5
    %v3858 = vadd.f32 %v3857, 0.5
    %v3859 = vtanh.pop %v3849
    %v3860 = vmul.f32 %v3850, 0.5
    %v3861 = vtanh.pop %v3860
    %v3862 = vmul.f32 %v3861, 0.5
    %v3863 = vadd.f32 %v3862, 0.5
    %v3864 = vmul.f32 %v3858, %v3787
    %v3865 = vmul.f32 %v3854, %v3859
    %v3866 = vadd.f32 %v3864, %v3865
    %v3867 = vtanh.pop %v3866
    %v3868 = vmul.f32 %v3863, %v3867
    %v3869 = vmax.f32 %v3868, 0.0
    %v3870 = vpack.c.bf16 %v3869, %v3869
    %v3871 = vld [vmem:[%s7] sm:$0xf]
    %v3872 = vld [vmem:[%s7 + $0x4] sm:$0xf]
    %v3873 = vld [vmem:[%s7 + $0x8] sm:$0xf]
    %v3874 = vld [vmem:[%s7 + $0xc] sm:$0xf]
    %v3875 = vld [vmem:[%s7 + $0x10] sm:$0xf]
    %v3876 = vld [vmem:[%s7 + $0x14] sm:$0xf]
    %v3877 = vld [vmem:[%s7 + $0x18] sm:$0xf]
    %v3878 = vld [vmem:[%s7 + $0x1c] sm:$0xf]
    %v3879 = vld [vmem:[%s7 + $0x20] sm:$0xf]
    %v3880 = vld [vmem:[%s7 + $0x24] sm:$0xf]
    %v3881 = vld [vmem:[%s7 + $0x28] sm:$0xf]
    %v3882 = vld [vmem:[%s7 + $0x2c] sm:$0xf]
    %v3883 = vld [vmem:[%s7 + $0x30] sm:$0xf]
    %v3884 = vld [vmem:[%s7 + $0x34] sm:$0xf]
    %v3885 = vld [vmem:[%s7 + $0x38] sm:$0xf]
    %v3886 = vld [vmem:[%s7 + $0x3c] sm:$0xf]
    %v3887 = vld [vmem:[%s8] sm:$0x1]
    %v3889 = vperm.slane %v3887, 0
    %v3907 = vunpack.c.l.b16 %v3871
    %v3908 = vunpack.c.l.b16 %v3872
    %v3909 = vunpack.c.l.b16 %v3873
    %v3910 = vunpack.c.l.b16 %v3874
    %v3911 = vunpack.c.l.b16 %v3875
    %v3912 = vunpack.c.l.b16 %v3876
    %v3913 = vunpack.c.l.b16 %v3877
    %v3914 = vunpack.c.l.b16 %v3878
    %v3915 = vunpack.c.l.b16 %v3879
    %v3916 = vunpack.c.l.b16 %v3880
    %v3917 = vunpack.c.l.b16 %v3881
    %v3918 = vunpack.c.l.b16 %v3882
    %v3919 = vunpack.c.l.b16 %v3883
    %v3920 = vunpack.c.l.b16 %v3884
    %v3921 = vunpack.c.l.b16 %v3885
    %v3922 = vunpack.c.l.b16 %v3886
    %v3923 = vpack.c.b16 %v3908, %v3907
    %v3924 = vpack.c.b16 %v3910, %v3909
    %v3925 = vpack.c.b16 %v3912, %v3911
    %v3926 = vpack.c.b16 %v3914, %v3913
    %v3927 = vpack.c.b16 %v3916, %v3915
    %v3928 = vpack.c.b16 %v3918, %v3917
    %v3929 = vpack.c.b16 %v3920, %v3919
    %v3930 = vpack.c.b16 %v3922, %v3921
    %3939 = vmatpush.bf16.msra.mxu0 %v3930
    %3940 = vmatpush.bf16.msra.mxu0 %v3929
    %3941 = vmatpush.bf16.msra.mxu0 %v3928
    %3942 = vmatpush.bf16.msra.mxu0 %v3927
    %3943 = vmatpush.bf16.msra.mxu0 %v3926
    %3944 = vmatpush.bf16.msra.mxu0 %v3925
    %3945 = vmatpush.bf16.msra.mxu0 %v3924
    %3946 = vmatpush.bf16.msra.mxu0 %v3923
    %3947 = vmatmul.bf16.gmra.mxu0 %v3870
    %v3948 = vpop.f32.mrf.mxu0
    %v3949 = vadd.f32 %v3889, %v3948
    %v3950 = vpop.f32.mrf.mxu0
    %3951 = vdwg.mxu0
    %3952 = vst [vmem:[%s9] sm:$0xff] %v3949
    // Predicated region
    $region54: #{lstm_model_forward.1} parent=1 // pred_check
      _
    $region55: #{lstm_model_forward.1} parent=1 // pred_check_branch
      %3954 = sbr.rel (0) target = $region57
    $region56: #{lstm_model_forward.1} parent=1 // pred_region
      _
    $region57: #{lstm_model_forward.1} parent=1 // pred_fallthru
      _
    // Predicated region
    $region58: #{lstm_model_forward.1} parent=1 // pred_check
      _
    $region59: #{lstm_model_forward.1} parent=1 // pred_check_branch
      %3956 = sbr.rel (0) target = $region61
    $region60: #{lstm_model_forward.1} parent=1 // pred_region
      _
    $region61: #{lstm_model_forward.1} parent=1 // pred_fallthru
      _
    %3957 = vsyncpa [#allocation6], 1
    %3958 = vsyncpa [#allocation8], 1
    %3959 = vsyncpa [#allocation11], 1

</llo_original>
